<compile_context>
chip_gen: v5e
topology: v5e:2x2
jax: 0.10.0
libtpu: 0.0.40
codegen_flags: <defaults>
</compile_context>

<pallas_src>
import functools

import numpy as np
import jax
import jax.numpy as jnp
from jax.experimental import pallas as pl
from jax.experimental.pallas import tpu as pltpu


# ----------------------------------------------------------------------------
# Filterbank construction (plain numpy "glue", deterministic).
# ----------------------------------------------------------------------------
def _circulant(h, T):
    # W[t, u] = h[(u - t) mod T]  so that (x @ W)[m, u] = (x circ-conv h)[m, u]
    idx = (np.arange(T)[None, :] - np.arange(T)[:, None]) % T
    return h[idx]


def build_scattering_params(T, Q):
    J = int(np.floor(np.log2(T / 2.0)))
    sub = 2 ** J
    Tsub = max(T // sub, 1)
    n = ((np.arange(T) + T // 2) % T) - T // 2  # centered, periodized support
    xi_max = 0.35

    # ---- first-order Morlet wavelets: Q per octave, J octaves ----
    K1 = J * Q
    psi1, xi1 = [], []
    for k in range(K1):
        xi = xi_max * 2.0 ** (-k / Q)
        sigma = Q / (2.0 * np.pi * xi)
        g = np.exp(-(n ** 2) / (2.0 * sigma ** 2))
        carrier = np.exp(2j * np.pi * xi * n)
        kappa = np.sum(g * carrier) / np.sum(g)      # zero-mean correction
        psi = g * (carrier - kappa)
        psi = psi / (np.abs(psi).sum() + 1e-12)
        psi1.append(psi)
        xi1.append(xi)

    # ---- second-order Morlet wavelets: 1 per octave ----
    psi2, xi2 = [], []
    for j in range(J):
        xi = xi_max * 2.0 ** (-j)
        sigma = 1.0 / (2.0 * np.pi * xi)
        g = np.exp(-(n ** 2) / (2.0 * sigma ** 2))
        carrier = np.exp(2j * np.pi * xi * n)
        kappa = np.sum(g * carrier) / np.sum(g)
        psi = g * (carrier - kappa)
        psi = psi / (np.abs(psi).sum() + 1e-12)
        psi2.append(psi)
        xi2.append(xi)

    xi1 = np.asarray(xi1)
    xi2 = np.asarray(xi2)

    # Admissible (k1, j2) pairs require xi2[j2] < xi1[k1]. xi1 is strictly
    # decreasing, so for each j2 the admissible k1's are a contiguous prefix.
    nk = [int(np.sum(xi1 > xi2[j])) for j in range(J)]   # nk[0] == 0
    P = int(np.sum(nk))

    # ---- first-order circulants, stacked: (K1, T, T) ----
    W1 = np.stack([_circulant(p, T) for p in psi1], axis=0)
    W1re = W1.real.astype(np.float32)
    W1im = W1.imag.astype(np.float32)

    # ---- second-order circulants for j2 = 1..J-1: (max(J-1,1), T, T) ----
    if J >= 2:
        W2 = np.stack([_circulant(psi2[j], T) for j in range(1, J)], axis=0)
    else:
        W2 = np.zeros((1, T, T), np.complex128)
    W2re = W2.real.astype(np.float32)
    W2im = W2.imag.astype(np.float32)

    # ---- Gaussian low-pass + subsample-by-2^J matrix: (T, Tsub) ----
    sigma_phi = 0.4 * sub
    phi = np.exp(-(n ** 2) / (2.0 * sigma_phi ** 2))
    phi = phi / phi.sum()
    u_idx = np.arange(Tsub) * sub
    phi_sub = phi[(u_idx[None, :] - np.arange(T)[:, None]) % T].astype(np.float32)

    # ---- permutation mapping the kernel's j2-grouped second-order ordering
    #      back to the previous (k1-major) coefficient ordering ----
    offs = np.concatenate([[0], np.cumsum(nk)]).astype(np.int64)  # offs[j2]=sum(nk[:j2])
    pairs_canonical = [(k1, j2) for k1 in range(K1) for j2 in range(J)
                       if xi2[j2] < xi1[k1]]
    perm = list(range(K1)) + [K1 + int(offs[j2]) + k1 for (k1, j2) in pairs_canonical]
    perm = np.asarray(perm, dtype=np.int32)

    return dict(J=J, K1=K1, P=P, Tsub=Tsub, nk=nk, perm=perm,
                W1re=W1re, W1im=W1im, W2re=W2re, W2im=W2im, phi_sub=phi_sub)


# ----------------------------------------------------------------------------
# Pallas kernel: processes one (tile_m, T) tile of rows (rows = C*B) per step.
# ----------------------------------------------------------------------------
def scatter_kernel(x_ref, w1re_ref, w1im_ref, w2re_ref, w2im_ref, phi_ref,
                   out_ref, *, J, K1, nk, T, Tsub, tile_m):
    f32 = jnp.float32
    bf16 = jnp.bfloat16

    xb = x_ref[...].astype(bf16)                                  # (tile_m, T)
    xbb = jnp.broadcast_to(xb[None, :, :], (K1, tile_m, T))       # (K1, tile_m, T)

    # ---- first order: batched circular conv with all K1 wavelets, modulus ----
    re1 = jnp.einsum('kmt,ktu->kmu', xbb, w1re_ref[...],
                     preferred_element_type=f32)                  # (K1, tile_m, T)
    im1 = jnp.einsum('kmt,ktu->kmu', xbb, w1im_ref[...],
                     preferred_element_type=f32)
    u1 = jnp.sqrt(re1 * re1 + im1 * im1)                          # f32
    u1b = u1.astype(bf16)

    phi = phi_ref[...]                                            # (T, Tsub) bf16

    def lowpass_log_mean(u_bf, nfilt):
        # Gaussian lowpass + 2^J subsample, then log(.+eps), then time mean.
        phib = jnp.broadcast_to(phi[None, :, :], (nfilt, T, Tsub))
        lp = jnp.einsum('kmt,ktu->kmu', u_bf, phib,
                        preferred_element_type=f32)               # (nfilt, tile_m, Tsub)
        return jnp.mean(jnp.log(lp + 1e-6), axis=-1)              # (nfilt, tile_m)

    # first-order coefficients
    out_ref[0:K1, :] = lowpass_log_mean(u1b, K1)

    # ---- second order: one batched matmul per octave j2 (admissible k1's are
    #      the prefix [0, nk[j2]) of the first-order filters) ----
    col = K1
    for j2 in range(1, J):
        n = nk[j2]
        if n == 0:
            continue
        u_sel = u1b[:n]                                           # (n, tile_m, T)
        cre = jnp.broadcast_to(w2re_ref[j2 - 1][None, :, :], (n, T, T))
        cim = jnp.broadcast_to(w2im_ref[j2 - 1][None, :, :], (n, T, T))
        re2 = jnp.einsum('kmt,ktu->kmu', u_sel, cre, preferred_element_type=f32)
        im2 = jnp.einsum('kmt,ktu->kmu', u_sel, cim, preferred_element_type=f32)
        u2b = jnp.sqrt(re2 * re2 + im2 * im2).astype(bf16)
        out_ref[col:col + n, :] = lowpass_log_mean(u2b, n)
        col += n


# ----------------------------------------------------------------------------
# Wrapper
# ----------------------------------------------------------------------------
def scatternet1d(x, Q=8):
    """x: (B, T, C) -> (B, n_coeffs, C) float32."""
    B, T, C = x.shape
    prm = build_scattering_params(T, Q)
    J, K1, P, Tsub = prm["J"], prm["K1"], prm["P"], prm["Tsub"]
    nk = tuple(prm["nk"])
    K = K1 + P

    # Fold channels into the matmul M dimension: rows = C*B.
    rows = C * B
    tile_m = 128 if rows >= 128 else ((rows + 7) // 8) * 8
    rows_pad = ((rows + tile_m - 1) // tile_m) * tile_m
    grid_m = rows_pad // tile_m

    x_rows = jnp.transpose(x, (2, 0, 1)).reshape(rows, T).astype(jnp.float32)
    if rows_pad > rows:
        x_rows = jnp.pad(x_rows, ((0, rows_pad - rows), (0, 0)))

    # bf16 filters (activations cast in-kernel; accumulation stays f32).
    w1re = jnp.asarray(prm["W1re"], dtype=jnp.bfloat16)           # (K1, T, T)
    w1im = jnp.asarray(prm["W1im"], dtype=jnp.bfloat16)
    w2re = jnp.asarray(prm["W2re"], dtype=jnp.bfloat16)           # (max(J-1,1), T, T)
    w2im = jnp.asarray(prm["W2im"], dtype=jnp.bfloat16)
    phi = jnp.asarray(prm["phi_sub"], dtype=jnp.bfloat16)         # (T, Tsub)

    kernel = functools.partial(scatter_kernel, J=J, K1=K1, nk=nk,
                               T=T, Tsub=Tsub, tile_m=tile_m)

    const3d = lambda a: pl.BlockSpec(a.shape, lambda i: (0, 0, 0))

    flops = int(4 * rows_pad * T * T * (K1 + P)
                + 2 * rows_pad * T * Tsub * (K1 + P))
    transcendentals = int(rows_pad * (K1 + P) * (T + Tsub))       # sqrt + log
    bytes_accessed = int(x_rows.size * 4
                         + 2 * (w1re.size + w1im.size + w2re.size + w2im.size
                                + phi.size)
                         + K * rows_pad * 4)

    out = pl.pallas_call(
        kernel,
        out_shape=jax.ShapeDtypeStruct((K, rows_pad), jnp.float32),
        grid_spec=pltpu.PrefetchScalarGridSpec(
            num_scalar_prefetch=0,
            grid=(grid_m,),
            in_specs=[
                pl.BlockSpec((tile_m, T), lambda i: (i, 0)),
                const3d(w1re), const3d(w1im),
                const3d(w2re), const3d(w2im),
                pl.BlockSpec(phi.shape, lambda i: (0, 0)),
            ],
            out_specs=pl.BlockSpec((K, tile_m), lambda i: (0, i)),
        ),
        compiler_params=pltpu.CompilerParams(
            dimension_semantics=("parallel",),
            vmem_limit_bytes=32 * 1024 * 1024),
        cost_estimate=pl.CostEstimate(flops=flops,
                                      transcendentals=transcendentals,
                                      bytes_accessed=bytes_accessed),
    )(x_rows, w1re, w1im, w2re, w2im, phi)

    out = out[:, :rows]                                           # (K, C*B)
    out = out.reshape(K, C, B)
    out = jnp.transpose(out, (2, 0, 1))                           # (B, K, C)
    # restore the previous (k1-major) second-order coefficient ordering
    out = jnp.take(out, jnp.asarray(prm["perm"]), axis=1)
    return out


if __name__ == "__main__":
    key = jax.random.PRNGKey(0)
    B, T, C = 2, 16, 4
    x = jax.random.normal(key, (B, T, C), dtype=jnp.float32)

    out = scatternet1d(x, Q=8)
    out = jax.block_until_ready(out)

    assert out.ndim == 3 and out.shape[0] == B and out.shape[2] == C
    assert out.dtype == jnp.float32
    assert bool(jnp.all(jnp.isfinite(out)))
    print("KERNEL_OK")
</pallas_src>

<mosaic_0001>
module attributes {stable_mosaic.version = 11 : i64} {
  func.func @scatter_kernel(%arg0: i32, %arg1: memref<8x16xf32, #tpu.memory_space<vmem>>, %arg2: memref<24x16x16xbf16, #tpu.memory_space<vmem>>, %arg3: memref<24x16x16xbf16, #tpu.memory_space<vmem>>, %arg4: memref<2x16x16xbf16, #tpu.memory_space<vmem>>, %arg5: memref<2x16x16xbf16, #tpu.memory_space<vmem>>, %arg6: memref<16x2xbf16, #tpu.memory_space<vmem>>, %arg7: memref<48x8xf32, #tpu.memory_space<vmem>>) attributes {dimension_semantics = [#tpu.dimension_semantics<parallel>], iteration_bounds = array<i64: 1>, scalar_prefetch = 0 : i64, scratch_operands = 0 : i64, tpu.core_type = #tpu.core_type<tc>, window_params = [{transform_indices = @transform_0, window_bounds = array<i64: 8, 16>}, {pipeline_mode = #tpu.pipeline_mode<synchronous>, transform_indices = @transform_1, window_bounds = array<i64: 24, 16, 16>}, {pipeline_mode = #tpu.pipeline_mode<synchronous>, transform_indices = @transform_2, window_bounds = array<i64: 24, 16, 16>}, {pipeline_mode = #tpu.pipeline_mode<synchronous>, transform_indices = @transform_3, window_bounds = array<i64: 2, 16, 16>}, {pipeline_mode = #tpu.pipeline_mode<synchronous>, transform_indices = @transform_4, window_bounds = array<i64: 2, 16, 16>}, {pipeline_mode = #tpu.pipeline_mode<synchronous>, transform_indices = @transform_5, window_bounds = array<i64: 16, 2>}, {transform_indices = @transform_6, window_bounds = array<i64: 48, 8>}]} {
    %c0 = arith.constant 0 : index
    %c0_0 = arith.constant 0 : index
    %0 = vector.load %arg1[%c0, %c0_0] : memref<8x16xf32, #tpu.memory_space<vmem>>, vector<8x16xf32>
    %1 = arith.truncf %0 : vector<8x16xf32> to vector<8x16xbf16>
    %2 = vector.shape_cast %1 : vector<8x16xbf16> to vector<1x8x16xbf16>
    %3 = vector.shape_cast %2 : vector<1x8x16xbf16> to vector<1x8x16xbf16>
    %4 = vector.broadcast %3 : vector<1x8x16xbf16> to vector<24x8x16xbf16>
    %c0_1 = arith.constant 0 : index
    %c0_2 = arith.constant 0 : index
    %c0_3 = arith.constant 0 : index
    %5 = vector.load %arg2[%c0_1, %c0_2, %c0_3] : memref<24x16x16xbf16, #tpu.memory_space<vmem>>, vector<24x16x16xbf16>
    "tpu.trace_start"() <{level = 10 : i32, message = "kmt,ktu->kmu"}> : () -> ()
    %cst = arith.constant dense<0.000000e+00> : vector<24x8x16xf32>
    %6 = tpu.matmul %4, %5, %cst {dimension_numbers = #tpu.dot_dimension_numbers<[2], [1], [1], [2], [0, 0, 0, 1, 1, 2], [0], [0]>} : vector<24x8x16xbf16>, vector<24x16x16xbf16>, vector<24x8x16xf32> -> vector<24x8x16xf32>
    "tpu.trace_stop"() : () -> ()
    %c0_4 = arith.constant 0 : index
    %c0_5 = arith.constant 0 : index
    %c0_6 = arith.constant 0 : index
    %7 = vector.load %arg3[%c0_4, %c0_5, %c0_6] : memref<24x16x16xbf16, #tpu.memory_space<vmem>>, vector<24x16x16xbf16>
    "tpu.trace_start"() <{level = 10 : i32, message = "kmt,ktu->kmu"}> : () -> ()
    %cst_7 = arith.constant dense<0.000000e+00> : vector<24x8x16xf32>
    %8 = tpu.matmul %4, %7, %cst_7 {dimension_numbers = #tpu.dot_dimension_numbers<[2], [1], [1], [2], [0, 0, 0, 1, 1, 2], [0], [0]>} : vector<24x8x16xbf16>, vector<24x16x16xbf16>, vector<24x8x16xf32> -> vector<24x8x16xf32>
    "tpu.trace_stop"() : () -> ()
    %9 = arith.mulf %6, %6 : vector<24x8x16xf32>
    %10 = arith.mulf %8, %8 : vector<24x8x16xf32>
    %11 = arith.addf %9, %10 : vector<24x8x16xf32>
    %12 = math.sqrt %11 : vector<24x8x16xf32>
    %13 = arith.truncf %12 : vector<24x8x16xf32> to vector<24x8x16xbf16>
    %c0_8 = arith.constant 0 : index
    %c0_9 = arith.constant 0 : index
    %14 = vector.load %arg6[%c0_8, %c0_9] : memref<16x2xbf16, #tpu.memory_space<vmem>>, vector<16x2xbf16>
    %15 = vector.shape_cast %14 : vector<16x2xbf16> to vector<1x16x2xbf16>
    %16 = vector.shape_cast %15 : vector<1x16x2xbf16> to vector<1x16x2xbf16>
    %17 = vector.broadcast %16 : vector<1x16x2xbf16> to vector<24x16x2xbf16>
    "tpu.trace_start"() <{level = 10 : i32, message = "kmt,ktu->kmu"}> : () -> ()
    %cst_10 = arith.constant dense<0.000000e+00> : vector<24x8x2xf32>
    %18 = tpu.matmul %13, %17, %cst_10 {dimension_numbers = #tpu.dot_dimension_numbers<[2], [1], [1], [2], [0, 0, 0, 1, 1, 2], [0], [0]>} : vector<24x8x16xbf16>, vector<24x16x2xbf16>, vector<24x8x2xf32> -> vector<24x8x2xf32>
    "tpu.trace_stop"() : () -> ()
    %cst_11 = arith.constant 9.99999997E-7 : f32
    %19 = vector.broadcast %cst_11 : f32 to vector<24x8x2xf32>
    %20 = arith.addf %18, %19 : vector<24x8x2xf32>
    %21 = math.log %20 : vector<24x8x2xf32>
    %cst_12 = arith.constant dense<0.000000e+00> : vector<24x8xf32>
    %22 = vector.multi_reduction <add>, %21, %cst_12 [2] : vector<24x8x2xf32> to vector<24x8xf32>
    %cst_13 = arith.constant 2.000000e+00 : f32
    %23 = vector.broadcast %cst_13 : f32 to vector<24x8xf32>
    %24 = arith.divf %22, %23 : vector<24x8xf32>
    %c0_14 = arith.constant 0 : index
    %c0_15 = arith.constant 0 : index
    %25 = vector.load %arg7[%c0_14, %c0_15] : memref<48x8xf32, #tpu.memory_space<vmem>>, vector<24x8xf32>
    tpu.vector_store %arg7[%c0_14, %c0_15], %24 {strides = array<i32>} : memref<48x8xf32, #tpu.memory_space<vmem>>, vector<24x8xf32>,
    %26 = vector.extract_strided_slice %13 {offsets = [0, 0, 0], sizes = [8, 8, 16], strides = [1, 1, 1]} : vector<24x8x16xbf16> to vector<8x8x16xbf16>
    %c0_16 = arith.constant 0 : index
    %c0_17 = arith.constant 0 : index
    %c0_18 = arith.constant 0 : index
    %27 = vector.load %arg4[%c0_16, %c0_17, %c0_18] : memref<2x16x16xbf16, #tpu.memory_space<vmem>>, vector<1x16x16xbf16>
    %28 = vector.shape_cast %27 : vector<1x16x16xbf16> to vector<16x16xbf16>
    %29 = vector.shape_cast %28 : vector<16x16xbf16> to vector<1x16x16xbf16>
    %30 = vector.shape_cast %29 : vector<1x16x16xbf16> to vector<1x16x16xbf16>
    %31 = vector.broadcast %30 : vector<1x16x16xbf16> to vector<8x16x16xbf16>
    %c0_19 = arith.constant 0 : index
    %c0_20 = arith.constant 0 : index
    %c0_21 = arith.constant 0 : index
    %32 = vector.load %arg5[%c0_19, %c0_20, %c0_21] : memref<2x16x16xbf16, #tpu.memory_space<vmem>>, vector<1x16x16xbf16>
    %33 = vector.shape_cast %32 : vector<1x16x16xbf16> to vector<16x16xbf16>
    %34 = vector.shape_cast %33 : vector<16x16xbf16> to vector<1x16x16xbf16>
    %35 = vector.shape_cast %34 : vector<1x16x16xbf16> to vector<1x16x16xbf16>
    %36 = vector.broadcast %35 : vector<1x16x16xbf16> to vector<8x16x16xbf16>
    "tpu.trace_start"() <{level = 10 : i32, message = "kmt,ktu->kmu"}> : () -> ()
    %cst_22 = arith.constant dense<0.000000e+00> : vector<8x8x16xf32>
    %37 = tpu.matmul %26, %31, %cst_22 {dimension_numbers = #tpu.dot_dimension_numbers<[2], [1], [1], [2], [0, 0, 0, 1, 1, 2], [0], [0]>} : vector<8x8x16xbf16>, vector<8x16x16xbf16>, vector<8x8x16xf32> -> vector<8x8x16xf32>
    %cst_23 = arith.constant dense<0.000000e+00> : vector<8x8x16xf32>
    %38 = tpu.matmul %26, %36, %cst_23 {dimension_numbers = #tpu.dot_dimension_numbers<[2], [1], [1], [2], [0, 0, 0, 1, 1, 2], [0], [0]>} : vector<8x8x16xbf16>, vector<8x16x16xbf16>, vector<8x8x16xf32> -> vector<8x8x16xf32>
    "tpu.trace_stop"() : () -> ()
    %39 = arith.mulf %37, %37 : vector<8x8x16xf32>
    %40 = arith.mulf %38, %38 : vector<8x8x16xf32>
    %41 = arith.addf %39, %40 : vector<8x8x16xf32>
    %42 = math.sqrt %41 : vector<8x8x16xf32>
    %43 = arith.truncf %42 : vector<8x8x16xf32> to vector<8x8x16xbf16>
    %44 = vector.shape_cast %14 : vector<16x2xbf16> to vector<1x16x2xbf16>
    %45 = vector.shape_cast %44 : vector<1x16x2xbf16> to vector<1x16x2xbf16>
    %46 = vector.broadcast %45 : vector<1x16x2xbf16> to vector<8x16x2xbf16>
    "tpu.trace_start"() <{level = 10 : i32, message = "kmt,ktu->kmu"}> : () -> ()
    %cst_24 = arith.constant dense<0.000000e+00> : vector<8x8x2xf32>
    %47 = tpu.matmul %43, %46, %cst_24 {dimension_numbers = #tpu.dot_dimension_numbers<[2], [1], [1], [2], [0, 0, 0, 1, 1, 2], [0], [0]>} : vector<8x8x16xbf16>, vector<8x16x2xbf16>, vector<8x8x2xf32> -> vector<8x8x2xf32>
    "tpu.trace_stop"() : () -> ()
    %cst_25 = arith.constant 9.99999997E-7 : f32
    %48 = vector.broadcast %cst_25 : f32 to vector<8x8x2xf32>
    %49 = arith.addf %47, %48 : vector<8x8x2xf32>
    %50 = math.log %49 : vector<8x8x2xf32>
    %cst_26 = arith.constant dense<0.000000e+00> : vector<8x8xf32>
    %51 = vector.multi_reduction <add>, %50, %cst_26 [2] : vector<8x8x2xf32> to vector<8x8xf32>
    %cst_27 = arith.constant 2.000000e+00 : f32
    %52 = vector.broadcast %cst_27 : f32 to vector<8x8xf32>
    %53 = arith.divf %51, %52 : vector<8x8xf32>
    %c24 = arith.constant 24 : index
    %c0_28 = arith.constant 0 : index
    %54 = vector.load %arg7[%c24, %c0_28] : memref<48x8xf32, #tpu.memory_space<vmem>>, vector<8x8xf32>
    tpu.vector_store %arg7[%c24, %c0_28], %53 {strides = array<i32>} : memref<48x8xf32, #tpu.memory_space<vmem>>, vector<8x8xf32>,
    %55 = vector.extract_strided_slice %13 {offsets = [0, 0, 0], sizes = [16, 8, 16], strides = [1, 1, 1]} : vector<24x8x16xbf16> to vector<16x8x16xbf16>
    %c1 = arith.constant 1 : index
    %c0_29 = arith.constant 0 : index
    %c0_30 = arith.constant 0 : index
    %56 = vector.load %arg4[%c1, %c0_29, %c0_30] : memref<2x16x16xbf16, #tpu.memory_space<vmem>>, vector<1x16x16xbf16>
    %57 = vector.shape_cast %56 : vector<1x16x16xbf16> to vector<16x16xbf16>
    %58 = vector.shape_cast %57 : vector<16x16xbf16> to vector<1x16x16xbf16>
    %59 = vector.shape_cast %58 : vector<1x16x16xbf16> to vector<1x16x16xbf16>
    %60 = vector.broadcast %59 : vector<1x16x16xbf16> to vector<16x16x16xbf16>
    %c1_31 = arith.constant 1 : index
    %c0_32 = arith.constant 0 : index
    %c0_33 = arith.constant 0 : index
    %61 = vector.load %arg5[%c1_31, %c0_32, %c0_33] : memref<2x16x16xbf16, #tpu.memory_space<vmem>>, vector<1x16x16xbf16>
    %62 = vector.shape_cast %61 : vector<1x16x16xbf16> to vector<16x16xbf16>
    %63 = vector.shape_cast %62 : vector<16x16xbf16> to vector<1x16x16xbf16>
    %64 = vector.shape_cast %63 : vector<1x16x16xbf16> to vector<1x16x16xbf16>
    %65 = vector.broadcast %64 : vector<1x16x16xbf16> to vector<16x16x16xbf16>
    "tpu.trace_start"() <{level = 10 : i32, message = "kmt,ktu->kmu"}> : () -> ()
    %cst_34 = arith.constant dense<0.000000e+00> : vector<16x8x16xf32>
    %66 = tpu.matmul %55, %60, %cst_34 {dimension_numbers = #tpu.dot_dimension_numbers<[2], [1], [1], [2], [0, 0, 0, 1, 1, 2], [0], [0]>} : vector<16x8x16xbf16>, vector<16x16x16xbf16>, vector<16x8x16xf32> -> vector<16x8x16xf32>
    %cst_35 = arith.constant dense<0.000000e+00> : vector<16x8x16xf32>
    %67 = tpu.matmul %55, %65, %cst_35 {dimension_numbers = #tpu.dot_dimension_numbers<[2], [1], [1], [2], [0, 0, 0, 1, 1, 2], [0], [0]>} : vector<16x8x16xbf16>, vector<16x16x16xbf16>, vector<16x8x16xf32> -> vector<16x8x16xf32>
    "tpu.trace_stop"() : () -> ()
    %68 = arith.mulf %66, %66 : vector<16x8x16xf32>
    %69 = arith.mulf %67, %67 : vector<16x8x16xf32>
    %70 = arith.addf %68, %69 : vector<16x8x16xf32>
    %71 = math.sqrt %70 : vector<16x8x16xf32>
    %72 = arith.truncf %71 : vector<16x8x16xf32> to vector<16x8x16xbf16>
    %73 = vector.shape_cast %14 : vector<16x2xbf16> to vector<1x16x2xbf16>
    %74 = vector.shape_cast %73 : vector<1x16x2xbf16> to vector<1x16x2xbf16>
    %75 = vector.broadcast %74 : vector<1x16x2xbf16> to vector<16x16x2xbf16>
    "tpu.trace_start"() <{level = 10 : i32, message = "kmt,ktu->kmu"}> : () -> ()
    %cst_36 = arith.constant dense<0.000000e+00> : vector<16x8x2xf32>
    %76 = tpu.matmul %72, %75, %cst_36 {dimension_numbers = #tpu.dot_dimension_numbers<[2], [1], [1], [2], [0, 0, 0, 1, 1, 2], [0], [0]>} : vector<16x8x16xbf16>, vector<16x16x2xbf16>, vector<16x8x2xf32> -> vector<16x8x2xf32>
    "tpu.trace_stop"() : () -> ()
    %cst_37 = arith.constant 9.99999997E-7 : f32
    %77 = vector.broadcast %cst_37 : f32 to vector<16x8x2xf32>
    %78 = arith.addf %76, %77 : vector<16x8x2xf32>
    %79 = math.log %78 : vector<16x8x2xf32>
    %cst_38 = arith.constant dense<0.000000e+00> : vector<16x8xf32>
    %80 = vector.multi_reduction <add>, %79, %cst_38 [2] : vector<16x8x2xf32> to vector<16x8xf32>
    %cst_39 = arith.constant 2.000000e+00 : f32
    %81 = vector.broadcast %cst_39 : f32 to vector<16x8xf32>
    %82 = arith.divf %80, %81 : vector<16x8xf32>
    %c32 = arith.constant 32 : index
    %c0_40 = arith.constant 0 : index
    %83 = vector.load %arg7[%c32, %c0_40] : memref<48x8xf32, #tpu.memory_space<vmem>>, vector<16x8xf32>
    tpu.vector_store %arg7[%c32, %c0_40], %82 {strides = array<i32>} : memref<48x8xf32, #tpu.memory_space<vmem>>, vector<16x8xf32>,
    return
  }
  func.func @transform_0(%arg0: i32) -> (i32, i32) {
    %c0_i32 = arith.constant 0 : i32
    %c0_i32_0 = arith.constant 0 : i32
    return %arg0, %c0_i32 : i32, i32
  }
  func.func @transform_1(%arg0: i32) -> (i32, i32, i32) {
    %c0_i32 = arith.constant 0 : i32
    %c0_i32_0 = arith.constant 0 : i32
    %c0_i32_1 = arith.constant 0 : i32
    %c0_i32_2 = arith.constant 0 : i32
    return %c0_i32, %c0_i32_0, %c0_i32_1 : i32, i32, i32
  }
  func.func @transform_2(%arg0: i32) -> (i32, i32, i32) {
    %c0_i32 = arith.constant 0 : i32
    %c0_i32_0 = arith.constant 0 : i32
    %c0_i32_1 = arith.constant 0 : i32
    %c0_i32_2 = arith.constant 0 : i32
    return %c0_i32, %c0_i32_0, %c0_i32_1 : i32, i32, i32
  }
  func.func @transform_3(%arg0: i32) -> (i32, i32, i32) {
    %c0_i32 = arith.constant 0 : i32
    %c0_i32_0 = arith.constant 0 : i32
    %c0_i32_1 = arith.constant 0 : i32
    %c0_i32_2 = arith.constant 0 : i32
    return %c0_i32, %c0_i32_0, %c0_i32_1 : i32, i32, i32
  }
  func.func @transform_4(%arg0: i32) -> (i32, i32, i32) {
    %c0_i32 = arith.constant 0 : i32
    %c0_i32_0 = arith.constant 0 : i32
    %c0_i32_1 = arith.constant 0 : i32
    %c0_i32_2 = arith.constant 0 : i32
    return %c0_i32, %c0_i32_0, %c0_i32_1 : i32, i32, i32
  }
  func.func @transform_5(%arg0: i32) -> (i32, i32) {
    %c0_i32 = arith.constant 0 : i32
    %c0_i32_0 = arith.constant 0 : i32
    %c0_i32_1 = arith.constant 0 : i32
    return %c0_i32, %c0_i32_0 : i32, i32
  }
  func.func @transform_6(%arg0: i32) -> (i32, i32) {
    %c0_i32 = arith.constant 0 : i32
    %c0_i32_0 = arith.constant 0 : i32
    return %c0_i32, %arg0 : i32, i32
  }
}

</mosaic_0001>

<llo_original>
// kernel: tpu_custom_call.1
$region0: #{tpu_custom_call.1}
  #allocation0 [shape = 'u32[]', space=smem, size = 0x4, offset = 0x4, fixed_abs, tag = 'smem constant byte address 0x4 - core index']
  #allocation1 [shape = 'u32[72,128]{1,0:T(1,128)}', space=vmem, size = 0x9000, scoped, tag = 'internal scratch']
  %s0 = inlined_call_operand.vmem [shape: f32[8,16], index: 0, kind: input, shape index: {}]
  %s1 = inlined_call_operand.vmem [shape: bf16[24,16,16], index: 1, kind: input, shape index: {}]
  %s2 = inlined_call_operand.vmem [shape: bf16[24,16,16], index: 2, kind: input, shape index: {}]
  %s3 = inlined_call_operand.vmem [shape: bf16[2,16,16], index: 3, kind: input, shape index: {}]
  %s4 = inlined_call_operand.vmem [shape: bf16[2,16,16], index: 4, kind: input, shape index: {}]
  %s5 = inlined_call_operand.vmem [shape: bf16[16,2], index: 5, kind: input, shape index: {}]
  %s6 = inlined_call_operand.vmem [shape: f32[48,8], index: 6, kind: output, shape index: {}]
  %s7 = sld [smem:[#allocation0]]
  $region34: #{tpu_custom_call.1} parent=0
    _
  %s9 = ssub.s32 1, %s7
  %s10 = scalar_select 0, %s9, %s7
  // Predicated region
  $region2: #{tpu_custom_call.1} parent=0 // pred_check
    _
  $region3: #{tpu_custom_call.1} parent=0 // pred_check_branch
    %12 = sbr.rel (0) target = $region5
  $region4: #{tpu_custom_call.1} parent=0 // pred_region
    _
  $region5: #{tpu_custom_call.1} parent=0 // pred_fallthru
    _
  // Predicated region
  $region6: #{tpu_custom_call.1} parent=0 // pred_check
    _
  $region7: #{tpu_custom_call.1} parent=0 // pred_check_branch
    %14 = sbr.rel (0) target = $region9
  $region8: #{tpu_custom_call.1} parent=0 // pred_region
    _
  $region9: #{tpu_custom_call.1} parent=0 // pred_fallthru
    _
  // Predicated region
  $region10: #{tpu_custom_call.1} parent=0 // pred_check
    _
  $region11: #{tpu_custom_call.1} parent=0 // pred_check_branch
    %16 = sbr.rel (0) target = $region13
  $region12: #{tpu_custom_call.1} parent=0 // pred_region
    _
  $region13: #{tpu_custom_call.1} parent=0 // pred_fallthru
    _
  // Predicated region
  $region14: #{tpu_custom_call.1} parent=0 // pred_check
    _
  $region15: #{tpu_custom_call.1} parent=0 // pred_check_branch
    %18 = sbr.rel (0) target = $region17
  $region16: #{tpu_custom_call.1} parent=0 // pred_region
    _
  $region17: #{tpu_custom_call.1} parent=0 // pred_fallthru
    _
  // Predicated region
  $region18: #{tpu_custom_call.1} parent=0 // pred_check
    _
  $region19: #{tpu_custom_call.1} parent=0 // pred_check_branch
    %20 = sbr.rel (0) target = $region21
  $region20: #{tpu_custom_call.1} parent=0 // pred_region
    _
  $region21: #{tpu_custom_call.1} parent=0 // pred_fallthru
    _
  // Predicated region
  $region22: #{tpu_custom_call.1} parent=0 // pred_check
    _
  $region23: #{tpu_custom_call.1} parent=0 // pred_check_branch
    %22 = sbr.rel (0) target = $region25
  $region24: #{tpu_custom_call.1} parent=0 // pred_region
    _
  $region25: #{tpu_custom_call.1} parent=0 // pred_fallthru
    _
  %v24 = vld [vmem:[%s0] sm:$0xff]
  %v25 = vpack.c.bf16 %v24, %v24
  %v26 = vld [vmem:[%s1] sm:$0xf]
  %v27 = vld [vmem:[%s1 + $0x4] sm:$0xf]
  %v28 = vld [vmem:[%s1 + $0x8] sm:$0xf]
  %v29 = vld [vmem:[%s1 + $0xc] sm:$0xf]
  %v30 = vld [vmem:[%s1 + $0x10] sm:$0xf]
  %v31 = vld [vmem:[%s1 + $0x14] sm:$0xf]
  %v32 = vld [vmem:[%s1 + $0x18] sm:$0xf]
  %v33 = vld [vmem:[%s1 + $0x1c] sm:$0xf]
  %v34 = vld [vmem:[%s1 + $0x20] sm:$0xf]
  %v35 = vld [vmem:[%s1 + $0x24] sm:$0xf]
  %v36 = vld [vmem:[%s1 + $0x28] sm:$0xf]
  %v37 = vld [vmem:[%s1 + $0x2c] sm:$0xf]
  %v38 = vld [vmem:[%s1 + $0x30] sm:$0xf]
  %v39 = vld [vmem:[%s1 + $0x34] sm:$0xf]
  %v40 = vld [vmem:[%s1 + $0x38] sm:$0xf]
  %v41 = vld [vmem:[%s1 + $0x3c] sm:$0xf]
  %v42 = vld [vmem:[%s1 + $0x40] sm:$0xf]
  %v43 = vld [vmem:[%s1 + $0x44] sm:$0xf]
  %v44 = vld [vmem:[%s1 + $0x48] sm:$0xf]
  %v45 = vld [vmem:[%s1 + $0x4c] sm:$0xf]
  %v46 = vld [vmem:[%s1 + $0x50] sm:$0xf]
  %v47 = vld [vmem:[%s1 + $0x54] sm:$0xf]
  %v48 = vld [vmem:[%s1 + $0x58] sm:$0xf]
  %v49 = vld [vmem:[%s1 + $0x5c] sm:$0xf]
  %v50 = vld [vmem:[%s1 + $0x60] sm:$0xf]
  %v51 = vld [vmem:[%s1 + $0x64] sm:$0xf]
  %v52 = vld [vmem:[%s1 + $0x68] sm:$0xf]
  %v53 = vld [vmem:[%s1 + $0x6c] sm:$0xf]
  %v54 = vld [vmem:[%s1 + $0x70] sm:$0xf]
  %v55 = vld [vmem:[%s1 + $0x74] sm:$0xf]
  %v56 = vld [vmem:[%s1 + $0x78] sm:$0xf]
  %v57 = vld [vmem:[%s1 + $0x7c] sm:$0xf]
  %v58 = vld [vmem:[%s1 + $0x80] sm:$0xf]
  %v59 = vld [vmem:[%s1 + $0x84] sm:$0xf]
  %v60 = vld [vmem:[%s1 + $0x88] sm:$0xf]
  %v61 = vld [vmem:[%s1 + $0x8c] sm:$0xf]
  %v62 = vld [vmem:[%s1 + $0x90] sm:$0xf]
  %v63 = vld [vmem:[%s1 + $0x94] sm:$0xf]
  %v64 = vld [vmem:[%s1 + $0x98] sm:$0xf]
  %v65 = vld [vmem:[%s1 + $0x9c] sm:$0xf]
  %v66 = vld [vmem:[%s1 + $0xa0] sm:$0xf]
  %v67 = vld [vmem:[%s1 + $0xa4] sm:$0xf]
  %v68 = vld [vmem:[%s1 + $0xa8] sm:$0xf]
  %v69 = vld [vmem:[%s1 + $0xac] sm:$0xf]
  %v70 = vld [vmem:[%s1 + $0xb0] sm:$0xf]
  %v71 = vld [vmem:[%s1 + $0xb4] sm:$0xf]
  %v72 = vld [vmem:[%s1 + $0xb8] sm:$0xf]
  %v73 = vld [vmem:[%s1 + $0xbc] sm:$0xf]
  %v76 = vunpack.c.l.b16 %v26
  %v77 = vunpack.c.l.b16 %v27
  %v78 = vpack.c.b16 %v77, %v76
  %vm80 = vcmask 130048
  %v82 = vsel %vm80, %v25, 0
  %84 = vmatpush.bf16.msra.mxu0 0
  %85 = vmatpush.bf16.msra.mxu0 0
  %86 = vmatpush.bf16.msra.mxu0 0
  %87 = vmatpush.bf16.msra.mxu0 0
  %88 = vmatpush.bf16.msra.mxu0 0
  %89 = vmatpush.bf16.msra.mxu0 0
  %90 = vmatpush.bf16.msra.mxu0 0
  %91 = vmatpush.bf16.msra.mxu0 %v78
  %92 = vmatmul.bf16.gmra.mxu0 %v82
  %v93 = vpop.f32.mrf.mxu0
  %v94 = vadd.f32 0.0, %v93
  %v95 = vpop.f32.mrf.mxu0
  %96 = vdwg.mxu0
  %v99 = vunpack.c.l.b16 %v28
  %v100 = vunpack.c.l.b16 %v29
  %v101 = vpack.c.b16 %v100, %v99
  %103 = vmatpush.bf16.msra.mxu0 0
  %104 = vmatpush.bf16.msra.mxu0 0
  %105 = vmatpush.bf16.msra.mxu0 0
  %106 = vmatpush.bf16.msra.mxu0 0
  %107 = vmatpush.bf16.msra.mxu0 0
  %108 = vmatpush.bf16.msra.mxu0 0
  %109 = vmatpush.bf16.msra.mxu0 0
  %110 = vmatpush.bf16.msra.mxu0 %v101
  %111 = vmatmul.bf16.gmra.mxu0 %v82
  %v112 = vpop.f32.mrf.mxu0
  %v113 = vadd.f32 0.0, %v112
  %v114 = vpop.f32.mrf.mxu0
  %115 = vdwg.mxu0
  %v118 = vunpack.c.l.b16 %v30
  %v119 = vunpack.c.l.b16 %v31
  %v120 = vpack.c.b16 %v119, %v118
  %122 = vmatpush.bf16.msra.mxu0 0
  %123 = vmatpush.bf16.msra.mxu0 0
  %124 = vmatpush.bf16.msra.mxu0 0
  %125 = vmatpush.bf16.msra.mxu0 0
  %126 = vmatpush.bf16.msra.mxu0 0
  %127 = vmatpush.bf16.msra.mxu0 0
  %128 = vmatpush.bf16.msra.mxu0 0
  %129 = vmatpush.bf16.msra.mxu0 %v120
  %130 = vmatmul.bf16.gmra.mxu0 %v82
  %v131 = vpop.f32.mrf.mxu0
  %v132 = vadd.f32 0.0, %v131
  %v133 = vpop.f32.mrf.mxu0
  %134 = vdwg.mxu0
  %v137 = vunpack.c.l.b16 %v32
  %v138 = vunpack.c.l.b16 %v33
  %v139 = vpack.c.b16 %v138, %v137
  %141 = vmatpush.bf16.msra.mxu0 0
  %142 = vmatpush.bf16.msra.mxu0 0
  %143 = vmatpush.bf16.msra.mxu0 0
  %144 = vmatpush.bf16.msra.mxu0 0
  %145 = vmatpush.bf16.msra.mxu0 0
  %146 = vmatpush.bf16.msra.mxu0 0
  %147 = vmatpush.bf16.msra.mxu0 0
  %148 = vmatpush.bf16.msra.mxu0 %v139
  %149 = vmatmul.bf16.gmra.mxu0 %v82
  %v150 = vpop.f32.mrf.mxu0
  %v151 = vadd.f32 0.0, %v150
  %v152 = vpop.f32.mrf.mxu0
  %153 = vdwg.mxu0
  %v156 = vunpack.c.l.b16 %v34
  %v157 = vunpack.c.l.b16 %v35
  %v158 = vpack.c.b16 %v157, %v156
  %160 = vmatpush.bf16.msra.mxu0 0
  %161 = vmatpush.bf16.msra.mxu0 0
  %162 = vmatpush.bf16.msra.mxu0 0
  %163 = vmatpush.bf16.msra.mxu0 0
  %164 = vmatpush.bf16.msra.mxu0 0
  %165 = vmatpush.bf16.msra.mxu0 0
  %166 = vmatpush.bf16.msra.mxu0 0
  %167 = vmatpush.bf16.msra.mxu0 %v158
  %168 = vmatmul.bf16.gmra.mxu0 %v82
  %v169 = vpop.f32.mrf.mxu0
  %v170 = vadd.f32 0.0, %v169
  %v171 = vpop.f32.mrf.mxu0
  %172 = vdwg.mxu0
  %v175 = vunpack.c.l.b16 %v36
  %v176 = vunpack.c.l.b16 %v37
  %v177 = vpack.c.b16 %v176, %v175
  %179 = vmatpush.bf16.msra.mxu0 0
  %180 = vmatpush.bf16.msra.mxu0 0
  %181 = vmatpush.bf16.msra.mxu0 0
  %182 = vmatpush.bf16.msra.mxu0 0
  %183 = vmatpush.bf16.msra.mxu0 0
  %184 = vmatpush.bf16.msra.mxu0 0
  %185 = vmatpush.bf16.msra.mxu0 0
  %186 = vmatpush.bf16.msra.mxu0 %v177
  %187 = vmatmul.bf16.gmra.mxu0 %v82
  %v188 = vpop.f32.mrf.mxu0
  %v189 = vadd.f32 0.0, %v188
  %v190 = vpop.f32.mrf.mxu0
  %191 = vdwg.mxu0
  %v194 = vunpack.c.l.b16 %v38
  %v195 = vunpack.c.l.b16 %v39
  %v196 = vpack.c.b16 %v195, %v194
  %198 = vmatpush.bf16.msra.mxu0 0
  %199 = vmatpush.bf16.msra.mxu0 0
  %200 = vmatpush.bf16.msra.mxu0 0
  %201 = vmatpush.bf16.msra.mxu0 0
  %202 = vmatpush.bf16.msra.mxu0 0
  %203 = vmatpush.bf16.msra.mxu0 0
  %204 = vmatpush.bf16.msra.mxu0 0
  %205 = vmatpush.bf16.msra.mxu0 %v196
  %206 = vmatmul.bf16.gmra.mxu0 %v82
  %v207 = vpop.f32.mrf.mxu0
  %v208 = vadd.f32 0.0, %v207
  %v209 = vpop.f32.mrf.mxu0
  %210 = vdwg.mxu0
  %v213 = vunpack.c.l.b16 %v40
  %v214 = vunpack.c.l.b16 %v41
  %v215 = vpack.c.b16 %v214, %v213
  %217 = vmatpush.bf16.msra.mxu0 0
  %218 = vmatpush.bf16.msra.mxu0 0
  %219 = vmatpush.bf16.msra.mxu0 0
  %220 = vmatpush.bf16.msra.mxu0 0
  %221 = vmatpush.bf16.msra.mxu0 0
  %222 = vmatpush.bf16.msra.mxu0 0
  %223 = vmatpush.bf16.msra.mxu0 0
  %224 = vmatpush.bf16.msra.mxu0 %v215
  %225 = vmatmul.bf16.gmra.mxu0 %v82
  %v226 = vpop.f32.mrf.mxu0
  %v227 = vadd.f32 0.0, %v226
  %v228 = vpop.f32.mrf.mxu0
  %229 = vdwg.mxu0
  %v232 = vunpack.c.l.b16 %v42
  %v233 = vunpack.c.l.b16 %v43
  %v234 = vpack.c.b16 %v233, %v232
  %236 = vmatpush.bf16.msra.mxu0 0
  %237 = vmatpush.bf16.msra.mxu0 0
  %238 = vmatpush.bf16.msra.mxu0 0
  %239 = vmatpush.bf16.msra.mxu0 0
  %240 = vmatpush.bf16.msra.mxu0 0
  %241 = vmatpush.bf16.msra.mxu0 0
  %242 = vmatpush.bf16.msra.mxu0 0
  %243 = vmatpush.bf16.msra.mxu0 %v234
  %244 = vmatmul.bf16.gmra.mxu0 %v82
  %v245 = vpop.f32.mrf.mxu0
  %v246 = vadd.f32 0.0, %v245
  %v247 = vpop.f32.mrf.mxu0
  %248 = vdwg.mxu0
  %v251 = vunpack.c.l.b16 %v44
  %v252 = vunpack.c.l.b16 %v45
  %v253 = vpack.c.b16 %v252, %v251
  %255 = vmatpush.bf16.msra.mxu0 0
  %256 = vmatpush.bf16.msra.mxu0 0
  %257 = vmatpush.bf16.msra.mxu0 0
  %258 = vmatpush.bf16.msra.mxu0 0
  %259 = vmatpush.bf16.msra.mxu0 0
  %260 = vmatpush.bf16.msra.mxu0 0
  %261 = vmatpush.bf16.msra.mxu0 0
  %262 = vmatpush.bf16.msra.mxu0 %v253
  %263 = vmatmul.bf16.gmra.mxu0 %v82
  %v264 = vpop.f32.mrf.mxu0
  %v265 = vadd.f32 0.0, %v264
  %v266 = vpop.f32.mrf.mxu0
  %267 = vdwg.mxu0
  %v270 = vunpack.c.l.b16 %v46
  %v271 = vunpack.c.l.b16 %v47
  %v272 = vpack.c.b16 %v271, %v270
  %274 = vmatpush.bf16.msra.mxu0 0
  %275 = vmatpush.bf16.msra.mxu0 0
  %276 = vmatpush.bf16.msra.mxu0 0
  %277 = vmatpush.bf16.msra.mxu0 0
  %278 = vmatpush.bf16.msra.mxu0 0
  %279 = vmatpush.bf16.msra.mxu0 0
  %280 = vmatpush.bf16.msra.mxu0 0
  %281 = vmatpush.bf16.msra.mxu0 %v272
  %282 = vmatmul.bf16.gmra.mxu0 %v82
  %v283 = vpop.f32.mrf.mxu0
  %v284 = vadd.f32 0.0, %v283
  %v285 = vpop.f32.mrf.mxu0
  %286 = vdwg.mxu0
  %v289 = vunpack.c.l.b16 %v48
  %v290 = vunpack.c.l.b16 %v49
  %v291 = vpack.c.b16 %v290, %v289
  %293 = vmatpush.bf16.msra.mxu0 0
  %294 = vmatpush.bf16.msra.mxu0 0
  %295 = vmatpush.bf16.msra.mxu0 0
  %296 = vmatpush.bf16.msra.mxu0 0
  %297 = vmatpush.bf16.msra.mxu0 0
  %298 = vmatpush.bf16.msra.mxu0 0
  %299 = vmatpush.bf16.msra.mxu0 0
  %300 = vmatpush.bf16.msra.mxu0 %v291
  %301 = vmatmul.bf16.gmra.mxu0 %v82
  %v302 = vpop.f32.mrf.mxu0
  %v303 = vadd.f32 0.0, %v302
  %v304 = vpop.f32.mrf.mxu0
  %305 = vdwg.mxu0
  %v308 = vunpack.c.l.b16 %v50
  %v309 = vunpack.c.l.b16 %v51
  %v310 = vpack.c.b16 %v309, %v308
  %312 = vmatpush.bf16.msra.mxu0 0
  %313 = vmatpush.bf16.msra.mxu0 0
  %314 = vmatpush.bf16.msra.mxu0 0
  %315 = vmatpush.bf16.msra.mxu0 0
  %316 = vmatpush.bf16.msra.mxu0 0
  %317 = vmatpush.bf16.msra.mxu0 0
  %318 = vmatpush.bf16.msra.mxu0 0
  %319 = vmatpush.bf16.msra.mxu0 %v310
  %320 = vmatmul.bf16.gmra.mxu0 %v82
  %v321 = vpop.f32.mrf.mxu0
  %v322 = vadd.f32 0.0, %v321
  %v323 = vpop.f32.mrf.mxu0
  %324 = vdwg.mxu0
  %v327 = vunpack.c.l.b16 %v52
  %v328 = vunpack.c.l.b16 %v53
  %v329 = vpack.c.b16 %v328, %v327
  %331 = vmatpush.bf16.msra.mxu0 0
  %332 = vmatpush.bf16.msra.mxu0 0
  %333 = vmatpush.bf16.msra.mxu0 0
  %334 = vmatpush.bf16.msra.mxu0 0
  %335 = vmatpush.bf16.msra.mxu0 0
  %336 = vmatpush.bf16.msra.mxu0 0
  %337 = vmatpush.bf16.msra.mxu0 0
  %338 = vmatpush.bf16.msra.mxu0 %v329
  %339 = vmatmul.bf16.gmra.mxu0 %v82
  %v340 = vpop.f32.mrf.mxu0
  %v341 = vadd.f32 0.0, %v340
  %v342 = vpop.f32.mrf.mxu0
  %343 = vdwg.mxu0
  %v346 = vunpack.c.l.b16 %v54
  %v347 = vunpack.c.l.b16 %v55
  %v348 = vpack.c.b16 %v347, %v346
  %350 = vmatpush.bf16.msra.mxu0 0
  %351 = vmatpush.bf16.msra.mxu0 0
  %352 = vmatpush.bf16.msra.mxu0 0
  %353 = vmatpush.bf16.msra.mxu0 0
  %354 = vmatpush.bf16.msra.mxu0 0
  %355 = vmatpush.bf16.msra.mxu0 0
  %356 = vmatpush.bf16.msra.mxu0 0
  %357 = vmatpush.bf16.msra.mxu0 %v348
  %358 = vmatmul.bf16.gmra.mxu0 %v82
  %v359 = vpop.f32.mrf.mxu0
  %v360 = vadd.f32 0.0, %v359
  %v361 = vpop.f32.mrf.mxu0
  %362 = vdwg.mxu0
  %v365 = vunpack.c.l.b16 %v56
  %v366 = vunpack.c.l.b16 %v57
  %v367 = vpack.c.b16 %v366, %v365
  %369 = vmatpush.bf16.msra.mxu0 0
  %370 = vmatpush.bf16.msra.mxu0 0
  %371 = vmatpush.bf16.msra.mxu0 0
  %372 = vmatpush.bf16.msra.mxu0 0
  %373 = vmatpush.bf16.msra.mxu0 0
  %374 = vmatpush.bf16.msra.mxu0 0
  %375 = vmatpush.bf16.msra.mxu0 0
  %376 = vmatpush.bf16.msra.mxu0 %v367
  %377 = vmatmul.bf16.gmra.mxu0 %v82
  %v378 = vpop.f32.mrf.mxu0
  %v379 = vadd.f32 0.0, %v378
  %v380 = vpop.f32.mrf.mxu0
  %381 = vdwg.mxu0
  %v384 = vunpack.c.l.b16 %v58
  %v385 = vunpack.c.l.b16 %v59
  %v386 = vpack.c.b16 %v385, %v384
  %388 = vmatpush.bf16.msra.mxu0 0
  %389 = vmatpush.bf16.msra.mxu0 0
  %390 = vmatpush.bf16.msra.mxu0 0
  %391 = vmatpush.bf16.msra.mxu0 0
  %392 = vmatpush.bf16.msra.mxu0 0
  %393 = vmatpush.bf16.msra.mxu0 0
  %394 = vmatpush.bf16.msra.mxu0 0
  %395 = vmatpush.bf16.msra.mxu0 %v386
  %396 = vmatmul.bf16.gmra.mxu0 %v82
  %v397 = vpop.f32.mrf.mxu0
  %v398 = vadd.f32 0.0, %v397
  %v399 = vpop.f32.mrf.mxu0
  %400 = vdwg.mxu0
  %v403 = vunpack.c.l.b16 %v60
  %v404 = vunpack.c.l.b16 %v61
  %v405 = vpack.c.b16 %v404, %v403
  %407 = vmatpush.bf16.msra.mxu0 0
  %408 = vmatpush.bf16.msra.mxu0 0
  %409 = vmatpush.bf16.msra.mxu0 0
  %410 = vmatpush.bf16.msra.mxu0 0
  %411 = vmatpush.bf16.msra.mxu0 0
  %412 = vmatpush.bf16.msra.mxu0 0
  %413 = vmatpush.bf16.msra.mxu0 0
  %414 = vmatpush.bf16.msra.mxu0 %v405
  %415 = vmatmul.bf16.gmra.mxu0 %v82
  %v416 = vpop.f32.mrf.mxu0
  %v417 = vadd.f32 0.0, %v416
  %v418 = vpop.f32.mrf.mxu0
  %419 = vdwg.mxu0
  %v422 = vunpack.c.l.b16 %v62
  %v423 = vunpack.c.l.b16 %v63
  %v424 = vpack.c.b16 %v423, %v422
  %426 = vmatpush.bf16.msra.mxu0 0
  %427 = vmatpush.bf16.msra.mxu0 0
  %428 = vmatpush.bf16.msra.mxu0 0
  %429 = vmatpush.bf16.msra.mxu0 0
  %430 = vmatpush.bf16.msra.mxu0 0
  %431 = vmatpush.bf16.msra.mxu0 0
  %432 = vmatpush.bf16.msra.mxu0 0
  %433 = vmatpush.bf16.msra.mxu0 %v424
  %434 = vmatmul.bf16.gmra.mxu0 %v82
  %v435 = vpop.f32.mrf.mxu0
  %v436 = vadd.f32 0.0, %v435
  %v437 = vpop.f32.mrf.mxu0
  %438 = vdwg.mxu0
  %v441 = vunpack.c.l.b16 %v64
  %v442 = vunpack.c.l.b16 %v65
  %v443 = vpack.c.b16 %v442, %v441
  %445 = vmatpush.bf16.msra.mxu0 0
  %446 = vmatpush.bf16.msra.mxu0 0
  %447 = vmatpush.bf16.msra.mxu0 0
  %448 = vmatpush.bf16.msra.mxu0 0
  %449 = vmatpush.bf16.msra.mxu0 0
  %450 = vmatpush.bf16.msra.mxu0 0
  %451 = vmatpush.bf16.msra.mxu0 0
  %452 = vmatpush.bf16.msra.mxu0 %v443
  %453 = vmatmul.bf16.gmra.mxu0 %v82
  %v454 = vpop.f32.mrf.mxu0
  %v455 = vadd.f32 0.0, %v454
  %v456 = vpop.f32.mrf.mxu0
  %457 = vdwg.mxu0
  %v460 = vunpack.c.l.b16 %v66
  %v461 = vunpack.c.l.b16 %v67
  %v462 = vpack.c.b16 %v461, %v460
  %464 = vmatpush.bf16.msra.mxu0 0
  %465 = vmatpush.bf16.msra.mxu0 0
  %466 = vmatpush.bf16.msra.mxu0 0
  %467 = vmatpush.bf16.msra.mxu0 0
  %468 = vmatpush.bf16.msra.mxu0 0
  %469 = vmatpush.bf16.msra.mxu0 0
  %470 = vmatpush.bf16.msra.mxu0 0
  %471 = vmatpush.bf16.msra.mxu0 %v462
  %472 = vmatmul.bf16.gmra.mxu0 %v82
  %v473 = vpop.f32.mrf.mxu0
  %v474 = vadd.f32 0.0, %v473
  %v475 = vpop.f32.mrf.mxu0
  %476 = vdwg.mxu0
  %v479 = vunpack.c.l.b16 %v68
  %v480 = vunpack.c.l.b16 %v69
  %v481 = vpack.c.b16 %v480, %v479
  %483 = vmatpush.bf16.msra.mxu0 0
  %484 = vmatpush.bf16.msra.mxu0 0
  %485 = vmatpush.bf16.msra.mxu0 0
  %486 = vmatpush.bf16.msra.mxu0 0
  %487 = vmatpush.bf16.msra.mxu0 0
  %488 = vmatpush.bf16.msra.mxu0 0
  %489 = vmatpush.bf16.msra.mxu0 0
  %490 = vmatpush.bf16.msra.mxu0 %v481
  %491 = vmatmul.bf16.gmra.mxu0 %v82
  %v492 = vpop.f32.mrf.mxu0
  %v493 = vadd.f32 0.0, %v492
  %v494 = vpop.f32.mrf.mxu0
  %495 = vdwg.mxu0
  %v498 = vunpack.c.l.b16 %v70
  %v499 = vunpack.c.l.b16 %v71
  %v500 = vpack.c.b16 %v499, %v498
  %502 = vmatpush.bf16.msra.mxu0 0
  %503 = vmatpush.bf16.msra.mxu0 0
  %504 = vmatpush.bf16.msra.mxu0 0
  %505 = vmatpush.bf16.msra.mxu0 0
  %506 = vmatpush.bf16.msra.mxu0 0
  %507 = vmatpush.bf16.msra.mxu0 0
  %508 = vmatpush.bf16.msra.mxu0 0
  %509 = vmatpush.bf16.msra.mxu0 %v500
  %510 = vmatmul.bf16.gmra.mxu0 %v82
  %v511 = vpop.f32.mrf.mxu0
  %v512 = vadd.f32 0.0, %v511
  %v513 = vpop.f32.mrf.mxu0
  %514 = vdwg.mxu0
  %v517 = vunpack.c.l.b16 %v72
  %v518 = vunpack.c.l.b16 %v73
  %v519 = vpack.c.b16 %v518, %v517
  %521 = vmatpush.bf16.msra.mxu0 0
  %522 = vmatpush.bf16.msra.mxu0 0
  %523 = vmatpush.bf16.msra.mxu0 0
  %524 = vmatpush.bf16.msra.mxu0 0
  %525 = vmatpush.bf16.msra.mxu0 0
  %526 = vmatpush.bf16.msra.mxu0 0
  %527 = vmatpush.bf16.msra.mxu0 0
  %528 = vmatpush.bf16.msra.mxu0 %v519
  %529 = vmatmul.bf16.gmra.mxu0 %v82
  %v530 = vpop.f32.mrf.mxu0
  %v531 = vadd.f32 0.0, %v530
  %v532 = vpop.f32.mrf.mxu0
  %533 = vdwg.mxu0
  %v534 = vld [vmem:[%s2] sm:$0xf]
  %v535 = vld [vmem:[%s2 + $0x4] sm:$0xf]
  %v536 = vld [vmem:[%s2 + $0x8] sm:$0xf]
  %v537 = vld [vmem:[%s2 + $0xc] sm:$0xf]
  %v538 = vld [vmem:[%s2 + $0x10] sm:$0xf]
  %v539 = vld [vmem:[%s2 + $0x14] sm:$0xf]
  %v540 = vld [vmem:[%s2 + $0x18] sm:$0xf]
  %v541 = vld [vmem:[%s2 + $0x1c] sm:$0xf]
  %v542 = vld [vmem:[%s2 + $0x20] sm:$0xf]
  %v543 = vld [vmem:[%s2 + $0x24] sm:$0xf]
  %v544 = vld [vmem:[%s2 + $0x28] sm:$0xf]
  %v545 = vld [vmem:[%s2 + $0x2c] sm:$0xf]
  %v546 = vld [vmem:[%s2 + $0x30] sm:$0xf]
  %v547 = vld [vmem:[%s2 + $0x34] sm:$0xf]
  %v548 = vld [vmem:[%s2 + $0x38] sm:$0xf]
  %v549 = vld [vmem:[%s2 + $0x3c] sm:$0xf]
  %v550 = vld [vmem:[%s2 + $0x40] sm:$0xf]
  %v551 = vld [vmem:[%s2 + $0x44] sm:$0xf]
  %v552 = vld [vmem:[%s2 + $0x48] sm:$0xf]
  %v553 = vld [vmem:[%s2 + $0x4c] sm:$0xf]
  %v554 = vld [vmem:[%s2 + $0x50] sm:$0xf]
  %v555 = vld [vmem:[%s2 + $0x54] sm:$0xf]
  %v556 = vld [vmem:[%s2 + $0x58] sm:$0xf]
  %v557 = vld [vmem:[%s2 + $0x5c] sm:$0xf]
  %v558 = vld [vmem:[%s2 + $0x60] sm:$0xf]
  %v559 = vld [vmem:[%s2 + $0x64] sm:$0xf]
  %v560 = vld [vmem:[%s2 + $0x68] sm:$0xf]
  %v561 = vld [vmem:[%s2 + $0x6c] sm:$0xf]
  %v562 = vld [vmem:[%s2 + $0x70] sm:$0xf]
  %v563 = vld [vmem:[%s2 + $0x74] sm:$0xf]
  %v564 = vld [vmem:[%s2 + $0x78] sm:$0xf]
  %v565 = vld [vmem:[%s2 + $0x7c] sm:$0xf]
  %v566 = vld [vmem:[%s2 + $0x80] sm:$0xf]
  %v567 = vld [vmem:[%s2 + $0x84] sm:$0xf]
  %v568 = vld [vmem:[%s2 + $0x88] sm:$0xf]
  %v569 = vld [vmem:[%s2 + $0x8c] sm:$0xf]
  %v570 = vld [vmem:[%s2 + $0x90] sm:$0xf]
  %v571 = vld [vmem:[%s2 + $0x94] sm:$0xf]
  %v572 = vld [vmem:[%s2 + $0x98] sm:$0xf]
  %v573 = vld [vmem:[%s2 + $0x9c] sm:$0xf]
  %v574 = vld [vmem:[%s2 + $0xa0] sm:$0xf]
  %v575 = vld [vmem:[%s2 + $0xa4] sm:$0xf]
  %v576 = vld [vmem:[%s2 + $0xa8] sm:$0xf]
  %v577 = vld [vmem:[%s2 + $0xac] sm:$0xf]
  %v578 = vld [vmem:[%s2 + $0xb0] sm:$0xf]
  %v579 = vld [vmem:[%s2 + $0xb4] sm:$0xf]
  %v580 = vld [vmem:[%s2 + $0xb8] sm:$0xf]
  %v581 = vld [vmem:[%s2 + $0xbc] sm:$0xf]
  %v584 = vunpack.c.l.b16 %v534
  %v585 = vunpack.c.l.b16 %v535
  %v586 = vpack.c.b16 %v585, %v584
  %588 = vmatpush.bf16.msra.mxu0 0
  %589 = vmatpush.bf16.msra.mxu0 0
  %590 = vmatpush.bf16.msra.mxu0 0
  %591 = vmatpush.bf16.msra.mxu0 0
  %592 = vmatpush.bf16.msra.mxu0 0
  %593 = vmatpush.bf16.msra.mxu0 0
  %594 = vmatpush.bf16.msra.mxu0 0
  %595 = vmatpush.bf16.msra.mxu0 %v586
  %596 = vmatmul.bf16.gmra.mxu0 %v82
  %v597 = vpop.f32.mrf.mxu0
  %v598 = vadd.f32 0.0, %v597
  %v599 = vpop.f32.mrf.mxu0
  %600 = vdwg.mxu0
  %v603 = vunpack.c.l.b16 %v536
  %v604 = vunpack.c.l.b16 %v537
  %v605 = vpack.c.b16 %v604, %v603
  %607 = vmatpush.bf16.msra.mxu0 0
  %608 = vmatpush.bf16.msra.mxu0 0
  %609 = vmatpush.bf16.msra.mxu0 0
  %610 = vmatpush.bf16.msra.mxu0 0
  %611 = vmatpush.bf16.msra.mxu0 0
  %612 = vmatpush.bf16.msra.mxu0 0
  %613 = vmatpush.bf16.msra.mxu0 0
  %614 = vmatpush.bf16.msra.mxu0 %v605
  %615 = vmatmul.bf16.gmra.mxu0 %v82
  %v616 = vpop.f32.mrf.mxu0
  %v617 = vadd.f32 0.0, %v616
  %v618 = vpop.f32.mrf.mxu0
  %619 = vdwg.mxu0
  %v622 = vunpack.c.l.b16 %v538
  %v623 = vunpack.c.l.b16 %v539
  %v624 = vpack.c.b16 %v623, %v622
  %626 = vmatpush.bf16.msra.mxu0 0
  %627 = vmatpush.bf16.msra.mxu0 0
  %628 = vmatpush.bf16.msra.mxu0 0
  %629 = vmatpush.bf16.msra.mxu0 0
  %630 = vmatpush.bf16.msra.mxu0 0
  %631 = vmatpush.bf16.msra.mxu0 0
  %632 = vmatpush.bf16.msra.mxu0 0
  %633 = vmatpush.bf16.msra.mxu0 %v624
  %634 = vmatmul.bf16.gmra.mxu0 %v82
  %v635 = vpop.f32.mrf.mxu0
  %v636 = vadd.f32 0.0, %v635
  %v637 = vpop.f32.mrf.mxu0
  %638 = vdwg.mxu0
  %v641 = vunpack.c.l.b16 %v540
  %v642 = vunpack.c.l.b16 %v541
  %v643 = vpack.c.b16 %v642, %v641
  %645 = vmatpush.bf16.msra.mxu0 0
  %646 = vmatpush.bf16.msra.mxu0 0
  %647 = vmatpush.bf16.msra.mxu0 0
  %648 = vmatpush.bf16.msra.mxu0 0
  %649 = vmatpush.bf16.msra.mxu0 0
  %650 = vmatpush.bf16.msra.mxu0 0
  %651 = vmatpush.bf16.msra.mxu0 0
  %652 = vmatpush.bf16.msra.mxu0 %v643
  %653 = vmatmul.bf16.gmra.mxu0 %v82
  %v654 = vpop.f32.mrf.mxu0
  %v655 = vadd.f32 0.0, %v654
  %v656 = vpop.f32.mrf.mxu0
  %657 = vdwg.mxu0
  %v660 = vunpack.c.l.b16 %v542
  %v661 = vunpack.c.l.b16 %v543
  %v662 = vpack.c.b16 %v661, %v660
  %664 = vmatpush.bf16.msra.mxu0 0
  %665 = vmatpush.bf16.msra.mxu0 0
  %666 = vmatpush.bf16.msra.mxu0 0
  %667 = vmatpush.bf16.msra.mxu0 0
  %668 = vmatpush.bf16.msra.mxu0 0
  %669 = vmatpush.bf16.msra.mxu0 0
  %670 = vmatpush.bf16.msra.mxu0 0
  %671 = vmatpush.bf16.msra.mxu0 %v662
  %672 = vmatmul.bf16.gmra.mxu0 %v82
  %v673 = vpop.f32.mrf.mxu0
  %v674 = vadd.f32 0.0, %v673
  %v675 = vpop.f32.mrf.mxu0
  %676 = vdwg.mxu0
  %v679 = vunpack.c.l.b16 %v544
  %v680 = vunpack.c.l.b16 %v545
  %v681 = vpack.c.b16 %v680, %v679
  %683 = vmatpush.bf16.msra.mxu0 0
  %684 = vmatpush.bf16.msra.mxu0 0
  %685 = vmatpush.bf16.msra.mxu0 0
  %686 = vmatpush.bf16.msra.mxu0 0
  %687 = vmatpush.bf16.msra.mxu0 0
  %688 = vmatpush.bf16.msra.mxu0 0
  %689 = vmatpush.bf16.msra.mxu0 0
  %690 = vmatpush.bf16.msra.mxu0 %v681
  %691 = vmatmul.bf16.gmra.mxu0 %v82
  %v692 = vpop.f32.mrf.mxu0
  %v693 = vadd.f32 0.0, %v692
  %v694 = vpop.f32.mrf.mxu0
  %695 = vdwg.mxu0
  %v698 = vunpack.c.l.b16 %v546
  %v699 = vunpack.c.l.b16 %v547
  %v700 = vpack.c.b16 %v699, %v698
  %702 = vmatpush.bf16.msra.mxu0 0
  %703 = vmatpush.bf16.msra.mxu0 0
  %704 = vmatpush.bf16.msra.mxu0 0
  %705 = vmatpush.bf16.msra.mxu0 0
  %706 = vmatpush.bf16.msra.mxu0 0
  %707 = vmatpush.bf16.msra.mxu0 0
  %708 = vmatpush.bf16.msra.mxu0 0
  %709 = vmatpush.bf16.msra.mxu0 %v700
  %710 = vmatmul.bf16.gmra.mxu0 %v82
  %v711 = vpop.f32.mrf.mxu0
  %v712 = vadd.f32 0.0, %v711
  %v713 = vpop.f32.mrf.mxu0
  %714 = vdwg.mxu0
  %v717 = vunpack.c.l.b16 %v548
  %v718 = vunpack.c.l.b16 %v549
  %v719 = vpack.c.b16 %v718, %v717
  %721 = vmatpush.bf16.msra.mxu0 0
  %722 = vmatpush.bf16.msra.mxu0 0
  %723 = vmatpush.bf16.msra.mxu0 0
  %724 = vmatpush.bf16.msra.mxu0 0
  %725 = vmatpush.bf16.msra.mxu0 0
  %726 = vmatpush.bf16.msra.mxu0 0
  %727 = vmatpush.bf16.msra.mxu0 0
  %728 = vmatpush.bf16.msra.mxu0 %v719
  %729 = vmatmul.bf16.gmra.mxu0 %v82
  %v730 = vpop.f32.mrf.mxu0
  %v731 = vadd.f32 0.0, %v730
  %v732 = vpop.f32.mrf.mxu0
  %733 = vdwg.mxu0
  %v736 = vunpack.c.l.b16 %v550
  %v737 = vunpack.c.l.b16 %v551
  %v738 = vpack.c.b16 %v737, %v736
  %740 = vmatpush.bf16.msra.mxu0 0
  %741 = vmatpush.bf16.msra.mxu0 0
  %742 = vmatpush.bf16.msra.mxu0 0
  %743 = vmatpush.bf16.msra.mxu0 0
  %744 = vmatpush.bf16.msra.mxu0 0
  %745 = vmatpush.bf16.msra.mxu0 0
  %746 = vmatpush.bf16.msra.mxu0 0
  %747 = vmatpush.bf16.msra.mxu0 %v738
  %748 = vmatmul.bf16.gmra.mxu0 %v82
  %v749 = vpop.f32.mrf.mxu0
  %v750 = vadd.f32 0.0, %v749
  %v751 = vpop.f32.mrf.mxu0
  %752 = vdwg.mxu0
  %v755 = vunpack.c.l.b16 %v552
  %v756 = vunpack.c.l.b16 %v553
  %v757 = vpack.c.b16 %v756, %v755
  %759 = vmatpush.bf16.msra.mxu0 0
  %760 = vmatpush.bf16.msra.mxu0 0
  %761 = vmatpush.bf16.msra.mxu0 0
  %762 = vmatpush.bf16.msra.mxu0 0
  %763 = vmatpush.bf16.msra.mxu0 0
  %764 = vmatpush.bf16.msra.mxu0 0
  %765 = vmatpush.bf16.msra.mxu0 0
  %766 = vmatpush.bf16.msra.mxu0 %v757
  %767 = vmatmul.bf16.gmra.mxu0 %v82
  %v768 = vpop.f32.mrf.mxu0
  %v769 = vadd.f32 0.0, %v768
  %v770 = vpop.f32.mrf.mxu0
  %771 = vdwg.mxu0
  %v774 = vunpack.c.l.b16 %v554
  %v775 = vunpack.c.l.b16 %v555
  %v776 = vpack.c.b16 %v775, %v774
  %778 = vmatpush.bf16.msra.mxu0 0
  %779 = vmatpush.bf16.msra.mxu0 0
  %780 = vmatpush.bf16.msra.mxu0 0
  %781 = vmatpush.bf16.msra.mxu0 0
  %782 = vmatpush.bf16.msra.mxu0 0
  %783 = vmatpush.bf16.msra.mxu0 0
  %784 = vmatpush.bf16.msra.mxu0 0
  %785 = vmatpush.bf16.msra.mxu0 %v776
  %786 = vmatmul.bf16.gmra.mxu0 %v82
  %v787 = vpop.f32.mrf.mxu0
  %v788 = vadd.f32 0.0, %v787
  %v789 = vpop.f32.mrf.mxu0
  %790 = vdwg.mxu0
  %v793 = vunpack.c.l.b16 %v556
  %v794 = vunpack.c.l.b16 %v557
  %v795 = vpack.c.b16 %v794, %v793
  %797 = vmatpush.bf16.msra.mxu0 0
  %798 = vmatpush.bf16.msra.mxu0 0
  %799 = vmatpush.bf16.msra.mxu0 0
  %800 = vmatpush.bf16.msra.mxu0 0
  %801 = vmatpush.bf16.msra.mxu0 0
  %802 = vmatpush.bf16.msra.mxu0 0
  %803 = vmatpush.bf16.msra.mxu0 0
  %804 = vmatpush.bf16.msra.mxu0 %v795
  %805 = vmatmul.bf16.gmra.mxu0 %v82
  %v806 = vpop.f32.mrf.mxu0
  %v807 = vadd.f32 0.0, %v806
  %v808 = vpop.f32.mrf.mxu0
  %809 = vdwg.mxu0
  %v812 = vunpack.c.l.b16 %v558
  %v813 = vunpack.c.l.b16 %v559
  %v814 = vpack.c.b16 %v813, %v812
  %816 = vmatpush.bf16.msra.mxu0 0
  %817 = vmatpush.bf16.msra.mxu0 0
  %818 = vmatpush.bf16.msra.mxu0 0
  %819 = vmatpush.bf16.msra.mxu0 0
  %820 = vmatpush.bf16.msra.mxu0 0
  %821 = vmatpush.bf16.msra.mxu0 0
  %822 = vmatpush.bf16.msra.mxu0 0
  %823 = vmatpush.bf16.msra.mxu0 %v814
  %824 = vmatmul.bf16.gmra.mxu0 %v82
  %v825 = vpop.f32.mrf.mxu0
  %v826 = vadd.f32 0.0, %v825
  %v827 = vpop.f32.mrf.mxu0
  %828 = vdwg.mxu0
  %v831 = vunpack.c.l.b16 %v560
  %v832 = vunpack.c.l.b16 %v561
  %v833 = vpack.c.b16 %v832, %v831
  %835 = vmatpush.bf16.msra.mxu0 0
  %836 = vmatpush.bf16.msra.mxu0 0
  %837 = vmatpush.bf16.msra.mxu0 0
  %838 = vmatpush.bf16.msra.mxu0 0
  %839 = vmatpush.bf16.msra.mxu0 0
  %840 = vmatpush.bf16.msra.mxu0 0
  %841 = vmatpush.bf16.msra.mxu0 0
  %842 = vmatpush.bf16.msra.mxu0 %v833
  %843 = vmatmul.bf16.gmra.mxu0 %v82
  %v844 = vpop.f32.mrf.mxu0
  %v845 = vadd.f32 0.0, %v844
  %v846 = vpop.f32.mrf.mxu0
  %847 = vdwg.mxu0
  %v850 = vunpack.c.l.b16 %v562
  %v851 = vunpack.c.l.b16 %v563
  %v852 = vpack.c.b16 %v851, %v850
  %854 = vmatpush.bf16.msra.mxu0 0
  %855 = vmatpush.bf16.msra.mxu0 0
  %856 = vmatpush.bf16.msra.mxu0 0
  %857 = vmatpush.bf16.msra.mxu0 0
  %858 = vmatpush.bf16.msra.mxu0 0
  %859 = vmatpush.bf16.msra.mxu0 0
  %860 = vmatpush.bf16.msra.mxu0 0
  %861 = vmatpush.bf16.msra.mxu0 %v852
  %862 = vmatmul.bf16.gmra.mxu0 %v82
  %v863 = vpop.f32.mrf.mxu0
  %v864 = vadd.f32 0.0, %v863
  %v865 = vpop.f32.mrf.mxu0
  %866 = vdwg.mxu0
  %v869 = vunpack.c.l.b16 %v564
  %v870 = vunpack.c.l.b16 %v565
  %v871 = vpack.c.b16 %v870, %v869
  %873 = vmatpush.bf16.msra.mxu0 0
  %874 = vmatpush.bf16.msra.mxu0 0
  %875 = vmatpush.bf16.msra.mxu0 0
  %876 = vmatpush.bf16.msra.mxu0 0
  %877 = vmatpush.bf16.msra.mxu0 0
  %878 = vmatpush.bf16.msra.mxu0 0
  %879 = vmatpush.bf16.msra.mxu0 0
  %880 = vmatpush.bf16.msra.mxu0 %v871
  %881 = vmatmul.bf16.gmra.mxu0 %v82
  %v882 = vpop.f32.mrf.mxu0
  %v883 = vadd.f32 0.0, %v882
  %v884 = vpop.f32.mrf.mxu0
  %885 = vdwg.mxu0
  %v888 = vunpack.c.l.b16 %v566
  %v889 = vunpack.c.l.b16 %v567
  %v890 = vpack.c.b16 %v889, %v888
  %892 = vmatpush.bf16.msra.mxu0 0
  %893 = vmatpush.bf16.msra.mxu0 0
  %894 = vmatpush.bf16.msra.mxu0 0
  %895 = vmatpush.bf16.msra.mxu0 0
  %896 = vmatpush.bf16.msra.mxu0 0
  %897 = vmatpush.bf16.msra.mxu0 0
  %898 = vmatpush.bf16.msra.mxu0 0
  %899 = vmatpush.bf16.msra.mxu0 %v890
  %900 = vmatmul.bf16.gmra.mxu0 %v82
  %v901 = vpop.f32.mrf.mxu0
  %v902 = vadd.f32 0.0, %v901
  %v903 = vpop.f32.mrf.mxu0
  %904 = vdwg.mxu0
  %v907 = vunpack.c.l.b16 %v568
  %v908 = vunpack.c.l.b16 %v569
  %v909 = vpack.c.b16 %v908, %v907
  %911 = vmatpush.bf16.msra.mxu0 0
  %912 = vmatpush.bf16.msra.mxu0 0
  %913 = vmatpush.bf16.msra.mxu0 0
  %914 = vmatpush.bf16.msra.mxu0 0
  %915 = vmatpush.bf16.msra.mxu0 0
  %916 = vmatpush.bf16.msra.mxu0 0
  %917 = vmatpush.bf16.msra.mxu0 0
  %918 = vmatpush.bf16.msra.mxu0 %v909
  %919 = vmatmul.bf16.gmra.mxu0 %v82
  %v920 = vpop.f32.mrf.mxu0
  %v921 = vadd.f32 0.0, %v920
  %v922 = vpop.f32.mrf.mxu0
  %923 = vdwg.mxu0
  %v926 = vunpack.c.l.b16 %v570
  %v927 = vunpack.c.l.b16 %v571
  %v928 = vpack.c.b16 %v927, %v926
  %930 = vmatpush.bf16.msra.mxu0 0
  %931 = vmatpush.bf16.msra.mxu0 0
  %932 = vmatpush.bf16.msra.mxu0 0
  %933 = vmatpush.bf16.msra.mxu0 0
  %934 = vmatpush.bf16.msra.mxu0 0
  %935 = vmatpush.bf16.msra.mxu0 0
  %936 = vmatpush.bf16.msra.mxu0 0
  %937 = vmatpush.bf16.msra.mxu0 %v928
  %938 = vmatmul.bf16.gmra.mxu0 %v82
  %v939 = vpop.f32.mrf.mxu0
  %v940 = vadd.f32 0.0, %v939
  %v941 = vpop.f32.mrf.mxu0
  %942 = vdwg.mxu0
  %v945 = vunpack.c.l.b16 %v572
  %v946 = vunpack.c.l.b16 %v573
  %v947 = vpack.c.b16 %v946, %v945
  %949 = vmatpush.bf16.msra.mxu0 0
  %950 = vmatpush.bf16.msra.mxu0 0
  %951 = vmatpush.bf16.msra.mxu0 0
  %952 = vmatpush.bf16.msra.mxu0 0
  %953 = vmatpush.bf16.msra.mxu0 0
  %954 = vmatpush.bf16.msra.mxu0 0
  %955 = vmatpush.bf16.msra.mxu0 0
  %956 = vmatpush.bf16.msra.mxu0 %v947
  %957 = vmatmul.bf16.gmra.mxu0 %v82
  %v958 = vpop.f32.mrf.mxu0
  %v959 = vadd.f32 0.0, %v958
  %v960 = vpop.f32.mrf.mxu0
  %961 = vdwg.mxu0
  %v964 = vunpack.c.l.b16 %v574
  %v965 = vunpack.c.l.b16 %v575
  %v966 = vpack.c.b16 %v965, %v964
  %968 = vmatpush.bf16.msra.mxu0 0
  %969 = vmatpush.bf16.msra.mxu0 0
  %970 = vmatpush.bf16.msra.mxu0 0
  %971 = vmatpush.bf16.msra.mxu0 0
  %972 = vmatpush.bf16.msra.mxu0 0
  %973 = vmatpush.bf16.msra.mxu0 0
  %974 = vmatpush.bf16.msra.mxu0 0
  %975 = vmatpush.bf16.msra.mxu0 %v966
  %976 = vmatmul.bf16.gmra.mxu0 %v82
  %v977 = vpop.f32.mrf.mxu0
  %v978 = vadd.f32 0.0, %v977
  %v979 = vpop.f32.mrf.mxu0
  %980 = vdwg.mxu0
  %v983 = vunpack.c.l.b16 %v576
  %v984 = vunpack.c.l.b16 %v577
  %v985 = vpack.c.b16 %v984, %v983
  %987 = vmatpush.bf16.msra.mxu0 0
  %988 = vmatpush.bf16.msra.mxu0 0
  %989 = vmatpush.bf16.msra.mxu0 0
  %990 = vmatpush.bf16.msra.mxu0 0
  %991 = vmatpush.bf16.msra.mxu0 0
  %992 = vmatpush.bf16.msra.mxu0 0
  %993 = vmatpush.bf16.msra.mxu0 0
  %994 = vmatpush.bf16.msra.mxu0 %v985
  %995 = vmatmul.bf16.gmra.mxu0 %v82
  %v996 = vpop.f32.mrf.mxu0
  %v997 = vadd.f32 0.0, %v996
  %v998 = vpop.f32.mrf.mxu0
  %999 = vdwg.mxu0
  %v1002 = vunpack.c.l.b16 %v578
  %v1003 = vunpack.c.l.b16 %v579
  %v1004 = vpack.c.b16 %v1003, %v1002
  %1006 = vmatpush.bf16.msra.mxu0 0
  %1007 = vmatpush.bf16.msra.mxu0 0
  %1008 = vmatpush.bf16.msra.mxu0 0
  %1009 = vmatpush.bf16.msra.mxu0 0
  %1010 = vmatpush.bf16.msra.mxu0 0
  %1011 = vmatpush.bf16.msra.mxu0 0
  %1012 = vmatpush.bf16.msra.mxu0 0
  %1013 = vmatpush.bf16.msra.mxu0 %v1004
  %1014 = vmatmul.bf16.gmra.mxu0 %v82
  %v1015 = vpop.f32.mrf.mxu0
  %v1016 = vadd.f32 0.0, %v1015
  %v1017 = vpop.f32.mrf.mxu0
  %1018 = vdwg.mxu0
  %v1021 = vunpack.c.l.b16 %v580
  %v1022 = vunpack.c.l.b16 %v581
  %v1023 = vpack.c.b16 %v1022, %v1021
  %1025 = vmatpush.bf16.msra.mxu0 0
  %1026 = vmatpush.bf16.msra.mxu0 0
  %1027 = vmatpush.bf16.msra.mxu0 0
  %1028 = vmatpush.bf16.msra.mxu0 0
  %1029 = vmatpush.bf16.msra.mxu0 0
  %1030 = vmatpush.bf16.msra.mxu0 0
  %1031 = vmatpush.bf16.msra.mxu0 0
  %1032 = vmatpush.bf16.msra.mxu0 %v1023
  %1033 = vmatmul.bf16.gmra.mxu0 %v82
  %v1034 = vpop.f32.mrf.mxu0
  %v1035 = vadd.f32 0.0, %v1034
  %v1036 = vpop.f32.mrf.mxu0
  %1037 = vdwg.mxu0
  %v1038 = vmul.f32 %v94, %v94
  %v1039 = vmul.f32 %v113, %v113
  %v1040 = vmul.f32 %v132, %v132
  %v1041 = vmul.f32 %v151, %v151
  %v1042 = vmul.f32 %v170, %v170
  %v1043 = vmul.f32 %v189, %v189
  %v1044 = vmul.f32 %v208, %v208
  %v1045 = vmul.f32 %v227, %v227
  %v1046 = vmul.f32 %v246, %v246
  %v1047 = vmul.f32 %v265, %v265
  %v1048 = vmul.f32 %v284, %v284
  %v1049 = vmul.f32 %v303, %v303
  %v1050 = vmul.f32 %v322, %v322
  %v1051 = vmul.f32 %v341, %v341
  %v1052 = vmul.f32 %v360, %v360
  %v1053 = vmul.f32 %v379, %v379
  %v1054 = vmul.f32 %v398, %v398
  %v1055 = vmul.f32 %v417, %v417
  %v1056 = vmul.f32 %v436, %v436
  %v1057 = vmul.f32 %v455, %v455
  %v1058 = vmul.f32 %v474, %v474
  %v1059 = vmul.f32 %v493, %v493
  %v1060 = vmul.f32 %v512, %v512
  %v1061 = vmul.f32 %v531, %v531
  %v1062 = vmul.f32 %v598, %v598
  %v1063 = vmul.f32 %v617, %v617
  %v1064 = vmul.f32 %v636, %v636
  %v1065 = vmul.f32 %v655, %v655
  %v1066 = vmul.f32 %v674, %v674
  %v1067 = vmul.f32 %v693, %v693
  %v1068 = vmul.f32 %v712, %v712
  %v1069 = vmul.f32 %v731, %v731
  %v1070 = vmul.f32 %v750, %v750
  %v1071 = vmul.f32 %v769, %v769
  %v1072 = vmul.f32 %v788, %v788
  %v1073 = vmul.f32 %v807, %v807
  %v1074 = vmul.f32 %v826, %v826
  %v1075 = vmul.f32 %v845, %v845
  %v1076 = vmul.f32 %v864, %v864
  %v1077 = vmul.f32 %v883, %v883
  %v1078 = vmul.f32 %v902, %v902
  %v1079 = vmul.f32 %v921, %v921
  %v1080 = vmul.f32 %v940, %v940
  %v1081 = vmul.f32 %v959, %v959
  %v1082 = vmul.f32 %v978, %v978
  %v1083 = vmul.f32 %v997, %v997
  %v1084 = vmul.f32 %v1016, %v1016
  %v1085 = vmul.f32 %v1035, %v1035
  %v1086 = vadd.f32 %v1038, %v1062
  %v1087 = vadd.f32 %v1039, %v1063
  %v1088 = vadd.f32 %v1040, %v1064
  %v1089 = vadd.f32 %v1041, %v1065
  %v1090 = vadd.f32 %v1042, %v1066
  %v1091 = vadd.f32 %v1043, %v1067
  %v1092 = vadd.f32 %v1044, %v1068
  %v1093 = vadd.f32 %v1045, %v1069
  %v1094 = vadd.f32 %v1046, %v1070
  %v1095 = vadd.f32 %v1047, %v1071
  %v1096 = vadd.f32 %v1048, %v1072
  %v1097 = vadd.f32 %v1049, %v1073
  %v1098 = vadd.f32 %v1050, %v1074
  %v1099 = vadd.f32 %v1051, %v1075
  %v1100 = vadd.f32 %v1052, %v1076
  %v1101 = vadd.f32 %v1053, %v1077
  %v1102 = vadd.f32 %v1054, %v1078
  %v1103 = vadd.f32 %v1055, %v1079
  %v1104 = vadd.f32 %v1056, %v1080
  %v1105 = vadd.f32 %v1057, %v1081
  %v1106 = vadd.f32 %v1058, %v1082
  %v1107 = vadd.f32 %v1059, %v1083
  %v1108 = vadd.f32 %v1060, %v1084
  %v1109 = vadd.f32 %v1061, %v1085
  %v1110 = vrsqrt.pop %v1086
  %v1111 = vmul.f32 %v1110, %v1086
  %v1112 = vmul.f32 %v1111, %v1110
  %v1113 = vmul.f32 0.5, %v1112
  %v1114 = vsub.f32 1.5, %v1113
  %v1115 = vmul.f32 %v1110, %v1114
  %v1116 = vmul.f32 %v1086, %v1115
  %vm1117 = vcmp.eq.f32.partialorder %v1086, inf
  %v1118 = vsel %vm1117, %v1086, %v1116
  %vm1119 = vcmp.eq.f32.partialorder %v1086, 0.0
  %v1120 = vand.u32 %v1086, 2147483648
  %v1121 = vsel %vm1119, %v1120, %v1118
  %v1122 = vrsqrt.pop %v1087
  %v1123 = vmul.f32 %v1122, %v1087
  %v1124 = vmul.f32 %v1123, %v1122
  %v1125 = vmul.f32 0.5, %v1124
  %v1126 = vsub.f32 1.5, %v1125
  %v1127 = vmul.f32 %v1122, %v1126
  %v1128 = vmul.f32 %v1087, %v1127
  %vm1129 = vcmp.eq.f32.partialorder %v1087, inf
  %v1130 = vsel %vm1129, %v1087, %v1128
  %vm1131 = vcmp.eq.f32.partialorder %v1087, 0.0
  %v1132 = vand.u32 %v1087, 2147483648
  %v1133 = vsel %vm1131, %v1132, %v1130
  %v1134 = vrsqrt.pop %v1088
  %v1135 = vmul.f32 %v1134, %v1088
  %v1136 = vmul.f32 %v1135, %v1134
  %v1137 = vmul.f32 0.5, %v1136
  %v1138 = vsub.f32 1.5, %v1137
  %v1139 = vmul.f32 %v1134, %v1138
  %v1140 = vmul.f32 %v1088, %v1139
  %vm1141 = vcmp.eq.f32.partialorder %v1088, inf
  %v1142 = vsel %vm1141, %v1088, %v1140
  %vm1143 = vcmp.eq.f32.partialorder %v1088, 0.0
  %v1144 = vand.u32 %v1088, 2147483648
  %v1145 = vsel %vm1143, %v1144, %v1142
  %v1146 = vrsqrt.pop %v1089
  %v1147 = vmul.f32 %v1146, %v1089
  %v1148 = vmul.f32 %v1147, %v1146
  %v1149 = vmul.f32 0.5, %v1148
  %v1150 = vsub.f32 1.5, %v1149
  %v1151 = vmul.f32 %v1146, %v1150
  %v1152 = vmul.f32 %v1089, %v1151
  %vm1153 = vcmp.eq.f32.partialorder %v1089, inf
  %v1154 = vsel %vm1153, %v1089, %v1152
  %vm1155 = vcmp.eq.f32.partialorder %v1089, 0.0
  %v1156 = vand.u32 %v1089, 2147483648
  %v1157 = vsel %vm1155, %v1156, %v1154
  %v1158 = vrsqrt.pop %v1090
  %v1159 = vmul.f32 %v1158, %v1090
  %v1160 = vmul.f32 %v1159, %v1158
  %v1161 = vmul.f32 0.5, %v1160
  %v1162 = vsub.f32 1.5, %v1161
  %v1163 = vmul.f32 %v1158, %v1162
  %v1164 = vmul.f32 %v1090, %v1163
  %vm1165 = vcmp.eq.f32.partialorder %v1090, inf
  %v1166 = vsel %vm1165, %v1090, %v1164
  %vm1167 = vcmp.eq.f32.partialorder %v1090, 0.0
  %v1168 = vand.u32 %v1090, 2147483648
  %v1169 = vsel %vm1167, %v1168, %v1166
  %v1170 = vrsqrt.pop %v1091
  %v1171 = vmul.f32 %v1170, %v1091
  %v1172 = vmul.f32 %v1171, %v1170
  %v1173 = vmul.f32 0.5, %v1172
  %v1174 = vsub.f32 1.5, %v1173
  %v1175 = vmul.f32 %v1170, %v1174
  %v1176 = vmul.f32 %v1091, %v1175
  %vm1177 = vcmp.eq.f32.partialorder %v1091, inf
  %v1178 = vsel %vm1177, %v1091, %v1176
  %vm1179 = vcmp.eq.f32.partialorder %v1091, 0.0
  %v1180 = vand.u32 %v1091, 2147483648
  %v1181 = vsel %vm1179, %v1180, %v1178
  %v1182 = vrsqrt.pop %v1092
  %v1183 = vmul.f32 %v1182, %v1092
  %v1184 = vmul.f32 %v1183, %v1182
  %v1185 = vmul.f32 0.5, %v1184
  %v1186 = vsub.f32 1.5, %v1185
  %v1187 = vmul.f32 %v1182, %v1186
  %v1188 = vmul.f32 %v1092, %v1187
  %vm1189 = vcmp.eq.f32.partialorder %v1092, inf
  %v1190 = vsel %vm1189, %v1092, %v1188
  %vm1191 = vcmp.eq.f32.partialorder %v1092, 0.0
  %v1192 = vand.u32 %v1092, 2147483648
  %v1193 = vsel %vm1191, %v1192, %v1190
  %v1194 = vrsqrt.pop %v1093
  %v1195 = vmul.f32 %v1194, %v1093
  %v1196 = vmul.f32 %v1195, %v1194
  %v1197 = vmul.f32 0.5, %v1196
  %v1198 = vsub.f32 1.5, %v1197
  %v1199 = vmul.f32 %v1194, %v1198
  %v1200 = vmul.f32 %v1093, %v1199
  %vm1201 = vcmp.eq.f32.partialorder %v1093, inf
  %v1202 = vsel %vm1201, %v1093, %v1200
  %vm1203 = vcmp.eq.f32.partialorder %v1093, 0.0
  %v1204 = vand.u32 %v1093, 2147483648
  %v1205 = vsel %vm1203, %v1204, %v1202
  %v1206 = vrsqrt.pop %v1094
  %v1207 = vmul.f32 %v1206, %v1094
  %v1208 = vmul.f32 %v1207, %v1206
  %v1209 = vmul.f32 0.5, %v1208
  %v1210 = vsub.f32 1.5, %v1209
  %v1211 = vmul.f32 %v1206, %v1210
  %v1212 = vmul.f32 %v1094, %v1211
  %vm1213 = vcmp.eq.f32.partialorder %v1094, inf
  %v1214 = vsel %vm1213, %v1094, %v1212
  %vm1215 = vcmp.eq.f32.partialorder %v1094, 0.0
  %v1216 = vand.u32 %v1094, 2147483648
  %v1217 = vsel %vm1215, %v1216, %v1214
  %v1218 = vrsqrt.pop %v1095
  %v1219 = vmul.f32 %v1218, %v1095
  %v1220 = vmul.f32 %v1219, %v1218
  %v1221 = vmul.f32 0.5, %v1220
  %v1222 = vsub.f32 1.5, %v1221
  %v1223 = vmul.f32 %v1218, %v1222
  %v1224 = vmul.f32 %v1095, %v1223
  %vm1225 = vcmp.eq.f32.partialorder %v1095, inf
  %v1226 = vsel %vm1225, %v1095, %v1224
  %vm1227 = vcmp.eq.f32.partialorder %v1095, 0.0
  %v1228 = vand.u32 %v1095, 2147483648
  %v1229 = vsel %vm1227, %v1228, %v1226
  %v1230 = vrsqrt.pop %v1096
  %v1231 = vmul.f32 %v1230, %v1096
  %v1232 = vmul.f32 %v1231, %v1230
  %v1233 = vmul.f32 0.5, %v1232
  %v1234 = vsub.f32 1.5, %v1233
  %v1235 = vmul.f32 %v1230, %v1234
  %v1236 = vmul.f32 %v1096, %v1235
  %vm1237 = vcmp.eq.f32.partialorder %v1096, inf
  %v1238 = vsel %vm1237, %v1096, %v1236
  %vm1239 = vcmp.eq.f32.partialorder %v1096, 0.0
  %v1240 = vand.u32 %v1096, 2147483648
  %v1241 = vsel %vm1239, %v1240, %v1238
  %v1242 = vrsqrt.pop %v1097
  %v1243 = vmul.f32 %v1242, %v1097
  %v1244 = vmul.f32 %v1243, %v1242
  %v1245 = vmul.f32 0.5, %v1244
  %v1246 = vsub.f32 1.5, %v1245
  %v1247 = vmul.f32 %v1242, %v1246
  %v1248 = vmul.f32 %v1097, %v1247
  %vm1249 = vcmp.eq.f32.partialorder %v1097, inf
  %v1250 = vsel %vm1249, %v1097, %v1248
  %vm1251 = vcmp.eq.f32.partialorder %v1097, 0.0
  %v1252 = vand.u32 %v1097, 2147483648
  %v1253 = vsel %vm1251, %v1252, %v1250
  %v1254 = vrsqrt.pop %v1098
  %v1255 = vmul.f32 %v1254, %v1098
  %v1256 = vmul.f32 %v1255, %v1254
  %v1257 = vmul.f32 0.5, %v1256
  %v1258 = vsub.f32 1.5, %v1257
  %v1259 = vmul.f32 %v1254, %v1258
  %v1260 = vmul.f32 %v1098, %v1259
  %vm1261 = vcmp.eq.f32.partialorder %v1098, inf
  %v1262 = vsel %vm1261, %v1098, %v1260
  %vm1263 = vcmp.eq.f32.partialorder %v1098, 0.0
  %v1264 = vand.u32 %v1098, 2147483648
  %v1265 = vsel %vm1263, %v1264, %v1262
  %v1266 = vrsqrt.pop %v1099
  %v1267 = vmul.f32 %v1266, %v1099
  %v1268 = vmul.f32 %v1267, %v1266
  %v1269 = vmul.f32 0.5, %v1268
  %v1270 = vsub.f32 1.5, %v1269
  %v1271 = vmul.f32 %v1266, %v1270
  %v1272 = vmul.f32 %v1099, %v1271
  %vm1273 = vcmp.eq.f32.partialorder %v1099, inf
  %v1274 = vsel %vm1273, %v1099, %v1272
  %vm1275 = vcmp.eq.f32.partialorder %v1099, 0.0
  %v1276 = vand.u32 %v1099, 2147483648
  %v1277 = vsel %vm1275, %v1276, %v1274
  %v1278 = vrsqrt.pop %v1100
  %v1279 = vmul.f32 %v1278, %v1100
  %v1280 = vmul.f32 %v1279, %v1278
  %v1281 = vmul.f32 0.5, %v1280
  %v1282 = vsub.f32 1.5, %v1281
  %v1283 = vmul.f32 %v1278, %v1282
  %v1284 = vmul.f32 %v1100, %v1283
  %vm1285 = vcmp.eq.f32.partialorder %v1100, inf
  %v1286 = vsel %vm1285, %v1100, %v1284
  %vm1287 = vcmp.eq.f32.partialorder %v1100, 0.0
  %v1288 = vand.u32 %v1100, 2147483648
  %v1289 = vsel %vm1287, %v1288, %v1286
  %v1290 = vrsqrt.pop %v1101
  %v1291 = vmul.f32 %v1290, %v1101
  %v1292 = vmul.f32 %v1291, %v1290
  %v1293 = vmul.f32 0.5, %v1292
  %v1294 = vsub.f32 1.5, %v1293
  %v1295 = vmul.f32 %v1290, %v1294
  %v1296 = vmul.f32 %v1101, %v1295
  %vm1297 = vcmp.eq.f32.partialorder %v1101, inf
  %v1298 = vsel %vm1297, %v1101, %v1296
  %vm1299 = vcmp.eq.f32.partialorder %v1101, 0.0
  %v1300 = vand.u32 %v1101, 2147483648
  %v1301 = vsel %vm1299, %v1300, %v1298
  %v1302 = vrsqrt.pop %v1102
  %v1303 = vmul.f32 %v1302, %v1102
  %v1304 = vmul.f32 %v1303, %v1302
  %v1305 = vmul.f32 0.5, %v1304
  %v1306 = vsub.f32 1.5, %v1305
  %v1307 = vmul.f32 %v1302, %v1306
  %v1308 = vmul.f32 %v1102, %v1307
  %vm1309 = vcmp.eq.f32.partialorder %v1102, inf
  %v1310 = vsel %vm1309, %v1102, %v1308
  %vm1311 = vcmp.eq.f32.partialorder %v1102, 0.0
  %v1312 = vand.u32 %v1102, 2147483648
  %v1313 = vsel %vm1311, %v1312, %v1310
  %v1314 = vrsqrt.pop %v1103
  %v1315 = vmul.f32 %v1314, %v1103
  %v1316 = vmul.f32 %v1315, %v1314
  %v1317 = vmul.f32 0.5, %v1316
  %v1318 = vsub.f32 1.5, %v1317
  %v1319 = vmul.f32 %v1314, %v1318
  %v1320 = vmul.f32 %v1103, %v1319
  %vm1321 = vcmp.eq.f32.partialorder %v1103, inf
  %v1322 = vsel %vm1321, %v1103, %v1320
  %vm1323 = vcmp.eq.f32.partialorder %v1103, 0.0
  %v1324 = vand.u32 %v1103, 2147483648
  %v1325 = vsel %vm1323, %v1324, %v1322
  %v1326 = vrsqrt.pop %v1104
  %v1327 = vmul.f32 %v1326, %v1104
  %v1328 = vmul.f32 %v1327, %v1326
  %v1329 = vmul.f32 0.5, %v1328
  %v1330 = vsub.f32 1.5, %v1329
  %v1331 = vmul.f32 %v1326, %v1330
  %v1332 = vmul.f32 %v1104, %v1331
  %vm1333 = vcmp.eq.f32.partialorder %v1104, inf
  %v1334 = vsel %vm1333, %v1104, %v1332
  %vm1335 = vcmp.eq.f32.partialorder %v1104, 0.0
  %v1336 = vand.u32 %v1104, 2147483648
  %v1337 = vsel %vm1335, %v1336, %v1334
  %v1338 = vrsqrt.pop %v1105
  %v1339 = vmul.f32 %v1338, %v1105
  %v1340 = vmul.f32 %v1339, %v1338
  %v1341 = vmul.f32 0.5, %v1340
  %v1342 = vsub.f32 1.5, %v1341
  %v1343 = vmul.f32 %v1338, %v1342
  %v1344 = vmul.f32 %v1105, %v1343
  %vm1345 = vcmp.eq.f32.partialorder %v1105, inf
  %v1346 = vsel %vm1345, %v1105, %v1344
  %vm1347 = vcmp.eq.f32.partialorder %v1105, 0.0
  %v1348 = vand.u32 %v1105, 2147483648
  %v1349 = vsel %vm1347, %v1348, %v1346
  %v1350 = vrsqrt.pop %v1106
  %v1351 = vmul.f32 %v1350, %v1106
  %v1352 = vmul.f32 %v1351, %v1350
  %v1353 = vmul.f32 0.5, %v1352
  %v1354 = vsub.f32 1.5, %v1353
  %v1355 = vmul.f32 %v1350, %v1354
  %v1356 = vmul.f32 %v1106, %v1355
  %vm1357 = vcmp.eq.f32.partialorder %v1106, inf
  %v1358 = vsel %vm1357, %v1106, %v1356
  %vm1359 = vcmp.eq.f32.partialorder %v1106, 0.0
  %v1360 = vand.u32 %v1106, 2147483648
  %v1361 = vsel %vm1359, %v1360, %v1358
  %v1362 = vrsqrt.pop %v1107
  %v1363 = vmul.f32 %v1362, %v1107
  %v1364 = vmul.f32 %v1363, %v1362
  %v1365 = vmul.f32 0.5, %v1364
  %v1366 = vsub.f32 1.5, %v1365
  %v1367 = vmul.f32 %v1362, %v1366
  %v1368 = vmul.f32 %v1107, %v1367
  %vm1369 = vcmp.eq.f32.partialorder %v1107, inf
  %v1370 = vsel %vm1369, %v1107, %v1368
  %vm1371 = vcmp.eq.f32.partialorder %v1107, 0.0
  %v1372 = vand.u32 %v1107, 2147483648
  %v1373 = vsel %vm1371, %v1372, %v1370
  %v1374 = vrsqrt.pop %v1108
  %v1375 = vmul.f32 %v1374, %v1108
  %v1376 = vmul.f32 %v1375, %v1374
  %v1377 = vmul.f32 0.5, %v1376
  %v1378 = vsub.f32 1.5, %v1377
  %v1379 = vmul.f32 %v1374, %v1378
  %v1380 = vmul.f32 %v1108, %v1379
  %vm1381 = vcmp.eq.f32.partialorder %v1108, inf
  %v1382 = vsel %vm1381, %v1108, %v1380
  %vm1383 = vcmp.eq.f32.partialorder %v1108, 0.0
  %v1384 = vand.u32 %v1108, 2147483648
  %v1385 = vsel %vm1383, %v1384, %v1382
  %v1386 = vrsqrt.pop %v1109
  %v1387 = vmul.f32 %v1386, %v1109
  %v1388 = vmul.f32 %v1387, %v1386
  %v1389 = vmul.f32 0.5, %v1388
  %v1390 = vsub.f32 1.5, %v1389
  %v1391 = vmul.f32 %v1386, %v1390
  %v1392 = vmul.f32 %v1109, %v1391
  %vm1393 = vcmp.eq.f32.partialorder %v1109, inf
  %v1394 = vsel %vm1393, %v1109, %v1392
  %vm1395 = vcmp.eq.f32.partialorder %v1109, 0.0
  %v1396 = vand.u32 %v1109, 2147483648
  %v1397 = vsel %vm1395, %v1396, %v1394
  %v1398 = vpack.c.bf16 %v1121, %v1121
  %v1399 = vpack.c.bf16 %v1133, %v1133
  %v1400 = vpack.c.bf16 %v1145, %v1145
  %v1401 = vpack.c.bf16 %v1157, %v1157
  %v1402 = vpack.c.bf16 %v1169, %v1169
  %v1403 = vpack.c.bf16 %v1181, %v1181
  %v1404 = vpack.c.bf16 %v1193, %v1193
  %v1405 = vpack.c.bf16 %v1205, %v1205
  %v1406 = vpack.c.bf16 %v1217, %v1217
  %v1407 = vpack.c.bf16 %v1229, %v1229
  %v1408 = vpack.c.bf16 %v1241, %v1241
  %v1409 = vpack.c.bf16 %v1253, %v1253
  %v1410 = vpack.c.bf16 %v1265, %v1265
  %v1411 = vpack.c.bf16 %v1277, %v1277
  %v1412 = vpack.c.bf16 %v1289, %v1289
  %v1413 = vpack.c.bf16 %v1301, %v1301
  %v1414 = vpack.c.bf16 %v1313, %v1313
  %v1415 = vpack.c.bf16 %v1325, %v1325
  %v1416 = vpack.c.bf16 %v1337, %v1337
  %v1417 = vpack.c.bf16 %v1349, %v1349
  %v1418 = vpack.c.bf16 %v1361, %v1361
  %v1419 = vpack.c.bf16 %v1373, %v1373
  %v1420 = vpack.c.bf16 %v1385, %v1385
  %v1421 = vpack.c.bf16 %v1397, %v1397
  %v1422 = vld [vmem:[%s5] sm:$0xf]
  %v1423 = vld [vmem:[%s5 + $0x4] sm:$0xf]
  %v1426 = vunpack.c.l.b16 %v1422
  %v1427 = vunpack.c.l.b16 %v1423
  %v1428 = vpack.c.b16 %v1427, %v1426
  %v1431 = vsel %vm80, %v1398, 0
  %1433 = vmatpush.bf16.msra.mxu0 0
  %1434 = vmatpush.bf16.msra.mxu0 0
  %1435 = vmatpush.bf16.msra.mxu0 0
  %1436 = vmatpush.bf16.msra.mxu0 0
  %1437 = vmatpush.bf16.msra.mxu0 0
  %1438 = vmatpush.bf16.msra.mxu0 0
  %1439 = vmatpush.bf16.msra.mxu0 0
  %1440 = vmatpush.bf16.msra.mxu0 %v1428
  %1441 = vmatmul.bf16.gmra.mxu0 %v1431
  %v1442 = vpop.f32.mrf.mxu0
  %v1443 = vadd.f32 1e-06, %v1442
  %v1444 = vpop.f32.mrf.mxu0
  %1445 = vdwg.mxu0
  %v1447 = vsel %vm80, %v1399, 0
  %1449 = vmatpush.bf16.msra.mxu0 0
  %1450 = vmatpush.bf16.msra.mxu0 0
  %1451 = vmatpush.bf16.msra.mxu0 0
  %1452 = vmatpush.bf16.msra.mxu0 0
  %1453 = vmatpush.bf16.msra.mxu0 0
  %1454 = vmatpush.bf16.msra.mxu0 0
  %1455 = vmatpush.bf16.msra.mxu0 0
  %1456 = vmatpush.bf16.msra.mxu0 %v1428
  %1457 = vmatmul.bf16.gmra.mxu0 %v1447
  %v1458 = vpop.f32.mrf.mxu0
  %v1459 = vadd.f32 1e-06, %v1458
  %v1460 = vpop.f32.mrf.mxu0
  %1461 = vdwg.mxu0
  %v1463 = vsel %vm80, %v1400, 0
  %1465 = vmatpush.bf16.msra.mxu0 0
  %1466 = vmatpush.bf16.msra.mxu0 0
  %1467 = vmatpush.bf16.msra.mxu0 0
  %1468 = vmatpush.bf16.msra.mxu0 0
  %1469 = vmatpush.bf16.msra.mxu0 0
  %1470 = vmatpush.bf16.msra.mxu0 0
  %1471 = vmatpush.bf16.msra.mxu0 0
  %1472 = vmatpush.bf16.msra.mxu0 %v1428
  %1473 = vmatmul.bf16.gmra.mxu0 %v1463
  %v1474 = vpop.f32.mrf.mxu0
  %v1475 = vadd.f32 1e-06, %v1474
  %v1476 = vpop.f32.mrf.mxu0
  %1477 = vdwg.mxu0
  %v1479 = vsel %vm80, %v1401, 0
  %1481 = vmatpush.bf16.msra.mxu0 0
  %1482 = vmatpush.bf16.msra.mxu0 0
  %1483 = vmatpush.bf16.msra.mxu0 0
  %1484 = vmatpush.bf16.msra.mxu0 0
  %1485 = vmatpush.bf16.msra.mxu0 0
  %1486 = vmatpush.bf16.msra.mxu0 0
  %1487 = vmatpush.bf16.msra.mxu0 0
  %1488 = vmatpush.bf16.msra.mxu0 %v1428
  %1489 = vmatmul.bf16.gmra.mxu0 %v1479
  %v1490 = vpop.f32.mrf.mxu0
  %v1491 = vadd.f32 1e-06, %v1490
  %v1492 = vpop.f32.mrf.mxu0
  %1493 = vdwg.mxu0
  %v1495 = vsel %vm80, %v1402, 0
  %1497 = vmatpush.bf16.msra.mxu0 0
  %1498 = vmatpush.bf16.msra.mxu0 0
  %1499 = vmatpush.bf16.msra.mxu0 0
  %1500 = vmatpush.bf16.msra.mxu0 0
  %1501 = vmatpush.bf16.msra.mxu0 0
  %1502 = vmatpush.bf16.msra.mxu0 0
  %1503 = vmatpush.bf16.msra.mxu0 0
  %1504 = vmatpush.bf16.msra.mxu0 %v1428
  %1505 = vmatmul.bf16.gmra.mxu0 %v1495
  %v1506 = vpop.f32.mrf.mxu0
  %v1507 = vadd.f32 1e-06, %v1506
  %v1508 = vpop.f32.mrf.mxu0
  %1509 = vdwg.mxu0
  %v1511 = vsel %vm80, %v1403, 0
  %1513 = vmatpush.bf16.msra.mxu0 0
  %1514 = vmatpush.bf16.msra.mxu0 0
  %1515 = vmatpush.bf16.msra.mxu0 0
  %1516 = vmatpush.bf16.msra.mxu0 0
  %1517 = vmatpush.bf16.msra.mxu0 0
  %1518 = vmatpush.bf16.msra.mxu0 0
  %1519 = vmatpush.bf16.msra.mxu0 0
  %1520 = vmatpush.bf16.msra.mxu0 %v1428
  %1521 = vmatmul.bf16.gmra.mxu0 %v1511
  %v1522 = vpop.f32.mrf.mxu0
  %v1523 = vadd.f32 1e-06, %v1522
  %v1524 = vpop.f32.mrf.mxu0
  %1525 = vdwg.mxu0
  %v1527 = vsel %vm80, %v1404, 0
  %1529 = vmatpush.bf16.msra.mxu0 0
  %1530 = vmatpush.bf16.msra.mxu0 0
  %1531 = vmatpush.bf16.msra.mxu0 0
  %1532 = vmatpush.bf16.msra.mxu0 0
  %1533 = vmatpush.bf16.msra.mxu0 0
  %1534 = vmatpush.bf16.msra.mxu0 0
  %1535 = vmatpush.bf16.msra.mxu0 0
  %1536 = vmatpush.bf16.msra.mxu0 %v1428
  %1537 = vmatmul.bf16.gmra.mxu0 %v1527
  %v1538 = vpop.f32.mrf.mxu0
  %v1539 = vadd.f32 1e-06, %v1538
  %v1540 = vpop.f32.mrf.mxu0
  %1541 = vdwg.mxu0
  %v1543 = vsel %vm80, %v1405, 0
  %1545 = vmatpush.bf16.msra.mxu0 0
  %1546 = vmatpush.bf16.msra.mxu0 0
  %1547 = vmatpush.bf16.msra.mxu0 0
  %1548 = vmatpush.bf16.msra.mxu0 0
  %1549 = vmatpush.bf16.msra.mxu0 0
  %1550 = vmatpush.bf16.msra.mxu0 0
  %1551 = vmatpush.bf16.msra.mxu0 0
  %1552 = vmatpush.bf16.msra.mxu0 %v1428
  %1553 = vmatmul.bf16.gmra.mxu0 %v1543
  %v1554 = vpop.f32.mrf.mxu0
  %v1555 = vadd.f32 1e-06, %v1554
  %v1556 = vpop.f32.mrf.mxu0
  %1557 = vdwg.mxu0
  %v1559 = vsel %vm80, %v1406, 0
  %1561 = vmatpush.bf16.msra.mxu0 0
  %1562 = vmatpush.bf16.msra.mxu0 0
  %1563 = vmatpush.bf16.msra.mxu0 0
  %1564 = vmatpush.bf16.msra.mxu0 0
  %1565 = vmatpush.bf16.msra.mxu0 0
  %1566 = vmatpush.bf16.msra.mxu0 0
  %1567 = vmatpush.bf16.msra.mxu0 0
  %1568 = vmatpush.bf16.msra.mxu0 %v1428
  %1569 = vmatmul.bf16.gmra.mxu0 %v1559
  %v1570 = vpop.f32.mrf.mxu0
  %v1571 = vadd.f32 1e-06, %v1570
  %v1572 = vpop.f32.mrf.mxu0
  %1573 = vdwg.mxu0
  %v1575 = vsel %vm80, %v1407, 0
  %1577 = vmatpush.bf16.msra.mxu0 0
  %1578 = vmatpush.bf16.msra.mxu0 0
  %1579 = vmatpush.bf16.msra.mxu0 0
  %1580 = vmatpush.bf16.msra.mxu0 0
  %1581 = vmatpush.bf16.msra.mxu0 0
  %1582 = vmatpush.bf16.msra.mxu0 0
  %1583 = vmatpush.bf16.msra.mxu0 0
  %1584 = vmatpush.bf16.msra.mxu0 %v1428
  %1585 = vmatmul.bf16.gmra.mxu0 %v1575
  %v1586 = vpop.f32.mrf.mxu0
  %v1587 = vadd.f32 1e-06, %v1586
  %v1588 = vpop.f32.mrf.mxu0
  %1589 = vdwg.mxu0
  %v1591 = vsel %vm80, %v1408, 0
  %1593 = vmatpush.bf16.msra.mxu0 0
  %1594 = vmatpush.bf16.msra.mxu0 0
  %1595 = vmatpush.bf16.msra.mxu0 0
  %1596 = vmatpush.bf16.msra.mxu0 0
  %1597 = vmatpush.bf16.msra.mxu0 0
  %1598 = vmatpush.bf16.msra.mxu0 0
  %1599 = vmatpush.bf16.msra.mxu0 0
  %1600 = vmatpush.bf16.msra.mxu0 %v1428
  %1601 = vmatmul.bf16.gmra.mxu0 %v1591
  %v1602 = vpop.f32.mrf.mxu0
  %v1603 = vadd.f32 1e-06, %v1602
  %v1604 = vpop.f32.mrf.mxu0
  %1605 = vdwg.mxu0
  %v1607 = vsel %vm80, %v1409, 0
  %1609 = vmatpush.bf16.msra.mxu0 0
  %1610 = vmatpush.bf16.msra.mxu0 0
  %1611 = vmatpush.bf16.msra.mxu0 0
  %1612 = vmatpush.bf16.msra.mxu0 0
  %1613 = vmatpush.bf16.msra.mxu0 0
  %1614 = vmatpush.bf16.msra.mxu0 0
  %1615 = vmatpush.bf16.msra.mxu0 0
  %1616 = vmatpush.bf16.msra.mxu0 %v1428
  %1617 = vmatmul.bf16.gmra.mxu0 %v1607
  %v1618 = vpop.f32.mrf.mxu0
  %v1619 = vadd.f32 1e-06, %v1618
  %v1620 = vpop.f32.mrf.mxu0
  %1621 = vdwg.mxu0
  %v1623 = vsel %vm80, %v1410, 0
  %1625 = vmatpush.bf16.msra.mxu0 0
  %1626 = vmatpush.bf16.msra.mxu0 0
  %1627 = vmatpush.bf16.msra.mxu0 0
  %1628 = vmatpush.bf16.msra.mxu0 0
  %1629 = vmatpush.bf16.msra.mxu0 0
  %1630 = vmatpush.bf16.msra.mxu0 0
  %1631 = vmatpush.bf16.msra.mxu0 0
  %1632 = vmatpush.bf16.msra.mxu0 %v1428
  %1633 = vmatmul.bf16.gmra.mxu0 %v1623
  %v1634 = vpop.f32.mrf.mxu0
  %v1635 = vadd.f32 1e-06, %v1634
  %v1636 = vpop.f32.mrf.mxu0
  %1637 = vdwg.mxu0
  %v1639 = vsel %vm80, %v1411, 0
  %1641 = vmatpush.bf16.msra.mxu0 0
  %1642 = vmatpush.bf16.msra.mxu0 0
  %1643 = vmatpush.bf16.msra.mxu0 0
  %1644 = vmatpush.bf16.msra.mxu0 0
  %1645 = vmatpush.bf16.msra.mxu0 0
  %1646 = vmatpush.bf16.msra.mxu0 0
  %1647 = vmatpush.bf16.msra.mxu0 0
  %1648 = vmatpush.bf16.msra.mxu0 %v1428
  %1649 = vmatmul.bf16.gmra.mxu0 %v1639
  %v1650 = vpop.f32.mrf.mxu0
  %v1651 = vadd.f32 1e-06, %v1650
  %v1652 = vpop.f32.mrf.mxu0
  %1653 = vdwg.mxu0
  %v1655 = vsel %vm80, %v1412, 0
  %1657 = vmatpush.bf16.msra.mxu0 0
  %1658 = vmatpush.bf16.msra.mxu0 0
  %1659 = vmatpush.bf16.msra.mxu0 0
  %1660 = vmatpush.bf16.msra.mxu0 0
  %1661 = vmatpush.bf16.msra.mxu0 0
  %1662 = vmatpush.bf16.msra.mxu0 0
  %1663 = vmatpush.bf16.msra.mxu0 0
  %1664 = vmatpush.bf16.msra.mxu0 %v1428
  %1665 = vmatmul.bf16.gmra.mxu0 %v1655
  %v1666 = vpop.f32.mrf.mxu0
  %v1667 = vadd.f32 1e-06, %v1666
  %v1668 = vpop.f32.mrf.mxu0
  %1669 = vdwg.mxu0
  %v1671 = vsel %vm80, %v1413, 0
  %1673 = vmatpush.bf16.msra.mxu0 0
  %1674 = vmatpush.bf16.msra.mxu0 0
  %1675 = vmatpush.bf16.msra.mxu0 0
  %1676 = vmatpush.bf16.msra.mxu0 0
  %1677 = vmatpush.bf16.msra.mxu0 0
  %1678 = vmatpush.bf16.msra.mxu0 0
  %1679 = vmatpush.bf16.msra.mxu0 0
  %1680 = vmatpush.bf16.msra.mxu0 %v1428
  %1681 = vmatmul.bf16.gmra.mxu0 %v1671
  %v1682 = vpop.f32.mrf.mxu0
  %v1683 = vadd.f32 1e-06, %v1682
  %v1684 = vpop.f32.mrf.mxu0
  %1685 = vdwg.mxu0
  %v1687 = vsel %vm80, %v1414, 0
  %1689 = vmatpush.bf16.msra.mxu0 0
  %1690 = vmatpush.bf16.msra.mxu0 0
  %1691 = vmatpush.bf16.msra.mxu0 0
  %1692 = vmatpush.bf16.msra.mxu0 0
  %1693 = vmatpush.bf16.msra.mxu0 0
  %1694 = vmatpush.bf16.msra.mxu0 0
  %1695 = vmatpush.bf16.msra.mxu0 0
  %1696 = vmatpush.bf16.msra.mxu0 %v1428
  %1697 = vmatmul.bf16.gmra.mxu0 %v1687
  %v1698 = vpop.f32.mrf.mxu0
  %v1699 = vadd.f32 1e-06, %v1698
  %v1700 = vpop.f32.mrf.mxu0
  %1701 = vdwg.mxu0
  %v1703 = vsel %vm80, %v1415, 0
  %1705 = vmatpush.bf16.msra.mxu0 0
  %1706 = vmatpush.bf16.msra.mxu0 0
  %1707 = vmatpush.bf16.msra.mxu0 0
  %1708 = vmatpush.bf16.msra.mxu0 0
  %1709 = vmatpush.bf16.msra.mxu0 0
  %1710 = vmatpush.bf16.msra.mxu0 0
  %1711 = vmatpush.bf16.msra.mxu0 0
  %1712 = vmatpush.bf16.msra.mxu0 %v1428
  %1713 = vmatmul.bf16.gmra.mxu0 %v1703
  %v1714 = vpop.f32.mrf.mxu0
  %v1715 = vadd.f32 1e-06, %v1714
  %v1716 = vpop.f32.mrf.mxu0
  %1717 = vdwg.mxu0
  %v1719 = vsel %vm80, %v1416, 0
  %1721 = vmatpush.bf16.msra.mxu0 0
  %1722 = vmatpush.bf16.msra.mxu0 0
  %1723 = vmatpush.bf16.msra.mxu0 0
  %1724 = vmatpush.bf16.msra.mxu0 0
  %1725 = vmatpush.bf16.msra.mxu0 0
  %1726 = vmatpush.bf16.msra.mxu0 0
  %1727 = vmatpush.bf16.msra.mxu0 0
  %1728 = vmatpush.bf16.msra.mxu0 %v1428
  %1729 = vmatmul.bf16.gmra.mxu0 %v1719
  %v1730 = vpop.f32.mrf.mxu0
  %v1731 = vadd.f32 1e-06, %v1730
  %v1732 = vpop.f32.mrf.mxu0
  %1733 = vdwg.mxu0
  %v1735 = vsel %vm80, %v1417, 0
  %1737 = vmatpush.bf16.msra.mxu0 0
  %1738 = vmatpush.bf16.msra.mxu0 0
  %1739 = vmatpush.bf16.msra.mxu0 0
  %1740 = vmatpush.bf16.msra.mxu0 0
  %1741 = vmatpush.bf16.msra.mxu0 0
  %1742 = vmatpush.bf16.msra.mxu0 0
  %1743 = vmatpush.bf16.msra.mxu0 0
  %1744 = vmatpush.bf16.msra.mxu0 %v1428
  %1745 = vmatmul.bf16.gmra.mxu0 %v1735
  %v1746 = vpop.f32.mrf.mxu0
  %v1747 = vadd.f32 1e-06, %v1746
  %v1748 = vpop.f32.mrf.mxu0
  %1749 = vdwg.mxu0
  %v1751 = vsel %vm80, %v1418, 0
  %1753 = vmatpush.bf16.msra.mxu0 0
  %1754 = vmatpush.bf16.msra.mxu0 0
  %1755 = vmatpush.bf16.msra.mxu0 0
  %1756 = vmatpush.bf16.msra.mxu0 0
  %1757 = vmatpush.bf16.msra.mxu0 0
  %1758 = vmatpush.bf16.msra.mxu0 0
  %1759 = vmatpush.bf16.msra.mxu0 0
  %1760 = vmatpush.bf16.msra.mxu0 %v1428
  %1761 = vmatmul.bf16.gmra.mxu0 %v1751
  %v1762 = vpop.f32.mrf.mxu0
  %v1763 = vadd.f32 1e-06, %v1762
  %v1764 = vpop.f32.mrf.mxu0
  %1765 = vdwg.mxu0
  %v1767 = vsel %vm80, %v1419, 0
  %1769 = vmatpush.bf16.msra.mxu0 0
  %1770 = vmatpush.bf16.msra.mxu0 0
  %1771 = vmatpush.bf16.msra.mxu0 0
  %1772 = vmatpush.bf16.msra.mxu0 0
  %1773 = vmatpush.bf16.msra.mxu0 0
  %1774 = vmatpush.bf16.msra.mxu0 0
  %1775 = vmatpush.bf16.msra.mxu0 0
  %1776 = vmatpush.bf16.msra.mxu0 %v1428
  %1777 = vmatmul.bf16.gmra.mxu0 %v1767
  %v1778 = vpop.f32.mrf.mxu0
  %v1779 = vadd.f32 1e-06, %v1778
  %v1780 = vpop.f32.mrf.mxu0
  %1781 = vdwg.mxu0
  %v1783 = vsel %vm80, %v1420, 0
  %1785 = vmatpush.bf16.msra.mxu0 0
  %1786 = vmatpush.bf16.msra.mxu0 0
  %1787 = vmatpush.bf16.msra.mxu0 0
  %1788 = vmatpush.bf16.msra.mxu0 0
  %1789 = vmatpush.bf16.msra.mxu0 0
  %1790 = vmatpush.bf16.msra.mxu0 0
  %1791 = vmatpush.bf16.msra.mxu0 0
  %1792 = vmatpush.bf16.msra.mxu0 %v1428
  %1793 = vmatmul.bf16.gmra.mxu0 %v1783
  %v1794 = vpop.f32.mrf.mxu0
  %v1795 = vadd.f32 1e-06, %v1794
  %v1796 = vpop.f32.mrf.mxu0
  %1797 = vdwg.mxu0
  %v1799 = vsel %vm80, %v1421, 0
  %1801 = vmatpush.bf16.msra.mxu0 0
  %1802 = vmatpush.bf16.msra.mxu0 0
  %1803 = vmatpush.bf16.msra.mxu0 0
  %1804 = vmatpush.bf16.msra.mxu0 0
  %1805 = vmatpush.bf16.msra.mxu0 0
  %1806 = vmatpush.bf16.msra.mxu0 0
  %1807 = vmatpush.bf16.msra.mxu0 0
  %1808 = vmatpush.bf16.msra.mxu0 %v1428
  %1809 = vmatmul.bf16.gmra.mxu0 %v1799
  %v1810 = vpop.f32.mrf.mxu0
  %v1811 = vadd.f32 1e-06, %v1810
  %v1812 = vpop.f32.mrf.mxu0
  %1813 = vdwg.mxu0
  %v1814 = vlog2.pop %v1443
  %v1815 = vmul.f32 %v1814, 0.6931472
  %v1816 = vlog2.pop %v1459
  %v1817 = vmul.f32 %v1816, 0.6931472
  %v1818 = vlog2.pop %v1475
  %v1819 = vmul.f32 %v1818, 0.6931472
  %v1820 = vlog2.pop %v1491
  %v1821 = vmul.f32 %v1820, 0.6931472
  %v1822 = vlog2.pop %v1507
  %v1823 = vmul.f32 %v1822, 0.6931472
  %v1824 = vlog2.pop %v1523
  %v1825 = vmul.f32 %v1824, 0.6931472
  %v1826 = vlog2.pop %v1539
  %v1827 = vmul.f32 %v1826, 0.6931472
  %v1828 = vlog2.pop %v1555
  %v1829 = vmul.f32 %v1828, 0.6931472
  %v1830 = vlog2.pop %v1571
  %v1831 = vmul.f32 %v1830, 0.6931472
  %v1832 = vlog2.pop %v1587
  %v1833 = vmul.f32 %v1832, 0.6931472
  %v1834 = vlog2.pop %v1603
  %v1835 = vmul.f32 %v1834, 0.6931472
  %v1836 = vlog2.pop %v1619
  %v1837 = vmul.f32 %v1836, 0.6931472
  %v1838 = vlog2.pop %v1635
  %v1839 = vmul.f32 %v1838, 0.6931472
  %v1840 = vlog2.pop %v1651
  %v1841 = vmul.f32 %v1840, 0.6931472
  %v1842 = vlog2.pop %v1667
  %v1843 = vmul.f32 %v1842, 0.6931472
  %v1844 = vlog2.pop %v1683
  %v1845 = vmul.f32 %v1844, 0.6931472
  %v1846 = vlog2.pop %v1699
  %v1847 = vmul.f32 %v1846, 0.6931472
  %v1848 = vlog2.pop %v1715
  %v1849 = vmul.f32 %v1848, 0.6931472
  %v1850 = vlog2.pop %v1731
  %v1851 = vmul.f32 %v1850, 0.6931472
  %v1852 = vlog2.pop %v1747
  %v1853 = vmul.f32 %v1852, 0.6931472
  %v1854 = vlog2.pop %v1763
  %v1855 = vmul.f32 %v1854, 0.6931472
  %v1856 = vlog2.pop %v1779
  %v1857 = vmul.f32 %v1856, 0.6931472
  %v1858 = vlog2.pop %v1795
  %v1859 = vmul.f32 %v1858, 0.6931472
  %v1860 = vlog2.pop %v1811
  %v1861 = vmul.f32 %v1860, 0.6931472
  %vm1862 = vcmask 15360
  %v1863 = vsel %vm1862, %v1815, 0.0
  %1864 = vadd.xlane.f32.xlu0 %v1863
  %v1865 = vpop.xlane.xlu0 %1864
  %v1866 = vsel %vm1862, %v1817, 0.0
  %1867 = vadd.xlane.f32.xlu0 %v1866
  %v1868 = vpop.xlane.xlu0 %1867
  %v1869 = vsel %vm1862, %v1819, 0.0
  %1870 = vadd.xlane.f32.xlu0 %v1869
  %v1871 = vpop.xlane.xlu0 %1870
  %v1872 = vsel %vm1862, %v1821, 0.0
  %1873 = vadd.xlane.f32.xlu0 %v1872
  %v1874 = vpop.xlane.xlu0 %1873
  %v1875 = vsel %vm1862, %v1823, 0.0
  %1876 = vadd.xlane.f32.xlu0 %v1875
  %v1877 = vpop.xlane.xlu0 %1876
  %v1878 = vsel %vm1862, %v1825, 0.0
  %1879 = vadd.xlane.f32.xlu0 %v1878
  %v1880 = vpop.xlane.xlu0 %1879
  %v1881 = vsel %vm1862, %v1827, 0.0
  %1882 = vadd.xlane.f32.xlu0 %v1881
  %v1883 = vpop.xlane.xlu0 %1882
  %v1884 = vsel %vm1862, %v1829, 0.0
  %1885 = vadd.xlane.f32.xlu0 %v1884
  %v1886 = vpop.xlane.xlu0 %1885
  %v1887 = vsel %vm1862, %v1831, 0.0
  %1888 = vadd.xlane.f32.xlu0 %v1887
  %v1889 = vpop.xlane.xlu0 %1888
  %v1890 = vsel %vm1862, %v1833, 0.0
  %1891 = vadd.xlane.f32.xlu0 %v1890
  %v1892 = vpop.xlane.xlu0 %1891
  %v1893 = vsel %vm1862, %v1835, 0.0
  %1894 = vadd.xlane.f32.xlu0 %v1893
  %v1895 = vpop.xlane.xlu0 %1894
  %v1896 = vsel %vm1862, %v1837, 0.0
  %1897 = vadd.xlane.f32.xlu0 %v1896
  %v1898 = vpop.xlane.xlu0 %1897
  %v1899 = vsel %vm1862, %v1839, 0.0
  %1900 = vadd.xlane.f32.xlu0 %v1899
  %v1901 = vpop.xlane.xlu0 %1900
  %v1902 = vsel %vm1862, %v1841, 0.0
  %1903 = vadd.xlane.f32.xlu0 %v1902
  %v1904 = vpop.xlane.xlu0 %1903
  %v1905 = vsel %vm1862, %v1843, 0.0
  %1906 = vadd.xlane.f32.xlu0 %v1905
  %v1907 = vpop.xlane.xlu0 %1906
  %v1908 = vsel %vm1862, %v1845, 0.0
  %1909 = vadd.xlane.f32.xlu0 %v1908
  %v1910 = vpop.xlane.xlu0 %1909
  %v1911 = vsel %vm1862, %v1847, 0.0
  %1912 = vadd.xlane.f32.xlu0 %v1911
  %v1913 = vpop.xlane.xlu0 %1912
  %v1914 = vsel %vm1862, %v1849, 0.0
  %1915 = vadd.xlane.f32.xlu0 %v1914
  %v1916 = vpop.xlane.xlu0 %1915
  %v1917 = vsel %vm1862, %v1851, 0.0
  %1918 = vadd.xlane.f32.xlu0 %v1917
  %v1919 = vpop.xlane.xlu0 %1918
  %v1920 = vsel %vm1862, %v1853, 0.0
  %1921 = vadd.xlane.f32.xlu0 %v1920
  %v1922 = vpop.xlane.xlu0 %1921
  %v1923 = vsel %vm1862, %v1855, 0.0
  %1924 = vadd.xlane.f32.xlu0 %v1923
  %v1925 = vpop.xlane.xlu0 %1924
  %v1926 = vsel %vm1862, %v1857, 0.0
  %1927 = vadd.xlane.f32.xlu0 %v1926
  %v1928 = vpop.xlane.xlu0 %1927
  %v1929 = vsel %vm1862, %v1859, 0.0
  %1930 = vadd.xlane.f32.xlu0 %v1929
  %v1931 = vpop.xlane.xlu0 %1930
  %v1932 = vsel %vm1862, %v1861, 0.0
  %1933 = vadd.xlane.f32.xlu0 %v1932
  %v1934 = vpop.xlane.xlu0 %1933
  %v1935 = vrcp.pop 2.0
  %v1936 = vmul.f32 2.0, %v1935
  %v1937 = vsub.f32 1.0, %v1936
  %v1938 = vmul.f32 %v1935, %v1937
  %v1939 = vadd.f32 %v1935, %v1938
  %vm1940 = vweird.f32 %v1935
  %v1941 = vsel %vm1940, %v1935, %v1939
  %v1942 = vmul.f32 %v1865, %v1941
  %v1943 = vmul.f32 %v1868, %v1941
  %v1944 = vmul.f32 %v1871, %v1941
  %v1945 = vmul.f32 %v1874, %v1941
  %v1946 = vmul.f32 %v1877, %v1941
  %v1947 = vmul.f32 %v1880, %v1941
  %v1948 = vmul.f32 %v1883, %v1941
  %v1949 = vmul.f32 %v1886, %v1941
  %v1950 = vmul.f32 %v1889, %v1941
  %v1951 = vmul.f32 %v1892, %v1941
  %v1952 = vmul.f32 %v1895, %v1941
  %v1953 = vmul.f32 %v1898, %v1941
  %v1954 = vmul.f32 %v1901, %v1941
  %v1955 = vmul.f32 %v1904, %v1941
  %v1956 = vmul.f32 %v1907, %v1941
  %v1957 = vmul.f32 %v1910, %v1941
  %v1958 = vmul.f32 %v1913, %v1941
  %v1959 = vmul.f32 %v1916, %v1941
  %v1960 = vmul.f32 %v1919, %v1941
  %v1961 = vmul.f32 %v1922, %v1941
  %v1962 = vmul.f32 %v1925, %v1941
  %v1963 = vmul.f32 %v1928, %v1941
  %v1964 = vmul.f32 %v1931, %v1941
  %v1965 = vmul.f32 %v1934, %v1941
  %v1990 = vlaneseq
  %v1991 = vand.u32 %v1990, 127
  %v1992 = vperm.slane %v1942, %v1991
  %v1993 = vperm.slane %v1943, %v1991
  %v1994 = vperm.slane %v1944, %v1991
  %v1995 = vperm.slane %v1945, %v1991
  %v1996 = vperm.slane %v1946, %v1991
  %v1997 = vperm.slane %v1947, %v1991
  %v1998 = vperm.slane %v1948, %v1991
  %v1999 = vperm.slane %v1949, %v1991
  %v2000 = vperm.slane %v1950, %v1991
  %v2001 = vperm.slane %v1951, %v1991
  %v2002 = vperm.slane %v1952, %v1991
  %v2003 = vperm.slane %v1953, %v1991
  %v2004 = vperm.slane %v1954, %v1991
  %v2005 = vperm.slane %v1955, %v1991
  %v2006 = vperm.slane %v1956, %v1991
  %v2007 = vperm.slane %v1957, %v1991
  %v2008 = vperm.slane %v1958, %v1991
  %v2009 = vperm.slane %v1959, %v1991
  %v2010 = vperm.slane %v1960, %v1991
  %v2011 = vperm.slane %v1961, %v1991
  %v2012 = vperm.slane %v1962, %v1991
  %v2013 = vperm.slane %v1963, %v1991
  %v2014 = vperm.slane %v1964, %v1991
  %v2015 = vperm.slane %v1965, %v1991
  %vm2016 = vcmask 1041409
  %v2017 = vsel %vm2016, %v1993, %v1992
  %vm2018 = vcmask 1042434
  %v2019 = vsel %vm2018, %v1994, %v2017
  %vm2020 = vcmask 1043459
  %v2021 = vsel %vm2020, %v1995, %v2019
  %vm2022 = vcmask 1044484
  %v2023 = vsel %vm2022, %v1996, %v2021
  %vm2024 = vcmask 1045509
  %v2025 = vsel %vm2024, %v1997, %v2023
  %vm2026 = vcmask 1046534
  %v2027 = vsel %vm2026, %v1998, %v2025
  %vm2028 = vcmask 1047559
  %v2029 = vsel %vm2028, %v1999, %v2027
  %v2030 = vsel %vm2016, %v2001, %v2000
  %v2031 = vsel %vm2018, %v2002, %v2030
  %v2032 = vsel %vm2020, %v2003, %v2031
  %v2033 = vsel %vm2022, %v2004, %v2032
  %v2034 = vsel %vm2024, %v2005, %v2033
  %v2035 = vsel %vm2026, %v2006, %v2034
  %v2036 = vsel %vm2028, %v2007, %v2035
  %v2037 = vsel %vm2016, %v2009, %v2008
  %v2038 = vsel %vm2018, %v2010, %v2037
  %v2039 = vsel %vm2020, %v2011, %v2038
  %v2040 = vsel %vm2022, %v2012, %v2039
  %v2041 = vsel %vm2024, %v2013, %v2040
  %v2042 = vsel %vm2026, %v2014, %v2041
  %v2043 = vsel %vm2028, %v2015, %v2042
  %vm2047 = vcmask 64512
  %2048 = vst.msk [vmem:[%s6] sm:$0xff] %vm2047, %v2029
  %2049 = vst.msk [vmem:[%s6 + $0x8] sm:$0xff] %vm2047, %v2036
  %2050 = vst.msk [vmem:[%s6 + $0x10] sm:$0xff] %vm2047, %v2043
  %v2051 = vld [vmem:[%s3] sm:$0xf]
  %v2052 = vld [vmem:[%s3 + $0x4] sm:$0xf]
  %v2053 = vld [vmem:[%s4] sm:$0xf]
  %v2054 = vld [vmem:[%s4 + $0x4] sm:$0xf]
  %v2057 = vunpack.c.l.b16 %v2051
  %v2058 = vunpack.c.l.b16 %v2052
  %v2059 = vpack.c.b16 %v2058, %v2057
  %2061 = vmatpush.bf16.msra.mxu0 0
  %2062 = vmatpush.bf16.msra.mxu0 0
  %2063 = vmatpush.bf16.msra.mxu0 0
  %2064 = vmatpush.bf16.msra.mxu0 0
  %2065 = vmatpush.bf16.msra.mxu0 0
  %2066 = vmatpush.bf16.msra.mxu0 0
  %2067 = vmatpush.bf16.msra.mxu0 0
  %2068 = vmatpush.bf16.msra.mxu0 %v2059
  %2069 = vmatmul.bf16.gmra.mxu0 %v1431
  %v2070 = vpop.f32.mrf.mxu0
  %v2071 = vadd.f32 0.0, %v2070
  %v2072 = vpop.f32.mrf.mxu0
  %2073 = vdwg.mxu0
  %2074 = vmatpush.bf16.msra.mxu0 0
  %2075 = vmatpush.bf16.msra.mxu0 0
  %2076 = vmatpush.bf16.msra.mxu0 0
  %2077 = vmatpush.bf16.msra.mxu0 0
  %2078 = vmatpush.bf16.msra.mxu0 0
  %2079 = vmatpush.bf16.msra.mxu0 0
  %2080 = vmatpush.bf16.msra.mxu0 0
  %2081 = vmatpush.bf16.msra.mxu0 %v2059
  %2082 = vmatmul.bf16.gmra.mxu0 %v1447
  %v2083 = vpop.f32.mrf.mxu0
  %v2084 = vadd.f32 0.0, %v2083
  %v2085 = vpop.f32.mrf.mxu0
  %2086 = vdwg.mxu0
  %2087 = vmatpush.bf16.msra.mxu0 0
  %2088 = vmatpush.bf16.msra.mxu0 0
  %2089 = vmatpush.bf16.msra.mxu0 0
  %2090 = vmatpush.bf16.msra.mxu0 0
  %2091 = vmatpush.bf16.msra.mxu0 0
  %2092 = vmatpush.bf16.msra.mxu0 0
  %2093 = vmatpush.bf16.msra.mxu0 0
  %2094 = vmatpush.bf16.msra.mxu0 %v2059
  %2095 = vmatmul.bf16.gmra.mxu0 %v1463
  %v2096 = vpop.f32.mrf.mxu0
  %v2097 = vadd.f32 0.0, %v2096
  %v2098 = vpop.f32.mrf.mxu0
  %2099 = vdwg.mxu0
  %2100 = vmatpush.bf16.msra.mxu0 0
  %2101 = vmatpush.bf16.msra.mxu0 0
  %2102 = vmatpush.bf16.msra.mxu0 0
  %2103 = vmatpush.bf16.msra.mxu0 0
  %2104 = vmatpush.bf16.msra.mxu0 0
  %2105 = vmatpush.bf16.msra.mxu0 0
  %2106 = vmatpush.bf16.msra.mxu0 0
  %2107 = vmatpush.bf16.msra.mxu0 %v2059
  %2108 = vmatmul.bf16.gmra.mxu0 %v1479
  %v2109 = vpop.f32.mrf.mxu0
  %v2110 = vadd.f32 0.0, %v2109
  %v2111 = vpop.f32.mrf.mxu0
  %2112 = vdwg.mxu0
  %2113 = vmatpush.bf16.msra.mxu0 0
  %2114 = vmatpush.bf16.msra.mxu0 0
  %2115 = vmatpush.bf16.msra.mxu0 0
  %2116 = vmatpush.bf16.msra.mxu0 0
  %2117 = vmatpush.bf16.msra.mxu0 0
  %2118 = vmatpush.bf16.msra.mxu0 0
  %2119 = vmatpush.bf16.msra.mxu0 0
  %2120 = vmatpush.bf16.msra.mxu0 %v2059
  %2121 = vmatmul.bf16.gmra.mxu0 %v1495
  %v2122 = vpop.f32.mrf.mxu0
  %v2123 = vadd.f32 0.0, %v2122
  %v2124 = vpop.f32.mrf.mxu0
  %2125 = vdwg.mxu0
  %2126 = vmatpush.bf16.msra.mxu0 0
  %2127 = vmatpush.bf16.msra.mxu0 0
  %2128 = vmatpush.bf16.msra.mxu0 0
  %2129 = vmatpush.bf16.msra.mxu0 0
  %2130 = vmatpush.bf16.msra.mxu0 0
  %2131 = vmatpush.bf16.msra.mxu0 0
  %2132 = vmatpush.bf16.msra.mxu0 0
  %2133 = vmatpush.bf16.msra.mxu0 %v2059
  %2134 = vmatmul.bf16.gmra.mxu0 %v1511
  %v2135 = vpop.f32.mrf.mxu0
  %v2136 = vadd.f32 0.0, %v2135
  %v2137 = vpop.f32.mrf.mxu0
  %2138 = vdwg.mxu0
  %2139 = vmatpush.bf16.msra.mxu0 0
  %2140 = vmatpush.bf16.msra.mxu0 0
  %2141 = vmatpush.bf16.msra.mxu0 0
  %2142 = vmatpush.bf16.msra.mxu0 0
  %2143 = vmatpush.bf16.msra.mxu0 0
  %2144 = vmatpush.bf16.msra.mxu0 0
  %2145 = vmatpush.bf16.msra.mxu0 0
  %2146 = vmatpush.bf16.msra.mxu0 %v2059
  %2147 = vmatmul.bf16.gmra.mxu0 %v1527
  %v2148 = vpop.f32.mrf.mxu0
  %v2149 = vadd.f32 0.0, %v2148
  %v2150 = vpop.f32.mrf.mxu0
  %2151 = vdwg.mxu0
  %2152 = vmatpush.bf16.msra.mxu0 0
  %2153 = vmatpush.bf16.msra.mxu0 0
  %2154 = vmatpush.bf16.msra.mxu0 0
  %2155 = vmatpush.bf16.msra.mxu0 0
  %2156 = vmatpush.bf16.msra.mxu0 0
  %2157 = vmatpush.bf16.msra.mxu0 0
  %2158 = vmatpush.bf16.msra.mxu0 0
  %2159 = vmatpush.bf16.msra.mxu0 %v2059
  %2160 = vmatmul.bf16.gmra.mxu0 %v1543
  %v2161 = vpop.f32.mrf.mxu0
  %v2162 = vadd.f32 0.0, %v2161
  %v2163 = vpop.f32.mrf.mxu0
  %2164 = vdwg.mxu0
  %v2167 = vunpack.c.l.b16 %v2053
  %v2168 = vunpack.c.l.b16 %v2054
  %v2169 = vpack.c.b16 %v2168, %v2167
  %2171 = vmatpush.bf16.msra.mxu0 0
  %2172 = vmatpush.bf16.msra.mxu0 0
  %2173 = vmatpush.bf16.msra.mxu0 0
  %2174 = vmatpush.bf16.msra.mxu0 0
  %2175 = vmatpush.bf16.msra.mxu0 0
  %2176 = vmatpush.bf16.msra.mxu0 0
  %2177 = vmatpush.bf16.msra.mxu0 0
  %2178 = vmatpush.bf16.msra.mxu0 %v2169
  %2179 = vmatmul.bf16.gmra.mxu0 %v1431
  %v2180 = vpop.f32.mrf.mxu0
  %v2181 = vadd.f32 0.0, %v2180
  %v2182 = vpop.f32.mrf.mxu0
  %2183 = vdwg.mxu0
  %2184 = vmatpush.bf16.msra.mxu0 0
  %2185 = vmatpush.bf16.msra.mxu0 0
  %2186 = vmatpush.bf16.msra.mxu0 0
  %2187 = vmatpush.bf16.msra.mxu0 0
  %2188 = vmatpush.bf16.msra.mxu0 0
  %2189 = vmatpush.bf16.msra.mxu0 0
  %2190 = vmatpush.bf16.msra.mxu0 0
  %2191 = vmatpush.bf16.msra.mxu0 %v2169
  %2192 = vmatmul.bf16.gmra.mxu0 %v1447
  %v2193 = vpop.f32.mrf.mxu0
  %v2194 = vadd.f32 0.0, %v2193
  %v2195 = vpop.f32.mrf.mxu0
  %2196 = vdwg.mxu0
  %2197 = vmatpush.bf16.msra.mxu0 0
  %2198 = vmatpush.bf16.msra.mxu0 0
  %2199 = vmatpush.bf16.msra.mxu0 0
  %2200 = vmatpush.bf16.msra.mxu0 0
  %2201 = vmatpush.bf16.msra.mxu0 0
  %2202 = vmatpush.bf16.msra.mxu0 0
  %2203 = vmatpush.bf16.msra.mxu0 0
  %2204 = vmatpush.bf16.msra.mxu0 %v2169
  %2205 = vmatmul.bf16.gmra.mxu0 %v1463
  %v2206 = vpop.f32.mrf.mxu0
  %v2207 = vadd.f32 0.0, %v2206
  %v2208 = vpop.f32.mrf.mxu0
  %2209 = vdwg.mxu0
  %2210 = vmatpush.bf16.msra.mxu0 0
  %2211 = vmatpush.bf16.msra.mxu0 0
  %2212 = vmatpush.bf16.msra.mxu0 0
  %2213 = vmatpush.bf16.msra.mxu0 0
  %2214 = vmatpush.bf16.msra.mxu0 0
  %2215 = vmatpush.bf16.msra.mxu0 0
  %2216 = vmatpush.bf16.msra.mxu0 0
  %2217 = vmatpush.bf16.msra.mxu0 %v2169
  %2218 = vmatmul.bf16.gmra.mxu0 %v1479
  %v2219 = vpop.f32.mrf.mxu0
  %v2220 = vadd.f32 0.0, %v2219
  %v2221 = vpop.f32.mrf.mxu0
  %2222 = vdwg.mxu0
  %2223 = vmatpush.bf16.msra.mxu0 0
  %2224 = vmatpush.bf16.msra.mxu0 0
  %2225 = vmatpush.bf16.msra.mxu0 0
  %2226 = vmatpush.bf16.msra.mxu0 0
  %2227 = vmatpush.bf16.msra.mxu0 0
  %2228 = vmatpush.bf16.msra.mxu0 0
  %2229 = vmatpush.bf16.msra.mxu0 0
  %2230 = vmatpush.bf16.msra.mxu0 %v2169
  %2231 = vmatmul.bf16.gmra.mxu0 %v1495
  %v2232 = vpop.f32.mrf.mxu0
  %v2233 = vadd.f32 0.0, %v2232
  %v2234 = vpop.f32.mrf.mxu0
  %2235 = vdwg.mxu0
  %2236 = vmatpush.bf16.msra.mxu0 0
  %2237 = vmatpush.bf16.msra.mxu0 0
  %2238 = vmatpush.bf16.msra.mxu0 0
  %2239 = vmatpush.bf16.msra.mxu0 0
  %2240 = vmatpush.bf16.msra.mxu0 0
  %2241 = vmatpush.bf16.msra.mxu0 0
  %2242 = vmatpush.bf16.msra.mxu0 0
  %2243 = vmatpush.bf16.msra.mxu0 %v2169
  %2244 = vmatmul.bf16.gmra.mxu0 %v1511
  %v2245 = vpop.f32.mrf.mxu0
  %v2246 = vadd.f32 0.0, %v2245
  %v2247 = vpop.f32.mrf.mxu0
  %2248 = vdwg.mxu0
  %2249 = vmatpush.bf16.msra.mxu0 0
  %2250 = vmatpush.bf16.msra.mxu0 0
  %2251 = vmatpush.bf16.msra.mxu0 0
  %2252 = vmatpush.bf16.msra.mxu0 0
  %2253 = vmatpush.bf16.msra.mxu0 0
  %2254 = vmatpush.bf16.msra.mxu0 0
  %2255 = vmatpush.bf16.msra.mxu0 0
  %2256 = vmatpush.bf16.msra.mxu0 %v2169
  %2257 = vmatmul.bf16.gmra.mxu0 %v1527
  %v2258 = vpop.f32.mrf.mxu0
  %v2259 = vadd.f32 0.0, %v2258
  %v2260 = vpop.f32.mrf.mxu0
  %2261 = vdwg.mxu0
  %2262 = vmatpush.bf16.msra.mxu0 0
  %2263 = vmatpush.bf16.msra.mxu0 0
  %2264 = vmatpush.bf16.msra.mxu0 0
  %2265 = vmatpush.bf16.msra.mxu0 0
  %2266 = vmatpush.bf16.msra.mxu0 0
  %2267 = vmatpush.bf16.msra.mxu0 0
  %2268 = vmatpush.bf16.msra.mxu0 0
  %2269 = vmatpush.bf16.msra.mxu0 %v2169
  %2270 = vmatmul.bf16.gmra.mxu0 %v1543
  %v2271 = vpop.f32.mrf.mxu0
  %v2272 = vadd.f32 0.0, %v2271
  %v2273 = vpop.f32.mrf.mxu0
  %2274 = vdwg.mxu0
  %v2275 = vmul.f32 %v2071, %v2071
  %v2276 = vmul.f32 %v2084, %v2084
  %v2277 = vmul.f32 %v2097, %v2097
  %v2278 = vmul.f32 %v2110, %v2110
  %v2279 = vmul.f32 %v2123, %v2123
  %v2280 = vmul.f32 %v2136, %v2136
  %v2281 = vmul.f32 %v2149, %v2149
  %v2282 = vmul.f32 %v2162, %v2162
  %v2283 = vmul.f32 %v2181, %v2181
  %v2284 = vmul.f32 %v2194, %v2194
  %v2285 = vmul.f32 %v2207, %v2207
  %v2286 = vmul.f32 %v2220, %v2220
  %v2287 = vmul.f32 %v2233, %v2233
  %v2288 = vmul.f32 %v2246, %v2246
  %v2289 = vmul.f32 %v2259, %v2259
  %v2290 = vmul.f32 %v2272, %v2272
  %v2291 = vadd.f32 %v2275, %v2283
  %v2292 = vadd.f32 %v2276, %v2284
  %v2293 = vadd.f32 %v2277, %v2285
  %v2294 = vadd.f32 %v2278, %v2286
  %v2295 = vadd.f32 %v2279, %v2287
  %v2296 = vadd.f32 %v2280, %v2288
  %v2297 = vadd.f32 %v2281, %v2289
  %v2298 = vadd.f32 %v2282, %v2290
  %v2299 = vrsqrt.pop %v2291
  %v2300 = vmul.f32 %v2299, %v2291
  %v2301 = vmul.f32 %v2300, %v2299
  %v2302 = vmul.f32 0.5, %v2301
  %v2303 = vsub.f32 1.5, %v2302
  %v2304 = vmul.f32 %v2299, %v2303
  %v2305 = vmul.f32 %v2291, %v2304
  %vm2306 = vcmp.eq.f32.partialorder %v2291, inf
  %v2307 = vsel %vm2306, %v2291, %v2305
  %vm2308 = vcmp.eq.f32.partialorder %v2291, 0.0
  %v2309 = vand.u32 %v2291, 2147483648
  %v2310 = vsel %vm2308, %v2309, %v2307
  %v2311 = vrsqrt.pop %v2292
  %v2312 = vmul.f32 %v2311, %v2292
  %v2313 = vmul.f32 %v2312, %v2311
  %v2314 = vmul.f32 0.5, %v2313
  %v2315 = vsub.f32 1.5, %v2314
  %v2316 = vmul.f32 %v2311, %v2315
  %v2317 = vmul.f32 %v2292, %v2316
  %vm2318 = vcmp.eq.f32.partialorder %v2292, inf
  %v2319 = vsel %vm2318, %v2292, %v2317
  %vm2320 = vcmp.eq.f32.partialorder %v2292, 0.0
  %v2321 = vand.u32 %v2292, 2147483648
  %v2322 = vsel %vm2320, %v2321, %v2319
  %v2323 = vrsqrt.pop %v2293
  %v2324 = vmul.f32 %v2323, %v2293
  %v2325 = vmul.f32 %v2324, %v2323
  %v2326 = vmul.f32 0.5, %v2325
  %v2327 = vsub.f32 1.5, %v2326
  %v2328 = vmul.f32 %v2323, %v2327
  %v2329 = vmul.f32 %v2293, %v2328
  %vm2330 = vcmp.eq.f32.partialorder %v2293, inf
  %v2331 = vsel %vm2330, %v2293, %v2329
  %vm2332 = vcmp.eq.f32.partialorder %v2293, 0.0
  %v2333 = vand.u32 %v2293, 2147483648
  %v2334 = vsel %vm2332, %v2333, %v2331
  %v2335 = vrsqrt.pop %v2294
  %v2336 = vmul.f32 %v2335, %v2294
  %v2337 = vmul.f32 %v2336, %v2335
  %v2338 = vmul.f32 0.5, %v2337
  %v2339 = vsub.f32 1.5, %v2338
  %v2340 = vmul.f32 %v2335, %v2339
  %v2341 = vmul.f32 %v2294, %v2340
  %vm2342 = vcmp.eq.f32.partialorder %v2294, inf
  %v2343 = vsel %vm2342, %v2294, %v2341
  %vm2344 = vcmp.eq.f32.partialorder %v2294, 0.0
  %v2345 = vand.u32 %v2294, 2147483648
  %v2346 = vsel %vm2344, %v2345, %v2343
  %v2347 = vrsqrt.pop %v2295
  %v2348 = vmul.f32 %v2347, %v2295
  %v2349 = vmul.f32 %v2348, %v2347
  %v2350 = vmul.f32 0.5, %v2349
  %v2351 = vsub.f32 1.5, %v2350
  %v2352 = vmul.f32 %v2347, %v2351
  %v2353 = vmul.f32 %v2295, %v2352
  %vm2354 = vcmp.eq.f32.partialorder %v2295, inf
  %v2355 = vsel %vm2354, %v2295, %v2353
  %vm2356 = vcmp.eq.f32.partialorder %v2295, 0.0
  %v2357 = vand.u32 %v2295, 2147483648
  %v2358 = vsel %vm2356, %v2357, %v2355
  %v2359 = vrsqrt.pop %v2296
  %v2360 = vmul.f32 %v2359, %v2296
  %v2361 = vmul.f32 %v2360, %v2359
  %v2362 = vmul.f32 0.5, %v2361
  %v2363 = vsub.f32 1.5, %v2362
  %v2364 = vmul.f32 %v2359, %v2363
  %v2365 = vmul.f32 %v2296, %v2364
  %vm2366 = vcmp.eq.f32.partialorder %v2296, inf
  %v2367 = vsel %vm2366, %v2296, %v2365
  %vm2368 = vcmp.eq.f32.partialorder %v2296, 0.0
  %v2369 = vand.u32 %v2296, 2147483648
  %v2370 = vsel %vm2368, %v2369, %v2367
  %v2371 = vrsqrt.pop %v2297
  %v2372 = vmul.f32 %v2371, %v2297
  %v2373 = vmul.f32 %v2372, %v2371
  %v2374 = vmul.f32 0.5, %v2373
  %v2375 = vsub.f32 1.5, %v2374
  %v2376 = vmul.f32 %v2371, %v2375
  %v2377 = vmul.f32 %v2297, %v2376
  %vm2378 = vcmp.eq.f32.partialorder %v2297, inf
  %v2379 = vsel %vm2378, %v2297, %v2377
  %vm2380 = vcmp.eq.f32.partialorder %v2297, 0.0
  %v2381 = vand.u32 %v2297, 2147483648
  %v2382 = vsel %vm2380, %v2381, %v2379
  %v2383 = vrsqrt.pop %v2298
  %v2384 = vmul.f32 %v2383, %v2298
  %v2385 = vmul.f32 %v2384, %v2383
  %v2386 = vmul.f32 0.5, %v2385
  %v2387 = vsub.f32 1.5, %v2386
  %v2388 = vmul.f32 %v2383, %v2387
  %v2389 = vmul.f32 %v2298, %v2388
  %vm2390 = vcmp.eq.f32.partialorder %v2298, inf
  %v2391 = vsel %vm2390, %v2298, %v2389
  %vm2392 = vcmp.eq.f32.partialorder %v2298, 0.0
  %v2393 = vand.u32 %v2298, 2147483648
  %v2394 = vsel %vm2392, %v2393, %v2391
  %v2395 = vpack.c.bf16 %v2310, %v2310
  %v2396 = vpack.c.bf16 %v2322, %v2322
  %v2397 = vpack.c.bf16 %v2334, %v2334
  %v2398 = vpack.c.bf16 %v2346, %v2346
  %v2399 = vpack.c.bf16 %v2358, %v2358
  %v2400 = vpack.c.bf16 %v2370, %v2370
  %v2401 = vpack.c.bf16 %v2382, %v2382
  %v2402 = vpack.c.bf16 %v2394, %v2394
  %v2404 = vsel %vm80, %v2395, 0
  %2406 = vmatpush.bf16.msra.mxu0 0
  %2407 = vmatpush.bf16.msra.mxu0 0
  %2408 = vmatpush.bf16.msra.mxu0 0
  %2409 = vmatpush.bf16.msra.mxu0 0
  %2410 = vmatpush.bf16.msra.mxu0 0
  %2411 = vmatpush.bf16.msra.mxu0 0
  %2412 = vmatpush.bf16.msra.mxu0 0
  %2413 = vmatpush.bf16.msra.mxu0 %v1428
  %2414 = vmatmul.bf16.gmra.mxu0 %v2404
  %v2415 = vpop.f32.mrf.mxu0
  %v2416 = vadd.f32 1e-06, %v2415
  %v2417 = vpop.f32.mrf.mxu0
  %2418 = vdwg.mxu0
  %v2420 = vsel %vm80, %v2396, 0
  %2422 = vmatpush.bf16.msra.mxu0 0
  %2423 = vmatpush.bf16.msra.mxu0 0
  %2424 = vmatpush.bf16.msra.mxu0 0
  %2425 = vmatpush.bf16.msra.mxu0 0
  %2426 = vmatpush.bf16.msra.mxu0 0
  %2427 = vmatpush.bf16.msra.mxu0 0
  %2428 = vmatpush.bf16.msra.mxu0 0
  %2429 = vmatpush.bf16.msra.mxu0 %v1428
  %2430 = vmatmul.bf16.gmra.mxu0 %v2420
  %v2431 = vpop.f32.mrf.mxu0
  %v2432 = vadd.f32 1e-06, %v2431
  %v2433 = vpop.f32.mrf.mxu0
  %2434 = vdwg.mxu0
  %v2436 = vsel %vm80, %v2397, 0
  %2438 = vmatpush.bf16.msra.mxu0 0
  %2439 = vmatpush.bf16.msra.mxu0 0
  %2440 = vmatpush.bf16.msra.mxu0 0
  %2441 = vmatpush.bf16.msra.mxu0 0
  %2442 = vmatpush.bf16.msra.mxu0 0
  %2443 = vmatpush.bf16.msra.mxu0 0
  %2444 = vmatpush.bf16.msra.mxu0 0
  %2445 = vmatpush.bf16.msra.mxu0 %v1428
  %2446 = vmatmul.bf16.gmra.mxu0 %v2436
  %v2447 = vpop.f32.mrf.mxu0
  %v2448 = vadd.f32 1e-06, %v2447
  %v2449 = vpop.f32.mrf.mxu0
  %2450 = vdwg.mxu0
  %v2452 = vsel %vm80, %v2398, 0
  %2454 = vmatpush.bf16.msra.mxu0 0
  %2455 = vmatpush.bf16.msra.mxu0 0
  %2456 = vmatpush.bf16.msra.mxu0 0
  %2457 = vmatpush.bf16.msra.mxu0 0
  %2458 = vmatpush.bf16.msra.mxu0 0
  %2459 = vmatpush.bf16.msra.mxu0 0
  %2460 = vmatpush.bf16.msra.mxu0 0
  %2461 = vmatpush.bf16.msra.mxu0 %v1428
  %2462 = vmatmul.bf16.gmra.mxu0 %v2452
  %v2463 = vpop.f32.mrf.mxu0
  %v2464 = vadd.f32 1e-06, %v2463
  %v2465 = vpop.f32.mrf.mxu0
  %2466 = vdwg.mxu0
  %v2468 = vsel %vm80, %v2399, 0
  %2470 = vmatpush.bf16.msra.mxu0 0
  %2471 = vmatpush.bf16.msra.mxu0 0
  %2472 = vmatpush.bf16.msra.mxu0 0
  %2473 = vmatpush.bf16.msra.mxu0 0
  %2474 = vmatpush.bf16.msra.mxu0 0
  %2475 = vmatpush.bf16.msra.mxu0 0
  %2476 = vmatpush.bf16.msra.mxu0 0
  %2477 = vmatpush.bf16.msra.mxu0 %v1428
  %2478 = vmatmul.bf16.gmra.mxu0 %v2468
  %v2479 = vpop.f32.mrf.mxu0
  %v2480 = vadd.f32 1e-06, %v2479
  %v2481 = vpop.f32.mrf.mxu0
  %2482 = vdwg.mxu0
  %v2484 = vsel %vm80, %v2400, 0
  %2486 = vmatpush.bf16.msra.mxu0 0
  %2487 = vmatpush.bf16.msra.mxu0 0
  %2488 = vmatpush.bf16.msra.mxu0 0
  %2489 = vmatpush.bf16.msra.mxu0 0
  %2490 = vmatpush.bf16.msra.mxu0 0
  %2491 = vmatpush.bf16.msra.mxu0 0
  %2492 = vmatpush.bf16.msra.mxu0 0
  %2493 = vmatpush.bf16.msra.mxu0 %v1428
  %2494 = vmatmul.bf16.gmra.mxu0 %v2484
  %v2495 = vpop.f32.mrf.mxu0
  %v2496 = vadd.f32 1e-06, %v2495
  %v2497 = vpop.f32.mrf.mxu0
  %2498 = vdwg.mxu0
  %v2500 = vsel %vm80, %v2401, 0
  %2502 = vmatpush.bf16.msra.mxu0 0
  %2503 = vmatpush.bf16.msra.mxu0 0
  %2504 = vmatpush.bf16.msra.mxu0 0
  %2505 = vmatpush.bf16.msra.mxu0 0
  %2506 = vmatpush.bf16.msra.mxu0 0
  %2507 = vmatpush.bf16.msra.mxu0 0
  %2508 = vmatpush.bf16.msra.mxu0 0
  %2509 = vmatpush.bf16.msra.mxu0 %v1428
  %2510 = vmatmul.bf16.gmra.mxu0 %v2500
  %v2511 = vpop.f32.mrf.mxu0
  %v2512 = vadd.f32 1e-06, %v2511
  %v2513 = vpop.f32.mrf.mxu0
  %2514 = vdwg.mxu0
  %v2516 = vsel %vm80, %v2402, 0
  %2518 = vmatpush.bf16.msra.mxu0 0
  %2519 = vmatpush.bf16.msra.mxu0 0
  %2520 = vmatpush.bf16.msra.mxu0 0
  %2521 = vmatpush.bf16.msra.mxu0 0
  %2522 = vmatpush.bf16.msra.mxu0 0
  %2523 = vmatpush.bf16.msra.mxu0 0
  %2524 = vmatpush.bf16.msra.mxu0 0
  %2525 = vmatpush.bf16.msra.mxu0 %v1428
  %2526 = vmatmul.bf16.gmra.mxu0 %v2516
  %v2527 = vpop.f32.mrf.mxu0
  %v2528 = vadd.f32 1e-06, %v2527
  %v2529 = vpop.f32.mrf.mxu0
  %2530 = vdwg.mxu0
  %v2531 = vlog2.pop %v2416
  %v2532 = vmul.f32 %v2531, 0.6931472
  %v2533 = vlog2.pop %v2432
  %v2534 = vmul.f32 %v2533, 0.6931472
  %v2535 = vlog2.pop %v2448
  %v2536 = vmul.f32 %v2535, 0.6931472
  %v2537 = vlog2.pop %v2464
  %v2538 = vmul.f32 %v2537, 0.6931472
  %v2539 = vlog2.pop %v2480
  %v2540 = vmul.f32 %v2539, 0.6931472
  %v2541 = vlog2.pop %v2496
  %v2542 = vmul.f32 %v2541, 0.6931472
  %v2543 = vlog2.pop %v2512
  %v2544 = vmul.f32 %v2543, 0.6931472
  %v2545 = vlog2.pop %v2528
  %v2546 = vmul.f32 %v2545, 0.6931472
  %v2547 = vsel %vm1862, %v2532, 0.0
  %2548 = vadd.xlane.f32.xlu0 %v2547
  %v2549 = vpop.xlane.xlu0 %2548
  %v2550 = vsel %vm1862, %v2534, 0.0
  %2551 = vadd.xlane.f32.xlu0 %v2550
  %v2552 = vpop.xlane.xlu0 %2551
  %v2553 = vsel %vm1862, %v2536, 0.0
  %2554 = vadd.xlane.f32.xlu0 %v2553
  %v2555 = vpop.xlane.xlu0 %2554
  %v2556 = vsel %vm1862, %v2538, 0.0
  %2557 = vadd.xlane.f32.xlu0 %v2556
  %v2558 = vpop.xlane.xlu0 %2557
  %v2559 = vsel %vm1862, %v2540, 0.0
  %2560 = vadd.xlane.f32.xlu0 %v2559
  %v2561 = vpop.xlane.xlu0 %2560
  %v2562 = vsel %vm1862, %v2542, 0.0
  %2563 = vadd.xlane.f32.xlu0 %v2562
  %v2564 = vpop.xlane.xlu0 %2563
  %v2565 = vsel %vm1862, %v2544, 0.0
  %2566 = vadd.xlane.f32.xlu0 %v2565
  %v2567 = vpop.xlane.xlu0 %2566
  %v2568 = vsel %vm1862, %v2546, 0.0
  %2569 = vadd.xlane.f32.xlu0 %v2568
  %v2570 = vpop.xlane.xlu0 %2569
  %v2571 = vmul.f32 %v2549, %v1941
  %v2572 = vmul.f32 %v2552, %v1941
  %v2573 = vmul.f32 %v2555, %v1941
  %v2574 = vmul.f32 %v2558, %v1941
  %v2575 = vmul.f32 %v2561, %v1941
  %v2576 = vmul.f32 %v2564, %v1941
  %v2577 = vmul.f32 %v2567, %v1941
  %v2578 = vmul.f32 %v2570, %v1941
  %v2587 = vperm.slane %v2571, %v1991
  %v2588 = vperm.slane %v2572, %v1991
  %v2589 = vperm.slane %v2573, %v1991
  %v2590 = vperm.slane %v2574, %v1991
  %v2591 = vperm.slane %v2575, %v1991
  %v2592 = vperm.slane %v2576, %v1991
  %v2593 = vperm.slane %v2577, %v1991
  %v2594 = vperm.slane %v2578, %v1991
  %v2595 = vsel %vm2016, %v2588, %v2587
  %v2596 = vsel %vm2018, %v2589, %v2595
  %v2597 = vsel %vm2020, %v2590, %v2596
  %v2598 = vsel %vm2022, %v2591, %v2597
  %v2599 = vsel %vm2024, %v2592, %v2598
  %v2600 = vsel %vm2026, %v2593, %v2599
  %v2601 = vsel %vm2028, %v2594, %v2600
  %2603 = vst.msk [vmem:[%s6 + $0x18] sm:$0xff] %vm2047, %v2601
  %s2604 = scalar_lea.vmem %s3, 8
  %v2605 = vld [vmem:[%s2604] sm:$0xf]
  %v2606 = vld [vmem:[%s2604 + $0x4] sm:$0xf]
  %s2607 = scalar_lea.vmem %s4, 8
  %v2608 = vld [vmem:[%s2607] sm:$0xf]
  %v2609 = vld [vmem:[%s2607 + $0x4] sm:$0xf]
  %v2612 = vunpack.c.l.b16 %v2605
  %v2613 = vunpack.c.l.b16 %v2606
  %v2614 = vpack.c.b16 %v2613, %v2612
  %2616 = vmatpush.bf16.msra.mxu0 0
  %2617 = vmatpush.bf16.msra.mxu0 0
  %2618 = vmatpush.bf16.msra.mxu0 0
  %2619 = vmatpush.bf16.msra.mxu0 0
  %2620 = vmatpush.bf16.msra.mxu0 0
  %2621 = vmatpush.bf16.msra.mxu0 0
  %2622 = vmatpush.bf16.msra.mxu0 0
  %2623 = vmatpush.bf16.msra.mxu0 %v2614
  %2624 = vmatmul.bf16.gmra.mxu0 %v1431
  %v2625 = vpop.f32.mrf.mxu0
  %v2626 = vadd.f32 0.0, %v2625
  %v2627 = vpop.f32.mrf.mxu0
  %2628 = vdwg.mxu0
  %2629 = vmatpush.bf16.msra.mxu0 0
  %2630 = vmatpush.bf16.msra.mxu0 0
  %2631 = vmatpush.bf16.msra.mxu0 0
  %2632 = vmatpush.bf16.msra.mxu0 0
  %2633 = vmatpush.bf16.msra.mxu0 0
  %2634 = vmatpush.bf16.msra.mxu0 0
  %2635 = vmatpush.bf16.msra.mxu0 0
  %2636 = vmatpush.bf16.msra.mxu0 %v2614
  %2637 = vmatmul.bf16.gmra.mxu0 %v1447
  %v2638 = vpop.f32.mrf.mxu0
  %v2639 = vadd.f32 0.0, %v2638
  %v2640 = vpop.f32.mrf.mxu0
  %2641 = vdwg.mxu0
  %2642 = vmatpush.bf16.msra.mxu0 0
  %2643 = vmatpush.bf16.msra.mxu0 0
  %2644 = vmatpush.bf16.msra.mxu0 0
  %2645 = vmatpush.bf16.msra.mxu0 0
  %2646 = vmatpush.bf16.msra.mxu0 0
  %2647 = vmatpush.bf16.msra.mxu0 0
  %2648 = vmatpush.bf16.msra.mxu0 0
  %2649 = vmatpush.bf16.msra.mxu0 %v2614
  %2650 = vmatmul.bf16.gmra.mxu0 %v1463
  %v2651 = vpop.f32.mrf.mxu0
  %v2652 = vadd.f32 0.0, %v2651
  %v2653 = vpop.f32.mrf.mxu0
  %2654 = vdwg.mxu0
  %2655 = vmatpush.bf16.msra.mxu0 0
  %2656 = vmatpush.bf16.msra.mxu0 0
  %2657 = vmatpush.bf16.msra.mxu0 0
  %2658 = vmatpush.bf16.msra.mxu0 0
  %2659 = vmatpush.bf16.msra.mxu0 0
  %2660 = vmatpush.bf16.msra.mxu0 0
  %2661 = vmatpush.bf16.msra.mxu0 0
  %2662 = vmatpush.bf16.msra.mxu0 %v2614
  %2663 = vmatmul.bf16.gmra.mxu0 %v1479
  %v2664 = vpop.f32.mrf.mxu0
  %v2665 = vadd.f32 0.0, %v2664
  %v2666 = vpop.f32.mrf.mxu0
  %2667 = vdwg.mxu0
  %2668 = vmatpush.bf16.msra.mxu0 0
  %2669 = vmatpush.bf16.msra.mxu0 0
  %2670 = vmatpush.bf16.msra.mxu0 0
  %2671 = vmatpush.bf16.msra.mxu0 0
  %2672 = vmatpush.bf16.msra.mxu0 0
  %2673 = vmatpush.bf16.msra.mxu0 0
  %2674 = vmatpush.bf16.msra.mxu0 0
  %2675 = vmatpush.bf16.msra.mxu0 %v2614
  %2676 = vmatmul.bf16.gmra.mxu0 %v1495
  %v2677 = vpop.f32.mrf.mxu0
  %v2678 = vadd.f32 0.0, %v2677
  %v2679 = vpop.f32.mrf.mxu0
  %2680 = vdwg.mxu0
  %2681 = vmatpush.bf16.msra.mxu0 0
  %2682 = vmatpush.bf16.msra.mxu0 0
  %2683 = vmatpush.bf16.msra.mxu0 0
  %2684 = vmatpush.bf16.msra.mxu0 0
  %2685 = vmatpush.bf16.msra.mxu0 0
  %2686 = vmatpush.bf16.msra.mxu0 0
  %2687 = vmatpush.bf16.msra.mxu0 0
  %2688 = vmatpush.bf16.msra.mxu0 %v2614
  %2689 = vmatmul.bf16.gmra.mxu0 %v1511
  %v2690 = vpop.f32.mrf.mxu0
  %v2691 = vadd.f32 0.0, %v2690
  %v2692 = vpop.f32.mrf.mxu0
  %2693 = vdwg.mxu0
  %2694 = vmatpush.bf16.msra.mxu0 0
  %2695 = vmatpush.bf16.msra.mxu0 0
  %2696 = vmatpush.bf16.msra.mxu0 0
  %2697 = vmatpush.bf16.msra.mxu0 0
  %2698 = vmatpush.bf16.msra.mxu0 0
  %2699 = vmatpush.bf16.msra.mxu0 0
  %2700 = vmatpush.bf16.msra.mxu0 0
  %2701 = vmatpush.bf16.msra.mxu0 %v2614
  %2702 = vmatmul.bf16.gmra.mxu0 %v1527
  %v2703 = vpop.f32.mrf.mxu0
  %v2704 = vadd.f32 0.0, %v2703
  %v2705 = vpop.f32.mrf.mxu0
  %2706 = vdwg.mxu0
  %2707 = vmatpush.bf16.msra.mxu0 0
  %2708 = vmatpush.bf16.msra.mxu0 0
  %2709 = vmatpush.bf16.msra.mxu0 0
  %2710 = vmatpush.bf16.msra.mxu0 0
  %2711 = vmatpush.bf16.msra.mxu0 0
  %2712 = vmatpush.bf16.msra.mxu0 0
  %2713 = vmatpush.bf16.msra.mxu0 0
  %2714 = vmatpush.bf16.msra.mxu0 %v2614
  %2715 = vmatmul.bf16.gmra.mxu0 %v1543
  %v2716 = vpop.f32.mrf.mxu0
  %v2717 = vadd.f32 0.0, %v2716
  %v2718 = vpop.f32.mrf.mxu0
  %2719 = vdwg.mxu0
  %2720 = vmatpush.bf16.msra.mxu0 0
  %2721 = vmatpush.bf16.msra.mxu0 0
  %2722 = vmatpush.bf16.msra.mxu0 0
  %2723 = vmatpush.bf16.msra.mxu0 0
  %2724 = vmatpush.bf16.msra.mxu0 0
  %2725 = vmatpush.bf16.msra.mxu0 0
  %2726 = vmatpush.bf16.msra.mxu0 0
  %2727 = vmatpush.bf16.msra.mxu0 %v2614
  %2728 = vmatmul.bf16.gmra.mxu0 %v1559
  %v2729 = vpop.f32.mrf.mxu0
  %v2730 = vadd.f32 0.0, %v2729
  %v2731 = vpop.f32.mrf.mxu0
  %2732 = vdwg.mxu0
  %2733 = vmatpush.bf16.msra.mxu0 0
  %2734 = vmatpush.bf16.msra.mxu0 0
  %2735 = vmatpush.bf16.msra.mxu0 0
  %2736 = vmatpush.bf16.msra.mxu0 0
  %2737 = vmatpush.bf16.msra.mxu0 0
  %2738 = vmatpush.bf16.msra.mxu0 0
  %2739 = vmatpush.bf16.msra.mxu0 0
  %2740 = vmatpush.bf16.msra.mxu0 %v2614
  %2741 = vmatmul.bf16.gmra.mxu0 %v1575
  %v2742 = vpop.f32.mrf.mxu0
  %v2743 = vadd.f32 0.0, %v2742
  %v2744 = vpop.f32.mrf.mxu0
  %2745 = vdwg.mxu0
  %2746 = vmatpush.bf16.msra.mxu0 0
  %2747 = vmatpush.bf16.msra.mxu0 0
  %2748 = vmatpush.bf16.msra.mxu0 0
  %2749 = vmatpush.bf16.msra.mxu0 0
  %2750 = vmatpush.bf16.msra.mxu0 0
  %2751 = vmatpush.bf16.msra.mxu0 0
  %2752 = vmatpush.bf16.msra.mxu0 0
  %2753 = vmatpush.bf16.msra.mxu0 %v2614
  %2754 = vmatmul.bf16.gmra.mxu0 %v1591
  %v2755 = vpop.f32.mrf.mxu0
  %v2756 = vadd.f32 0.0, %v2755
  %v2757 = vpop.f32.mrf.mxu0
  %2758 = vdwg.mxu0
  %2759 = vmatpush.bf16.msra.mxu0 0
  %2760 = vmatpush.bf16.msra.mxu0 0
  %2761 = vmatpush.bf16.msra.mxu0 0
  %2762 = vmatpush.bf16.msra.mxu0 0
  %2763 = vmatpush.bf16.msra.mxu0 0
  %2764 = vmatpush.bf16.msra.mxu0 0
  %2765 = vmatpush.bf16.msra.mxu0 0
  %2766 = vmatpush.bf16.msra.mxu0 %v2614
  %2767 = vmatmul.bf16.gmra.mxu0 %v1607
  %v2768 = vpop.f32.mrf.mxu0
  %v2769 = vadd.f32 0.0, %v2768
  %v2770 = vpop.f32.mrf.mxu0
  %2771 = vdwg.mxu0
  %2772 = vmatpush.bf16.msra.mxu0 0
  %2773 = vmatpush.bf16.msra.mxu0 0
  %2774 = vmatpush.bf16.msra.mxu0 0
  %2775 = vmatpush.bf16.msra.mxu0 0
  %2776 = vmatpush.bf16.msra.mxu0 0
  %2777 = vmatpush.bf16.msra.mxu0 0
  %2778 = vmatpush.bf16.msra.mxu0 0
  %2779 = vmatpush.bf16.msra.mxu0 %v2614
  %2780 = vmatmul.bf16.gmra.mxu0 %v1623
  %v2781 = vpop.f32.mrf.mxu0
  %v2782 = vadd.f32 0.0, %v2781
  %v2783 = vpop.f32.mrf.mxu0
  %2784 = vdwg.mxu0
  %2785 = vmatpush.bf16.msra.mxu0 0
  %2786 = vmatpush.bf16.msra.mxu0 0
  %2787 = vmatpush.bf16.msra.mxu0 0
  %2788 = vmatpush.bf16.msra.mxu0 0
  %2789 = vmatpush.bf16.msra.mxu0 0
  %2790 = vmatpush.bf16.msra.mxu0 0
  %2791 = vmatpush.bf16.msra.mxu0 0
  %2792 = vmatpush.bf16.msra.mxu0 %v2614
  %2793 = vmatmul.bf16.gmra.mxu0 %v1639
  %v2794 = vpop.f32.mrf.mxu0
  %v2795 = vadd.f32 0.0, %v2794
  %v2796 = vpop.f32.mrf.mxu0
  %2797 = vdwg.mxu0
  %2798 = vmatpush.bf16.msra.mxu0 0
  %2799 = vmatpush.bf16.msra.mxu0 0
  %2800 = vmatpush.bf16.msra.mxu0 0
  %2801 = vmatpush.bf16.msra.mxu0 0
  %2802 = vmatpush.bf16.msra.mxu0 0
  %2803 = vmatpush.bf16.msra.mxu0 0
  %2804 = vmatpush.bf16.msra.mxu0 0
  %2805 = vmatpush.bf16.msra.mxu0 %v2614
  %2806 = vmatmul.bf16.gmra.mxu0 %v1655
  %v2807 = vpop.f32.mrf.mxu0
  %v2808 = vadd.f32 0.0, %v2807
  %v2809 = vpop.f32.mrf.mxu0
  %2810 = vdwg.mxu0
  %2811 = vmatpush.bf16.msra.mxu0 0
  %2812 = vmatpush.bf16.msra.mxu0 0
  %2813 = vmatpush.bf16.msra.mxu0 0
  %2814 = vmatpush.bf16.msra.mxu0 0
  %2815 = vmatpush.bf16.msra.mxu0 0
  %2816 = vmatpush.bf16.msra.mxu0 0
  %2817 = vmatpush.bf16.msra.mxu0 0
  %2818 = vmatpush.bf16.msra.mxu0 %v2614
  %2819 = vmatmul.bf16.gmra.mxu0 %v1671
  %v2820 = vpop.f32.mrf.mxu0
  %v2821 = vadd.f32 0.0, %v2820
  %v2822 = vpop.f32.mrf.mxu0
  %2823 = vdwg.mxu0
  %v2826 = vunpack.c.l.b16 %v2608
  %v2827 = vunpack.c.l.b16 %v2609
  %v2828 = vpack.c.b16 %v2827, %v2826
  %2830 = vmatpush.bf16.msra.mxu0 0
  %2831 = vmatpush.bf16.msra.mxu0 0
  %2832 = vmatpush.bf16.msra.mxu0 0
  %2833 = vmatpush.bf16.msra.mxu0 0
  %2834 = vmatpush.bf16.msra.mxu0 0
  %2835 = vmatpush.bf16.msra.mxu0 0
  %2836 = vmatpush.bf16.msra.mxu0 0
  %2837 = vmatpush.bf16.msra.mxu0 %v2828
  %2838 = vmatmul.bf16.gmra.mxu0 %v1431
  %v2839 = vpop.f32.mrf.mxu0
  %v2840 = vadd.f32 0.0, %v2839
  %v2841 = vpop.f32.mrf.mxu0
  %2842 = vdwg.mxu0
  %2843 = vmatpush.bf16.msra.mxu0 0
  %2844 = vmatpush.bf16.msra.mxu0 0
  %2845 = vmatpush.bf16.msra.mxu0 0
  %2846 = vmatpush.bf16.msra.mxu0 0
  %2847 = vmatpush.bf16.msra.mxu0 0
  %2848 = vmatpush.bf16.msra.mxu0 0
  %2849 = vmatpush.bf16.msra.mxu0 0
  %2850 = vmatpush.bf16.msra.mxu0 %v2828
  %2851 = vmatmul.bf16.gmra.mxu0 %v1447
  %v2852 = vpop.f32.mrf.mxu0
  %v2853 = vadd.f32 0.0, %v2852
  %v2854 = vpop.f32.mrf.mxu0
  %2855 = vdwg.mxu0
  %2856 = vmatpush.bf16.msra.mxu0 0
  %2857 = vmatpush.bf16.msra.mxu0 0
  %2858 = vmatpush.bf16.msra.mxu0 0
  %2859 = vmatpush.bf16.msra.mxu0 0
  %2860 = vmatpush.bf16.msra.mxu0 0
  %2861 = vmatpush.bf16.msra.mxu0 0
  %2862 = vmatpush.bf16.msra.mxu0 0
  %2863 = vmatpush.bf16.msra.mxu0 %v2828
  %2864 = vmatmul.bf16.gmra.mxu0 %v1463
  %v2865 = vpop.f32.mrf.mxu0
  %v2866 = vadd.f32 0.0, %v2865
  %v2867 = vpop.f32.mrf.mxu0
  %2868 = vdwg.mxu0
  %2869 = vmatpush.bf16.msra.mxu0 0
  %2870 = vmatpush.bf16.msra.mxu0 0
  %2871 = vmatpush.bf16.msra.mxu0 0
  %2872 = vmatpush.bf16.msra.mxu0 0
  %2873 = vmatpush.bf16.msra.mxu0 0
  %2874 = vmatpush.bf16.msra.mxu0 0
  %2875 = vmatpush.bf16.msra.mxu0 0
  %2876 = vmatpush.bf16.msra.mxu0 %v2828
  %2877 = vmatmul.bf16.gmra.mxu0 %v1479
  %v2878 = vpop.f32.mrf.mxu0
  %v2879 = vadd.f32 0.0, %v2878
  %v2880 = vpop.f32.mrf.mxu0
  %2881 = vdwg.mxu0
  %2882 = vmatpush.bf16.msra.mxu0 0
  %2883 = vmatpush.bf16.msra.mxu0 0
  %2884 = vmatpush.bf16.msra.mxu0 0
  %2885 = vmatpush.bf16.msra.mxu0 0
  %2886 = vmatpush.bf16.msra.mxu0 0
  %2887 = vmatpush.bf16.msra.mxu0 0
  %2888 = vmatpush.bf16.msra.mxu0 0
  %2889 = vmatpush.bf16.msra.mxu0 %v2828
  %2890 = vmatmul.bf16.gmra.mxu0 %v1495
  %v2891 = vpop.f32.mrf.mxu0
  %v2892 = vadd.f32 0.0, %v2891
  %v2893 = vpop.f32.mrf.mxu0
  %2894 = vdwg.mxu0
  %2895 = vmatpush.bf16.msra.mxu0 0
  %2896 = vmatpush.bf16.msra.mxu0 0
  %2897 = vmatpush.bf16.msra.mxu0 0
  %2898 = vmatpush.bf16.msra.mxu0 0
  %2899 = vmatpush.bf16.msra.mxu0 0
  %2900 = vmatpush.bf16.msra.mxu0 0
  %2901 = vmatpush.bf16.msra.mxu0 0
  %2902 = vmatpush.bf16.msra.mxu0 %v2828
  %2903 = vmatmul.bf16.gmra.mxu0 %v1511
  %v2904 = vpop.f32.mrf.mxu0
  %v2905 = vadd.f32 0.0, %v2904
  %v2906 = vpop.f32.mrf.mxu0
  %2907 = vdwg.mxu0
  %2908 = vmatpush.bf16.msra.mxu0 0
  %2909 = vmatpush.bf16.msra.mxu0 0
  %2910 = vmatpush.bf16.msra.mxu0 0
  %2911 = vmatpush.bf16.msra.mxu0 0
  %2912 = vmatpush.bf16.msra.mxu0 0
  %2913 = vmatpush.bf16.msra.mxu0 0
  %2914 = vmatpush.bf16.msra.mxu0 0
  %2915 = vmatpush.bf16.msra.mxu0 %v2828
  %2916 = vmatmul.bf16.gmra.mxu0 %v1527
  %v2917 = vpop.f32.mrf.mxu0
  %v2918 = vadd.f32 0.0, %v2917
  %v2919 = vpop.f32.mrf.mxu0
  %2920 = vdwg.mxu0
  %2921 = vmatpush.bf16.msra.mxu0 0
  %2922 = vmatpush.bf16.msra.mxu0 0
  %2923 = vmatpush.bf16.msra.mxu0 0
  %2924 = vmatpush.bf16.msra.mxu0 0
  %2925 = vmatpush.bf16.msra.mxu0 0
  %2926 = vmatpush.bf16.msra.mxu0 0
  %2927 = vmatpush.bf16.msra.mxu0 0
  %2928 = vmatpush.bf16.msra.mxu0 %v2828
  %2929 = vmatmul.bf16.gmra.mxu0 %v1543
  %v2930 = vpop.f32.mrf.mxu0
  %v2931 = vadd.f32 0.0, %v2930
  %v2932 = vpop.f32.mrf.mxu0
  %2933 = vdwg.mxu0
  %2934 = vmatpush.bf16.msra.mxu0 0
  %2935 = vmatpush.bf16.msra.mxu0 0
  %2936 = vmatpush.bf16.msra.mxu0 0
  %2937 = vmatpush.bf16.msra.mxu0 0
  %2938 = vmatpush.bf16.msra.mxu0 0
  %2939 = vmatpush.bf16.msra.mxu0 0
  %2940 = vmatpush.bf16.msra.mxu0 0
  %2941 = vmatpush.bf16.msra.mxu0 %v2828
  %2942 = vmatmul.bf16.gmra.mxu0 %v1559
  %v2943 = vpop.f32.mrf.mxu0
  %v2944 = vadd.f32 0.0, %v2943
  %v2945 = vpop.f32.mrf.mxu0
  %2946 = vdwg.mxu0
  %2947 = vmatpush.bf16.msra.mxu0 0
  %2948 = vmatpush.bf16.msra.mxu0 0
  %2949 = vmatpush.bf16.msra.mxu0 0
  %2950 = vmatpush.bf16.msra.mxu0 0
  %2951 = vmatpush.bf16.msra.mxu0 0
  %2952 = vmatpush.bf16.msra.mxu0 0
  %2953 = vmatpush.bf16.msra.mxu0 0
  %2954 = vmatpush.bf16.msra.mxu0 %v2828
  %2955 = vmatmul.bf16.gmra.mxu0 %v1575
  %v2956 = vpop.f32.mrf.mxu0
  %v2957 = vadd.f32 0.0, %v2956
  %v2958 = vpop.f32.mrf.mxu0
  %2959 = vdwg.mxu0
  %2960 = vmatpush.bf16.msra.mxu0 0
  %2961 = vmatpush.bf16.msra.mxu0 0
  %2962 = vmatpush.bf16.msra.mxu0 0
  %2963 = vmatpush.bf16.msra.mxu0 0
  %2964 = vmatpush.bf16.msra.mxu0 0
  %2965 = vmatpush.bf16.msra.mxu0 0
  %2966 = vmatpush.bf16.msra.mxu0 0
  %2967 = vmatpush.bf16.msra.mxu0 %v2828
  %2968 = vmatmul.bf16.gmra.mxu0 %v1591
  %v2969 = vpop.f32.mrf.mxu0
  %v2970 = vadd.f32 0.0, %v2969
  %v2971 = vpop.f32.mrf.mxu0
  %2972 = vdwg.mxu0
  %2973 = vmatpush.bf16.msra.mxu0 0
  %2974 = vmatpush.bf16.msra.mxu0 0
  %2975 = vmatpush.bf16.msra.mxu0 0
  %2976 = vmatpush.bf16.msra.mxu0 0
  %2977 = vmatpush.bf16.msra.mxu0 0
  %2978 = vmatpush.bf16.msra.mxu0 0
  %2979 = vmatpush.bf16.msra.mxu0 0
  %2980 = vmatpush.bf16.msra.mxu0 %v2828
  %2981 = vmatmul.bf16.gmra.mxu0 %v1607
  %v2982 = vpop.f32.mrf.mxu0
  %v2983 = vadd.f32 0.0, %v2982
  %v2984 = vpop.f32.mrf.mxu0
  %2985 = vdwg.mxu0
  %2986 = vmatpush.bf16.msra.mxu0 0
  %2987 = vmatpush.bf16.msra.mxu0 0
  %2988 = vmatpush.bf16.msra.mxu0 0
  %2989 = vmatpush.bf16.msra.mxu0 0
  %2990 = vmatpush.bf16.msra.mxu0 0
  %2991 = vmatpush.bf16.msra.mxu0 0
  %2992 = vmatpush.bf16.msra.mxu0 0
  %2993 = vmatpush.bf16.msra.mxu0 %v2828
  %2994 = vmatmul.bf16.gmra.mxu0 %v1623
  %v2995 = vpop.f32.mrf.mxu0
  %v2996 = vadd.f32 0.0, %v2995
  %v2997 = vpop.f32.mrf.mxu0
  %2998 = vdwg.mxu0
  %2999 = vmatpush.bf16.msra.mxu0 0
  %3000 = vmatpush.bf16.msra.mxu0 0
  %3001 = vmatpush.bf16.msra.mxu0 0
  %3002 = vmatpush.bf16.msra.mxu0 0
  %3003 = vmatpush.bf16.msra.mxu0 0
  %3004 = vmatpush.bf16.msra.mxu0 0
  %3005 = vmatpush.bf16.msra.mxu0 0
  %3006 = vmatpush.bf16.msra.mxu0 %v2828
  %3007 = vmatmul.bf16.gmra.mxu0 %v1639
  %v3008 = vpop.f32.mrf.mxu0
  %v3009 = vadd.f32 0.0, %v3008
  %v3010 = vpop.f32.mrf.mxu0
  %3011 = vdwg.mxu0
  %3012 = vmatpush.bf16.msra.mxu0 0
  %3013 = vmatpush.bf16.msra.mxu0 0
  %3014 = vmatpush.bf16.msra.mxu0 0
  %3015 = vmatpush.bf16.msra.mxu0 0
  %3016 = vmatpush.bf16.msra.mxu0 0
  %3017 = vmatpush.bf16.msra.mxu0 0
  %3018 = vmatpush.bf16.msra.mxu0 0
  %3019 = vmatpush.bf16.msra.mxu0 %v2828
  %3020 = vmatmul.bf16.gmra.mxu0 %v1655
  %v3021 = vpop.f32.mrf.mxu0
  %v3022 = vadd.f32 0.0, %v3021
  %v3023 = vpop.f32.mrf.mxu0
  %3024 = vdwg.mxu0
  %3025 = vmatpush.bf16.msra.mxu0 0
  %3026 = vmatpush.bf16.msra.mxu0 0
  %3027 = vmatpush.bf16.msra.mxu0 0
  %3028 = vmatpush.bf16.msra.mxu0 0
  %3029 = vmatpush.bf16.msra.mxu0 0
  %3030 = vmatpush.bf16.msra.mxu0 0
  %3031 = vmatpush.bf16.msra.mxu0 0
  %3032 = vmatpush.bf16.msra.mxu0 %v2828
  %3033 = vmatmul.bf16.gmra.mxu0 %v1671
  %v3034 = vpop.f32.mrf.mxu0
  %v3035 = vadd.f32 0.0, %v3034
  %v3036 = vpop.f32.mrf.mxu0
  %3037 = vdwg.mxu0
  %v3038 = vmul.f32 %v2626, %v2626
  %v3039 = vmul.f32 %v2639, %v2639
  %v3040 = vmul.f32 %v2652, %v2652
  %v3041 = vmul.f32 %v2665, %v2665
  %v3042 = vmul.f32 %v2678, %v2678
  %v3043 = vmul.f32 %v2691, %v2691
  %v3044 = vmul.f32 %v2704, %v2704
  %v3045 = vmul.f32 %v2717, %v2717
  %v3046 = vmul.f32 %v2730, %v2730
  %v3047 = vmul.f32 %v2743, %v2743
  %v3048 = vmul.f32 %v2756, %v2756
  %v3049 = vmul.f32 %v2769, %v2769
  %v3050 = vmul.f32 %v2782, %v2782
  %v3051 = vmul.f32 %v2795, %v2795
  %v3052 = vmul.f32 %v2808, %v2808
  %v3053 = vmul.f32 %v2821, %v2821
  %v3054 = vmul.f32 %v2840, %v2840
  %v3055 = vmul.f32 %v2853, %v2853
  %v3056 = vmul.f32 %v2866, %v2866
  %v3057 = vmul.f32 %v2879, %v2879
  %v3058 = vmul.f32 %v2892, %v2892
  %v3059 = vmul.f32 %v2905, %v2905
  %v3060 = vmul.f32 %v2918, %v2918
  %v3061 = vmul.f32 %v2931, %v2931
  %v3062 = vmul.f32 %v2944, %v2944
  %v3063 = vmul.f32 %v2957, %v2957
  %v3064 = vmul.f32 %v2970, %v2970
  %v3065 = vmul.f32 %v2983, %v2983
  %v3066 = vmul.f32 %v2996, %v2996
  %v3067 = vmul.f32 %v3009, %v3009
  %v3068 = vmul.f32 %v3022, %v3022
  %v3069 = vmul.f32 %v3035, %v3035
  %v3070 = vadd.f32 %v3038, %v3054
  %v3071 = vadd.f32 %v3039, %v3055
  %v3072 = vadd.f32 %v3040, %v3056
  %v3073 = vadd.f32 %v3041, %v3057
  %v3074 = vadd.f32 %v3042, %v3058
  %v3075 = vadd.f32 %v3043, %v3059
  %v3076 = vadd.f32 %v3044, %v3060
  %v3077 = vadd.f32 %v3045, %v3061
  %v3078 = vadd.f32 %v3046, %v3062
  %v3079 = vadd.f32 %v3047, %v3063
  %v3080 = vadd.f32 %v3048, %v3064
  %v3081 = vadd.f32 %v3049, %v3065
  %v3082 = vadd.f32 %v3050, %v3066
  %v3083 = vadd.f32 %v3051, %v3067
  %v3084 = vadd.f32 %v3052, %v3068
  %v3085 = vadd.f32 %v3053, %v3069
  %v3086 = vrsqrt.pop %v3070
  %v3087 = vmul.f32 %v3086, %v3070
  %v3088 = vmul.f32 %v3087, %v3086
  %v3089 = vmul.f32 0.5, %v3088
  %v3090 = vsub.f32 1.5, %v3089
  %v3091 = vmul.f32 %v3086, %v3090
  %v3092 = vmul.f32 %v3070, %v3091
  %vm3093 = vcmp.eq.f32.partialorder %v3070, inf
  %v3094 = vsel %vm3093, %v3070, %v3092
  %vm3095 = vcmp.eq.f32.partialorder %v3070, 0.0
  %v3096 = vand.u32 %v3070, 2147483648
  %v3097 = vsel %vm3095, %v3096, %v3094
  %v3098 = vrsqrt.pop %v3071
  %v3099 = vmul.f32 %v3098, %v3071
  %v3100 = vmul.f32 %v3099, %v3098
  %v3101 = vmul.f32 0.5, %v3100
  %v3102 = vsub.f32 1.5, %v3101
  %v3103 = vmul.f32 %v3098, %v3102
  %v3104 = vmul.f32 %v3071, %v3103
  %vm3105 = vcmp.eq.f32.partialorder %v3071, inf
  %v3106 = vsel %vm3105, %v3071, %v3104
  %vm3107 = vcmp.eq.f32.partialorder %v3071, 0.0
  %v3108 = vand.u32 %v3071, 2147483648
  %v3109 = vsel %vm3107, %v3108, %v3106
  %v3110 = vrsqrt.pop %v3072
  %v3111 = vmul.f32 %v3110, %v3072
  %v3112 = vmul.f32 %v3111, %v3110
  %v3113 = vmul.f32 0.5, %v3112
  %v3114 = vsub.f32 1.5, %v3113
  %v3115 = vmul.f32 %v3110, %v3114
  %v3116 = vmul.f32 %v3072, %v3115
  %vm3117 = vcmp.eq.f32.partialorder %v3072, inf
  %v3118 = vsel %vm3117, %v3072, %v3116
  %vm3119 = vcmp.eq.f32.partialorder %v3072, 0.0
  %v3120 = vand.u32 %v3072, 2147483648
  %v3121 = vsel %vm3119, %v3120, %v3118
  %v3122 = vrsqrt.pop %v3073
  %v3123 = vmul.f32 %v3122, %v3073
  %v3124 = vmul.f32 %v3123, %v3122
  %v3125 = vmul.f32 0.5, %v3124
  %v3126 = vsub.f32 1.5, %v3125
  %v3127 = vmul.f32 %v3122, %v3126
  %v3128 = vmul.f32 %v3073, %v3127
  %vm3129 = vcmp.eq.f32.partialorder %v3073, inf
  %v3130 = vsel %vm3129, %v3073, %v3128
  %vm3131 = vcmp.eq.f32.partialorder %v3073, 0.0
  %v3132 = vand.u32 %v3073, 2147483648
  %v3133 = vsel %vm3131, %v3132, %v3130
  %v3134 = vrsqrt.pop %v3074
  %v3135 = vmul.f32 %v3134, %v3074
  %v3136 = vmul.f32 %v3135, %v3134
  %v3137 = vmul.f32 0.5, %v3136
  %v3138 = vsub.f32 1.5, %v3137
  %v3139 = vmul.f32 %v3134, %v3138
  %v3140 = vmul.f32 %v3074, %v3139
  %vm3141 = vcmp.eq.f32.partialorder %v3074, inf
  %v3142 = vsel %vm3141, %v3074, %v3140
  %vm3143 = vcmp.eq.f32.partialorder %v3074, 0.0
  %v3144 = vand.u32 %v3074, 2147483648
  %v3145 = vsel %vm3143, %v3144, %v3142
  %v3146 = vrsqrt.pop %v3075
  %v3147 = vmul.f32 %v3146, %v3075
  %v3148 = vmul.f32 %v3147, %v3146
  %v3149 = vmul.f32 0.5, %v3148
  %v3150 = vsub.f32 1.5, %v3149
  %v3151 = vmul.f32 %v3146, %v3150
  %v3152 = vmul.f32 %v3075, %v3151
  %vm3153 = vcmp.eq.f32.partialorder %v3075, inf
  %v3154 = vsel %vm3153, %v3075, %v3152
  %vm3155 = vcmp.eq.f32.partialorder %v3075, 0.0
  %v3156 = vand.u32 %v3075, 2147483648
  %v3157 = vsel %vm3155, %v3156, %v3154
  %v3158 = vrsqrt.pop %v3076
  %v3159 = vmul.f32 %v3158, %v3076
  %v3160 = vmul.f32 %v3159, %v3158
  %v3161 = vmul.f32 0.5, %v3160
  %v3162 = vsub.f32 1.5, %v3161
  %v3163 = vmul.f32 %v3158, %v3162
  %v3164 = vmul.f32 %v3076, %v3163
  %vm3165 = vcmp.eq.f32.partialorder %v3076, inf
  %v3166 = vsel %vm3165, %v3076, %v3164
  %vm3167 = vcmp.eq.f32.partialorder %v3076, 0.0
  %v3168 = vand.u32 %v3076, 2147483648
  %v3169 = vsel %vm3167, %v3168, %v3166
  %v3170 = vrsqrt.pop %v3077
  %v3171 = vmul.f32 %v3170, %v3077
  %v3172 = vmul.f32 %v3171, %v3170
  %v3173 = vmul.f32 0.5, %v3172
  %v3174 = vsub.f32 1.5, %v3173
  %v3175 = vmul.f32 %v3170, %v3174
  %v3176 = vmul.f32 %v3077, %v3175
  %vm3177 = vcmp.eq.f32.partialorder %v3077, inf
  %v3178 = vsel %vm3177, %v3077, %v3176
  %vm3179 = vcmp.eq.f32.partialorder %v3077, 0.0
  %v3180 = vand.u32 %v3077, 2147483648
  %v3181 = vsel %vm3179, %v3180, %v3178
  %v3182 = vrsqrt.pop %v3078
  %v3183 = vmul.f32 %v3182, %v3078
  %v3184 = vmul.f32 %v3183, %v3182
  %v3185 = vmul.f32 0.5, %v3184
  %v3186 = vsub.f32 1.5, %v3185
  %v3187 = vmul.f32 %v3182, %v3186
  %v3188 = vmul.f32 %v3078, %v3187
  %vm3189 = vcmp.eq.f32.partialorder %v3078, inf
  %v3190 = vsel %vm3189, %v3078, %v3188
  %vm3191 = vcmp.eq.f32.partialorder %v3078, 0.0
  %v3192 = vand.u32 %v3078, 2147483648
  %v3193 = vsel %vm3191, %v3192, %v3190
  %v3194 = vrsqrt.pop %v3079
  %v3195 = vmul.f32 %v3194, %v3079
  %v3196 = vmul.f32 %v3195, %v3194
  %v3197 = vmul.f32 0.5, %v3196
  %v3198 = vsub.f32 1.5, %v3197
  %v3199 = vmul.f32 %v3194, %v3198
  %v3200 = vmul.f32 %v3079, %v3199
  %vm3201 = vcmp.eq.f32.partialorder %v3079, inf
  %v3202 = vsel %vm3201, %v3079, %v3200
  %vm3203 = vcmp.eq.f32.partialorder %v3079, 0.0
  %v3204 = vand.u32 %v3079, 2147483648
  %v3205 = vsel %vm3203, %v3204, %v3202
  %v3206 = vrsqrt.pop %v3080
  %v3207 = vmul.f32 %v3206, %v3080
  %v3208 = vmul.f32 %v3207, %v3206
  %v3209 = vmul.f32 0.5, %v3208
  %v3210 = vsub.f32 1.5, %v3209
  %v3211 = vmul.f32 %v3206, %v3210
  %v3212 = vmul.f32 %v3080, %v3211
  %vm3213 = vcmp.eq.f32.partialorder %v3080, inf
  %v3214 = vsel %vm3213, %v3080, %v3212
  %vm3215 = vcmp.eq.f32.partialorder %v3080, 0.0
  %v3216 = vand.u32 %v3080, 2147483648
  %v3217 = vsel %vm3215, %v3216, %v3214
  %v3218 = vrsqrt.pop %v3081
  %v3219 = vmul.f32 %v3218, %v3081
  %v3220 = vmul.f32 %v3219, %v3218
  %v3221 = vmul.f32 0.5, %v3220
  %v3222 = vsub.f32 1.5, %v3221
  %v3223 = vmul.f32 %v3218, %v3222
  %v3224 = vmul.f32 %v3081, %v3223
  %vm3225 = vcmp.eq.f32.partialorder %v3081, inf
  %v3226 = vsel %vm3225, %v3081, %v3224
  %vm3227 = vcmp.eq.f32.partialorder %v3081, 0.0
  %v3228 = vand.u32 %v3081, 2147483648
  %v3229 = vsel %vm3227, %v3228, %v3226
  %v3230 = vrsqrt.pop %v3082
  %v3231 = vmul.f32 %v3230, %v3082
  %v3232 = vmul.f32 %v3231, %v3230
  %v3233 = vmul.f32 0.5, %v3232
  %v3234 = vsub.f32 1.5, %v3233
  %v3235 = vmul.f32 %v3230, %v3234
  %v3236 = vmul.f32 %v3082, %v3235
  %vm3237 = vcmp.eq.f32.partialorder %v3082, inf
  %v3238 = vsel %vm3237, %v3082, %v3236
  %vm3239 = vcmp.eq.f32.partialorder %v3082, 0.0
  %v3240 = vand.u32 %v3082, 2147483648
  %v3241 = vsel %vm3239, %v3240, %v3238
  %v3242 = vrsqrt.pop %v3083
  %v3243 = vmul.f32 %v3242, %v3083
  %v3244 = vmul.f32 %v3243, %v3242
  %v3245 = vmul.f32 0.5, %v3244
  %v3246 = vsub.f32 1.5, %v3245
  %v3247 = vmul.f32 %v3242, %v3246
  %v3248 = vmul.f32 %v3083, %v3247
  %vm3249 = vcmp.eq.f32.partialorder %v3083, inf
  %v3250 = vsel %vm3249, %v3083, %v3248
  %vm3251 = vcmp.eq.f32.partialorder %v3083, 0.0
  %v3252 = vand.u32 %v3083, 2147483648
  %v3253 = vsel %vm3251, %v3252, %v3250
  %v3254 = vrsqrt.pop %v3084
  %v3255 = vmul.f32 %v3254, %v3084
  %v3256 = vmul.f32 %v3255, %v3254
  %v3257 = vmul.f32 0.5, %v3256
  %v3258 = vsub.f32 1.5, %v3257
  %v3259 = vmul.f32 %v3254, %v3258
  %v3260 = vmul.f32 %v3084, %v3259
  %vm3261 = vcmp.eq.f32.partialorder %v3084, inf
  %v3262 = vsel %vm3261, %v3084, %v3260
  %vm3263 = vcmp.eq.f32.partialorder %v3084, 0.0
  %v3264 = vand.u32 %v3084, 2147483648
  %v3265 = vsel %vm3263, %v3264, %v3262
  %v3266 = vrsqrt.pop %v3085
  %v3267 = vmul.f32 %v3266, %v3085
  %v3268 = vmul.f32 %v3267, %v3266
  %v3269 = vmul.f32 0.5, %v3268
  %v3270 = vsub.f32 1.5, %v3269
  %v3271 = vmul.f32 %v3266, %v3270
  %v3272 = vmul.f32 %v3085, %v3271
  %vm3273 = vcmp.eq.f32.partialorder %v3085, inf
  %v3274 = vsel %vm3273, %v3085, %v3272
  %vm3275 = vcmp.eq.f32.partialorder %v3085, 0.0
  %v3276 = vand.u32 %v3085, 2147483648
  %v3277 = vsel %vm3275, %v3276, %v3274
  %v3278 = vpack.c.bf16 %v3097, %v3097
  %v3279 = vpack.c.bf16 %v3109, %v3109
  %v3280 = vpack.c.bf16 %v3121, %v3121
  %v3281 = vpack.c.bf16 %v3133, %v3133
  %v3282 = vpack.c.bf16 %v3145, %v3145
  %v3283 = vpack.c.bf16 %v3157, %v3157
  %v3284 = vpack.c.bf16 %v3169, %v3169
  %v3285 = vpack.c.bf16 %v3181, %v3181
  %v3286 = vpack.c.bf16 %v3193, %v3193
  %v3287 = vpack.c.bf16 %v3205, %v3205
  %v3288 = vpack.c.bf16 %v3217, %v3217
  %v3289 = vpack.c.bf16 %v3229, %v3229
  %v3290 = vpack.c.bf16 %v3241, %v3241
  %v3291 = vpack.c.bf16 %v3253, %v3253
  %v3292 = vpack.c.bf16 %v3265, %v3265
  %v3293 = vpack.c.bf16 %v3277, %v3277
  %v3295 = vsel %vm80, %v3278, 0
  %3297 = vmatpush.bf16.msra.mxu0 0
  %3298 = vmatpush.bf16.msra.mxu0 0
  %3299 = vmatpush.bf16.msra.mxu0 0
  %3300 = vmatpush.bf16.msra.mxu0 0
  %3301 = vmatpush.bf16.msra.mxu0 0
  %3302 = vmatpush.bf16.msra.mxu0 0
  %3303 = vmatpush.bf16.msra.mxu0 0
  %3304 = vmatpush.bf16.msra.mxu0 %v1428
  %3305 = vmatmul.bf16.gmra.mxu0 %v3295
  %v3306 = vpop.f32.mrf.mxu0
  %v3307 = vadd.f32 1e-06, %v3306
  %v3308 = vpop.f32.mrf.mxu0
  %3309 = vdwg.mxu0
  %v3311 = vsel %vm80, %v3279, 0
  %3313 = vmatpush.bf16.msra.mxu0 0
  %3314 = vmatpush.bf16.msra.mxu0 0
  %3315 = vmatpush.bf16.msra.mxu0 0
  %3316 = vmatpush.bf16.msra.mxu0 0
  %3317 = vmatpush.bf16.msra.mxu0 0
  %3318 = vmatpush.bf16.msra.mxu0 0
  %3319 = vmatpush.bf16.msra.mxu0 0
  %3320 = vmatpush.bf16.msra.mxu0 %v1428
  %3321 = vmatmul.bf16.gmra.mxu0 %v3311
  %v3322 = vpop.f32.mrf.mxu0
  %v3323 = vadd.f32 1e-06, %v3322
  %v3324 = vpop.f32.mrf.mxu0
  %3325 = vdwg.mxu0
  %v3327 = vsel %vm80, %v3280, 0
  %3329 = vmatpush.bf16.msra.mxu0 0
  %3330 = vmatpush.bf16.msra.mxu0 0
  %3331 = vmatpush.bf16.msra.mxu0 0
  %3332 = vmatpush.bf16.msra.mxu0 0
  %3333 = vmatpush.bf16.msra.mxu0 0
  %3334 = vmatpush.bf16.msra.mxu0 0
  %3335 = vmatpush.bf16.msra.mxu0 0
  %3336 = vmatpush.bf16.msra.mxu0 %v1428
  %3337 = vmatmul.bf16.gmra.mxu0 %v3327
  %v3338 = vpop.f32.mrf.mxu0
  %v3339 = vadd.f32 1e-06, %v3338
  %v3340 = vpop.f32.mrf.mxu0
  %3341 = vdwg.mxu0
  %v3343 = vsel %vm80, %v3281, 0
  %3345 = vmatpush.bf16.msra.mxu0 0
  %3346 = vmatpush.bf16.msra.mxu0 0
  %3347 = vmatpush.bf16.msra.mxu0 0
  %3348 = vmatpush.bf16.msra.mxu0 0
  %3349 = vmatpush.bf16.msra.mxu0 0
  %3350 = vmatpush.bf16.msra.mxu0 0
  %3351 = vmatpush.bf16.msra.mxu0 0
  %3352 = vmatpush.bf16.msra.mxu0 %v1428
  %3353 = vmatmul.bf16.gmra.mxu0 %v3343
  %v3354 = vpop.f32.mrf.mxu0
  %v3355 = vadd.f32 1e-06, %v3354
  %v3356 = vpop.f32.mrf.mxu0
  %3357 = vdwg.mxu0
  %v3359 = vsel %vm80, %v3282, 0
  %3361 = vmatpush.bf16.msra.mxu0 0
  %3362 = vmatpush.bf16.msra.mxu0 0
  %3363 = vmatpush.bf16.msra.mxu0 0
  %3364 = vmatpush.bf16.msra.mxu0 0
  %3365 = vmatpush.bf16.msra.mxu0 0
  %3366 = vmatpush.bf16.msra.mxu0 0
  %3367 = vmatpush.bf16.msra.mxu0 0
  %3368 = vmatpush.bf16.msra.mxu0 %v1428
  %3369 = vmatmul.bf16.gmra.mxu0 %v3359
  %v3370 = vpop.f32.mrf.mxu0
  %v3371 = vadd.f32 1e-06, %v3370
  %v3372 = vpop.f32.mrf.mxu0
  %3373 = vdwg.mxu0
  %v3375 = vsel %vm80, %v3283, 0
  %3377 = vmatpush.bf16.msra.mxu0 0
  %3378 = vmatpush.bf16.msra.mxu0 0
  %3379 = vmatpush.bf16.msra.mxu0 0
  %3380 = vmatpush.bf16.msra.mxu0 0
  %3381 = vmatpush.bf16.msra.mxu0 0
  %3382 = vmatpush.bf16.msra.mxu0 0
  %3383 = vmatpush.bf16.msra.mxu0 0
  %3384 = vmatpush.bf16.msra.mxu0 %v1428
  %3385 = vmatmul.bf16.gmra.mxu0 %v3375
  %v3386 = vpop.f32.mrf.mxu0
  %v3387 = vadd.f32 1e-06, %v3386
  %v3388 = vpop.f32.mrf.mxu0
  %3389 = vdwg.mxu0
  %v3391 = vsel %vm80, %v3284, 0
  %3393 = vmatpush.bf16.msra.mxu0 0
  %3394 = vmatpush.bf16.msra.mxu0 0
  %3395 = vmatpush.bf16.msra.mxu0 0
  %3396 = vmatpush.bf16.msra.mxu0 0
  %3397 = vmatpush.bf16.msra.mxu0 0
  %3398 = vmatpush.bf16.msra.mxu0 0
  %3399 = vmatpush.bf16.msra.mxu0 0
  %3400 = vmatpush.bf16.msra.mxu0 %v1428
  %3401 = vmatmul.bf16.gmra.mxu0 %v3391
  %v3402 = vpop.f32.mrf.mxu0
  %v3403 = vadd.f32 1e-06, %v3402
  %v3404 = vpop.f32.mrf.mxu0
  %3405 = vdwg.mxu0
  %v3407 = vsel %vm80, %v3285, 0
  %3409 = vmatpush.bf16.msra.mxu0 0
  %3410 = vmatpush.bf16.msra.mxu0 0
  %3411 = vmatpush.bf16.msra.mxu0 0
  %3412 = vmatpush.bf16.msra.mxu0 0
  %3413 = vmatpush.bf16.msra.mxu0 0
  %3414 = vmatpush.bf16.msra.mxu0 0
  %3415 = vmatpush.bf16.msra.mxu0 0
  %3416 = vmatpush.bf16.msra.mxu0 %v1428
  %3417 = vmatmul.bf16.gmra.mxu0 %v3407
  %v3418 = vpop.f32.mrf.mxu0
  %v3419 = vadd.f32 1e-06, %v3418
  %v3420 = vpop.f32.mrf.mxu0
  %3421 = vdwg.mxu0
  %v3423 = vsel %vm80, %v3286, 0
  %3425 = vmatpush.bf16.msra.mxu0 0
  %3426 = vmatpush.bf16.msra.mxu0 0
  %3427 = vmatpush.bf16.msra.mxu0 0
  %3428 = vmatpush.bf16.msra.mxu0 0
  %3429 = vmatpush.bf16.msra.mxu0 0
  %3430 = vmatpush.bf16.msra.mxu0 0
  %3431 = vmatpush.bf16.msra.mxu0 0
  %3432 = vmatpush.bf16.msra.mxu0 %v1428
  %3433 = vmatmul.bf16.gmra.mxu0 %v3423
  %v3434 = vpop.f32.mrf.mxu0
  %v3435 = vadd.f32 1e-06, %v3434
  %v3436 = vpop.f32.mrf.mxu0
  %3437 = vdwg.mxu0
  %v3439 = vsel %vm80, %v3287, 0
  %3441 = vmatpush.bf16.msra.mxu0 0
  %3442 = vmatpush.bf16.msra.mxu0 0
  %3443 = vmatpush.bf16.msra.mxu0 0
  %3444 = vmatpush.bf16.msra.mxu0 0
  %3445 = vmatpush.bf16.msra.mxu0 0
  %3446 = vmatpush.bf16.msra.mxu0 0
  %3447 = vmatpush.bf16.msra.mxu0 0
  %3448 = vmatpush.bf16.msra.mxu0 %v1428
  %3449 = vmatmul.bf16.gmra.mxu0 %v3439
  %v3450 = vpop.f32.mrf.mxu0
  %v3451 = vadd.f32 1e-06, %v3450
  %v3452 = vpop.f32.mrf.mxu0
  %3453 = vdwg.mxu0
  %v3455 = vsel %vm80, %v3288, 0
  %3457 = vmatpush.bf16.msra.mxu0 0
  %3458 = vmatpush.bf16.msra.mxu0 0
  %3459 = vmatpush.bf16.msra.mxu0 0
  %3460 = vmatpush.bf16.msra.mxu0 0
  %3461 = vmatpush.bf16.msra.mxu0 0
  %3462 = vmatpush.bf16.msra.mxu0 0
  %3463 = vmatpush.bf16.msra.mxu0 0
  %3464 = vmatpush.bf16.msra.mxu0 %v1428
  %3465 = vmatmul.bf16.gmra.mxu0 %v3455
  %v3466 = vpop.f32.mrf.mxu0
  %v3467 = vadd.f32 1e-06, %v3466
  %v3468 = vpop.f32.mrf.mxu0
  %3469 = vdwg.mxu0
  %v3471 = vsel %vm80, %v3289, 0
  %3473 = vmatpush.bf16.msra.mxu0 0
  %3474 = vmatpush.bf16.msra.mxu0 0
  %3475 = vmatpush.bf16.msra.mxu0 0
  %3476 = vmatpush.bf16.msra.mxu0 0
  %3477 = vmatpush.bf16.msra.mxu0 0
  %3478 = vmatpush.bf16.msra.mxu0 0
  %3479 = vmatpush.bf16.msra.mxu0 0
  %3480 = vmatpush.bf16.msra.mxu0 %v1428
  %3481 = vmatmul.bf16.gmra.mxu0 %v3471
  %v3482 = vpop.f32.mrf.mxu0
  %v3483 = vadd.f32 1e-06, %v3482
  %v3484 = vpop.f32.mrf.mxu0
  %3485 = vdwg.mxu0
  %v3487 = vsel %vm80, %v3290, 0
  %3489 = vmatpush.bf16.msra.mxu0 0
  %3490 = vmatpush.bf16.msra.mxu0 0
  %3491 = vmatpush.bf16.msra.mxu0 0
  %3492 = vmatpush.bf16.msra.mxu0 0
  %3493 = vmatpush.bf16.msra.mxu0 0
  %3494 = vmatpush.bf16.msra.mxu0 0
  %3495 = vmatpush.bf16.msra.mxu0 0
  %3496 = vmatpush.bf16.msra.mxu0 %v1428
  %3497 = vmatmul.bf16.gmra.mxu0 %v3487
  %v3498 = vpop.f32.mrf.mxu0
  %v3499 = vadd.f32 1e-06, %v3498
  %v3500 = vpop.f32.mrf.mxu0
  %3501 = vdwg.mxu0
  %v3503 = vsel %vm80, %v3291, 0
  %3505 = vmatpush.bf16.msra.mxu0 0
  %3506 = vmatpush.bf16.msra.mxu0 0
  %3507 = vmatpush.bf16.msra.mxu0 0
  %3508 = vmatpush.bf16.msra.mxu0 0
  %3509 = vmatpush.bf16.msra.mxu0 0
  %3510 = vmatpush.bf16.msra.mxu0 0
  %3511 = vmatpush.bf16.msra.mxu0 0
  %3512 = vmatpush.bf16.msra.mxu0 %v1428
  %3513 = vmatmul.bf16.gmra.mxu0 %v3503
  %v3514 = vpop.f32.mrf.mxu0
  %v3515 = vadd.f32 1e-06, %v3514
  %v3516 = vpop.f32.mrf.mxu0
  %3517 = vdwg.mxu0
  %v3519 = vsel %vm80, %v3292, 0
  %3521 = vmatpush.bf16.msra.mxu0 0
  %3522 = vmatpush.bf16.msra.mxu0 0
  %3523 = vmatpush.bf16.msra.mxu0 0
  %3524 = vmatpush.bf16.msra.mxu0 0
  %3525 = vmatpush.bf16.msra.mxu0 0
  %3526 = vmatpush.bf16.msra.mxu0 0
  %3527 = vmatpush.bf16.msra.mxu0 0
  %3528 = vmatpush.bf16.msra.mxu0 %v1428
  %3529 = vmatmul.bf16.gmra.mxu0 %v3519
  %v3530 = vpop.f32.mrf.mxu0
  %v3531 = vadd.f32 1e-06, %v3530
  %v3532 = vpop.f32.mrf.mxu0
  %3533 = vdwg.mxu0
  %v3535 = vsel %vm80, %v3293, 0
  %3537 = vmatpush.bf16.msra.mxu0 0
  %3538 = vmatpush.bf16.msra.mxu0 0
  %3539 = vmatpush.bf16.msra.mxu0 0
  %3540 = vmatpush.bf16.msra.mxu0 0
  %3541 = vmatpush.bf16.msra.mxu0 0
  %3542 = vmatpush.bf16.msra.mxu0 0
  %3543 = vmatpush.bf16.msra.mxu0 0
  %3544 = vmatpush.bf16.msra.mxu0 %v1428
  %3545 = vmatmul.bf16.gmra.mxu0 %v3535
  %v3546 = vpop.f32.mrf.mxu0
  %v3547 = vadd.f32 1e-06, %v3546
  %v3548 = vpop.f32.mrf.mxu0
  %3549 = vdwg.mxu0
  %v3550 = vlog2.pop %v3307
  %v3551 = vmul.f32 %v3550, 0.6931472
  %v3552 = vlog2.pop %v3323
  %v3553 = vmul.f32 %v3552, 0.6931472
  %v3554 = vlog2.pop %v3339
  %v3555 = vmul.f32 %v3554, 0.6931472
  %v3556 = vlog2.pop %v3355
  %v3557 = vmul.f32 %v3556, 0.6931472
  %v3558 = vlog2.pop %v3371
  %v3559 = vmul.f32 %v3558, 0.6931472
  %v3560 = vlog2.pop %v3387
  %v3561 = vmul.f32 %v3560, 0.6931472
  %v3562 = vlog2.pop %v3403
  %v3563 = vmul.f32 %v3562, 0.6931472
  %v3564 = vlog2.pop %v3419
  %v3565 = vmul.f32 %v3564, 0.6931472
  %v3566 = vlog2.pop %v3435
  %v3567 = vmul.f32 %v3566, 0.6931472
  %v3568 = vlog2.pop %v3451
  %v3569 = vmul.f32 %v3568, 0.6931472
  %v3570 = vlog2.pop %v3467
  %v3571 = vmul.f32 %v3570, 0.6931472
  %v3572 = vlog2.pop %v3483
  %v3573 = vmul.f32 %v3572, 0.6931472
  %v3574 = vlog2.pop %v3499
  %v3575 = vmul.f32 %v3574, 0.6931472
  %v3576 = vlog2.pop %v3515
  %v3577 = vmul.f32 %v3576, 0.6931472
  %v3578 = vlog2.pop %v3531
  %v3579 = vmul.f32 %v3578, 0.6931472
  %v3580 = vlog2.pop %v3547
  %v3581 = vmul.f32 %v3580, 0.6931472
  %v3582 = vsel %vm1862, %v3551, 0.0
  %3583 = vadd.xlane.f32.xlu0 %v3582
  %v3584 = vpop.xlane.xlu0 %3583
  %v3585 = vsel %vm1862, %v3553, 0.0
  %3586 = vadd.xlane.f32.xlu0 %v3585
  %v3587 = vpop.xlane.xlu0 %3586
  %v3588 = vsel %vm1862, %v3555, 0.0
  %3589 = vadd.xlane.f32.xlu0 %v3588
  %v3590 = vpop.xlane.xlu0 %3589
  %v3591 = vsel %vm1862, %v3557, 0.0
  %3592 = vadd.xlane.f32.xlu0 %v3591
  %v3593 = vpop.xlane.xlu0 %3592
  %v3594 = vsel %vm1862, %v3559, 0.0
  %3595 = vadd.xlane.f32.xlu0 %v3594
  %v3596 = vpop.xlane.xlu0 %3595
  %v3597 = vsel %vm1862, %v3561, 0.0
  %3598 = vadd.xlane.f32.xlu0 %v3597
  %v3599 = vpop.xlane.xlu0 %3598
  %v3600 = vsel %vm1862, %v3563, 0.0
  %3601 = vadd.xlane.f32.xlu0 %v3600
  %v3602 = vpop.xlane.xlu0 %3601
  %v3603 = vsel %vm1862, %v3565, 0.0
  %3604 = vadd.xlane.f32.xlu0 %v3603
  %v3605 = vpop.xlane.xlu0 %3604
  %v3606 = vsel %vm1862, %v3567, 0.0
  %3607 = vadd.xlane.f32.xlu0 %v3606
  %v3608 = vpop.xlane.xlu0 %3607
  %v3609 = vsel %vm1862, %v3569, 0.0
  %3610 = vadd.xlane.f32.xlu0 %v3609
  %v3611 = vpop.xlane.xlu0 %3610
  %v3612 = vsel %vm1862, %v3571, 0.0
  %3613 = vadd.xlane.f32.xlu0 %v3612
  %v3614 = vpop.xlane.xlu0 %3613
  %v3615 = vsel %vm1862, %v3573, 0.0
  %3616 = vadd.xlane.f32.xlu0 %v3615
  %v3617 = vpop.xlane.xlu0 %3616
  %v3618 = vsel %vm1862, %v3575, 0.0
  %3619 = vadd.xlane.f32.xlu0 %v3618
  %v3620 = vpop.xlane.xlu0 %3619
  %v3621 = vsel %vm1862, %v3577, 0.0
  %3622 = vadd.xlane.f32.xlu0 %v3621
  %v3623 = vpop.xlane.xlu0 %3622
  %v3624 = vsel %vm1862, %v3579, 0.0
  %3625 = vadd.xlane.f32.xlu0 %v3624
  %v3626 = vpop.xlane.xlu0 %3625
  %v3627 = vsel %vm1862, %v3581, 0.0
  %3628 = vadd.xlane.f32.xlu0 %v3627
  %v3629 = vpop.xlane.xlu0 %3628
  %v3630 = vmul.f32 %v3584, %v1941
  %v3631 = vmul.f32 %v3587, %v1941
  %v3632 = vmul.f32 %v3590, %v1941
  %v3633 = vmul.f32 %v3593, %v1941
  %v3634 = vmul.f32 %v3596, %v1941
  %v3635 = vmul.f32 %v3599, %v1941
  %v3636 = vmul.f32 %v3602, %v1941
  %v3637 = vmul.f32 %v3605, %v1941
  %v3638 = vmul.f32 %v3608, %v1941
  %v3639 = vmul.f32 %v3611, %v1941
  %v3640 = vmul.f32 %v3614, %v1941
  %v3641 = vmul.f32 %v3617, %v1941
  %v3642 = vmul.f32 %v3620, %v1941
  %v3643 = vmul.f32 %v3623, %v1941
  %v3644 = vmul.f32 %v3626, %v1941
  %v3645 = vmul.f32 %v3629, %v1941
  %v3662 = vperm.slane %v3630, %v1991
  %v3663 = vperm.slane %v3631, %v1991
  %v3664 = vperm.slane %v3632, %v1991
  %v3665 = vperm.slane %v3633, %v1991
  %v3666 = vperm.slane %v3634, %v1991
  %v3667 = vperm.slane %v3635, %v1991
  %v3668 = vperm.slane %v3636, %v1991
  %v3669 = vperm.slane %v3637, %v1991
  %v3670 = vperm.slane %v3638, %v1991
  %v3671 = vperm.slane %v3639, %v1991
  %v3672 = vperm.slane %v3640, %v1991
  %v3673 = vperm.slane %v3641, %v1991
  %v3674 = vperm.slane %v3642, %v1991
  %v3675 = vperm.slane %v3643, %v1991
  %v3676 = vperm.slane %v3644, %v1991
  %v3677 = vperm.slane %v3645, %v1991
  %v3678 = vsel %vm2016, %v3663, %v3662
  %v3679 = vsel %vm2018, %v3664, %v3678
  %v3680 = vsel %vm2020, %v3665, %v3679
  %v3681 = vsel %vm2022, %v3666, %v3680
  %v3682 = vsel %vm2024, %v3667, %v3681
  %v3683 = vsel %vm2026, %v3668, %v3682
  %v3684 = vsel %vm2028, %v3669, %v3683
  %v3685 = vsel %vm2016, %v3671, %v3670
  %v3686 = vsel %vm2018, %v3672, %v3685
  %v3687 = vsel %vm2020, %v3673, %v3686
  %v3688 = vsel %vm2022, %v3674, %v3687
  %v3689 = vsel %vm2024, %v3675, %v3688
  %v3690 = vsel %vm2026, %v3676, %v3689
  %v3691 = vsel %vm2028, %v3677, %v3690
  %3694 = vst.msk [vmem:[%s6 + $0x20] sm:$0xff] %vm2047, %v3684
  %3695 = vst.msk [vmem:[%s6 + $0x28] sm:$0xff] %vm2047, %v3691
  // Predicated region
  $region26: #{tpu_custom_call.1} parent=0 // pred_check
    _
  $region27: #{tpu_custom_call.1} parent=0 // pred_check_branch
    %3697 = sbr.rel (0) target = $region29
  $region28: #{tpu_custom_call.1} parent=0 // pred_region
    _
  $region29: #{tpu_custom_call.1} parent=0 // pred_fallthru
    _
  // Predicated region
  $region30: #{tpu_custom_call.1} parent=0 // pred_check
    _
  $region31: #{tpu_custom_call.1} parent=0 // pred_check_branch
    %3699 = sbr.rel (0) target = $region33
  $region32: #{tpu_custom_call.1} parent=0 // pred_region
    _
  $region33: #{tpu_custom_call.1} parent=0 // pred_fallthru
    _

</llo_original>
